<compile_context>
chip_gen: v7x
topology: tpu7x:2x2x1
jax: 0.10.0
libtpu: 0.0.40
codegen_flags: <defaults>
</compile_context>

<pallas_src>
import jax
import jax.numpy as jnp
from jax import lax
from jax.experimental import pallas as pl
from jax.experimental.pallas import tpu as pltpu

# Static geometry for the 16x16 test input.
H = W = 16
CIN = 3
H1 = W1 = H - 2            # conv1 3x3 VALID -> 14 x 14
KQ1 = 3 * 3 * CIN          # 27 patch features per conv1 output position
C1 = 32                    # conv1 out channels
C2 = 64                    # conv2 out channels
G = W1 - 1                 # 13 uncompacted 32-lane groups after the horizontal pair-max
NHEAD = 32                 # linear1 width


def _fused_net_kernel(p_ref, w1_ref, b1_ref, w2_ref, b2_ref,
                      l1w_ref, l1b_ref, l2w_ref, l2b_ref, o_ref):
    B = o_ref.shape[-1]                                       # samples per grid step

    # ---- conv1: one MXU matmul; the block-diagonal weight lands the result
    # directly in layout c1[r*B + b, w*32 + c] (pool-friendly, no relayout). ----
    c1 = jnp.dot(p_ref[...], w1_ref[...],
                 preferred_element_type=jnp.float32) + b1_ref[...]          # (14B, 448)

    # ---- pool1 (2x2, stride 2): horizontal pair-max along lanes (uncompacted:
    # even 32-lane groups g = 2j hold valid pooled columns), vertical pair-max
    # as 8-row-aligned slab maxima.  slab[i][b, 2j*32+c] = pool1(x_b)[i, j, c]. ----
    m1 = jnp.maximum(c1[:, :G * C1], c1[:, C1:])                            # (14B, 416)
    # conv2's kept 2x2 output window only touches pooled rows i = oh+ki in 0..5.
    slabs = [jnp.maximum(m1[(2 * i) * B:(2 * i + 1) * B, :],
                         m1[(2 * i + 1) * B:(2 * i + 2) * B, :])
             for i in range(6)]                                             # 6 x (B, 416)

    # ---- conv2 restricted to the 2x2 window that pool2 keeps.  w2_ref is
    # (2080, 128) = [W(ow=0) | W(ow=1)]; its zero rows mask the odd
    # ("straddling") lane groups, so no compaction/gather of the pooled map is
    # needed. ----
    lhs0 = jnp.concatenate(slabs[0:5], axis=1)                              # (B, 2080)  oh = 0
    lhs1 = jnp.concatenate(slabs[1:6], axis=1)                              # (B, 2080)  oh = 1
    c20 = jnp.dot(lhs0, w2_ref[...], preferred_element_type=jnp.float32)    # (B, 128)
    c21 = jnp.dot(lhs1, w2_ref[...], preferred_element_type=jnp.float32)    # (B, 128)
    m2 = jnp.maximum(c20, c21)                                              # max over oh
    # pool2 (2x2 floor -> 1x1) + AdaptiveMaxPool2d((1,1)) (identity on 1x1):
    f = jnp.maximum(m2[:, :C2], m2[:, C2:]) + b2_ref[...]                   # (B, 64)
    # TODO(synk): nn.Dropout2d(p=0.1) is identity in eval mode; training-mode
    # whole-channel dropout is not implemented.

    # ---- head: Linear(64,32)+ReLU, then Linear(32,1) emitted directly as a
    # lane-dense (1, B) row (A @ B^T-style contraction), stable sigmoid. ----
    h = jnp.maximum(
        jnp.dot(f, l1w_ref[...], preferred_element_type=jnp.float32) + l1b_ref[...],
        0.0)                                                                # (B, 32)
    z = lax.dot_general(l2w_ref[...], h, (((1,), (1,)), ((), ())),
                        preferred_element_type=jnp.float32) + l2b_ref[...]  # (1, B)
    e = jnp.exp(-jnp.abs(z))
    y = jnp.where(z >= 0.0, 1.0 / (1.0 + e), e / (1.0 + e))
    o_ref[...] = y.reshape(o_ref.shape)


# ---------------- wrapper-side (pure JAX) preprocessing -------------------------

def _round_up(n, m):
    return ((n + m - 1) // m) * m


def _conv1_patches(x_nhwc, n_blk, B):
    """conv1 im2col with rows ordered (block, r, sample) so that all in-kernel
    pooling reductions are 8-row-aligned slab maxima."""
    n_pad = n_blk * B
    pats = jnp.stack([x_nhwc[:, ki:ki + H1, kj:kj + W1, :]
                      for ki in range(3) for kj in range(3)], axis=3)       # (Np,14,14,9,3)
    pats = pats.reshape(n_pad, H1, W1, KQ1)                                 # q = (ki*3+kj)*3+cin
    pats = pats.reshape(n_blk, B, H1, W1 * KQ1)
    pats = jnp.transpose(pats, (0, 2, 1, 3))                                # (blk, r, b, 378)
    return pats.reshape(n_blk * H1 * B, W1 * KQ1)                           # row = blk*14B + r*B + b


def _conv2_weight(w2_hwio):
    """(2080, 128) = [W(ow=0) | W(ow=1)].  Row ki*416 + g*32 + c carries
    w2[ki, kj, c, :] at the uncompacted lane group g = 2*(ow + kj); odd
    (straddling) groups and unused columns are zero."""
    cols = []
    for ow in (0, 1):
        wz = jnp.zeros((5, G, C1, C2), jnp.float32)
        wz = wz.at[:, 2 * ow:2 * ow + 9:2, :, :].set(w2_hwio.astype(jnp.float32))
        cols.append(wz.reshape(5 * G * C1, C2))
    return jnp.concatenate(cols, axis=1)


def net_forward(x_nchw, p, block_b=None):
    x = jnp.transpose(x_nchw, (0, 2, 3, 1)).astype(jnp.float32)             # NCHW -> NHWC
    N = x.shape[0]
    # Batch block per grid step.  B is kept modest (<=64) so the per-step VMEM
    # footprint stays well inside v7x's 64 MiB; for large N, grid length >= 2
    # lets the "parallel" axis shard across v7x's two TensorCores.
    B = block_b if block_b is not None else min(64, _round_up(max(N, 1), 8))
    n_blk = pl.cdiv(N, B)
    n_pad = n_blk * B
    if n_pad != N:
        x = jnp.concatenate([x, jnp.zeros((n_pad - N, H, W, CIN), x.dtype)], axis=0)

    p2d = _conv1_patches(x, n_blk, B)                                       # (nblk*14*B, 378)
    w1m = p["conv1_w"].reshape(KQ1, C1).astype(jnp.float32)                 # (27, 32) HWIO order
    w1bd = jnp.kron(jnp.eye(W1, dtype=jnp.float32), w1m)                    # (378, 448) block-diag
    b1w = jnp.tile(p["conv1_b"].reshape(1, C1).astype(jnp.float32), (1, W1))  # (1, 448)
    w2cat = _conv2_weight(p["conv2_w"])                                     # (2080, 128)
    b2 = p["conv2_b"].reshape(1, C2).astype(jnp.float32)
    l1w = p["lin1_w"].astype(jnp.float32)                                   # (64, 32)
    l1b = p["lin1_b"].reshape(1, NHEAD).astype(jnp.float32)
    l2w = p["lin2_w"].reshape(1, NHEAD).astype(jnp.float32)                 # row vector
    l2b = p["lin2_b"].reshape(1, 1).astype(jnp.float32)

    rows = H1 * B
    out = pl.pallas_call(
        _fused_net_kernel,
        out_shape=jax.ShapeDtypeStruct((n_blk, 1, B), jnp.float32),
        grid=(n_blk,),
        in_specs=[
            pl.BlockSpec((rows, W1 * KQ1), lambda n: (n, 0)),               # conv1 patches
            pl.BlockSpec((W1 * KQ1, W1 * C1), lambda n: (0, 0)),            # conv1 block-diag w
            pl.BlockSpec((1, W1 * C1), lambda n: (0, 0)),                   # conv1 b (tiled)
            pl.BlockSpec((5 * G * C1, 2 * C2), lambda n: (0, 0)),           # conv2 shift-packed w
            pl.BlockSpec((1, C2), lambda n: (0, 0)),                        # conv2 b
            pl.BlockSpec((C2, NHEAD), lambda n: (0, 0)),                    # lin1 w
            pl.BlockSpec((1, NHEAD), lambda n: (0, 0)),                     # lin1 b
            pl.BlockSpec((1, NHEAD), lambda n: (0, 0)),                     # lin2 w (row)
            pl.BlockSpec((1, 1), lambda n: (0, 0)),                         # lin2 b
        ],
        out_specs=pl.BlockSpec((1, 1, B), lambda n: (n, 0, 0)),
        compiler_params=pltpu.CompilerParams(dimension_semantics=("parallel",)),
    )(p2d, w1bd, b1w, w2cat, b2, l1w, l1b, l2w, l2b)
    return out.reshape(n_pad, 1)[:N]


# ---------------- Pure-JAX reference for validation -----------------------------

def ref_forward(x_nchw, p):
    x = jnp.transpose(x_nchw, (0, 2, 3, 1))
    dn = ("NHWC", "HWIO", "NHWC")
    x = lax.conv_general_dilated(x, p["conv1_w"], (1, 1), "VALID",
                                 dimension_numbers=dn,
                                 precision=lax.Precision.HIGHEST) + p["conv1_b"]
    x = lax.reduce_window(x, -jnp.inf, lax.max, (1, 2, 2, 1), (1, 2, 2, 1), "VALID")
    x = lax.conv_general_dilated(x, p["conv2_w"], (1, 1), "VALID",
                                 dimension_numbers=dn,
                                 precision=lax.Precision.HIGHEST) + p["conv2_b"]
    x = lax.reduce_window(x, -jnp.inf, lax.max, (1, 2, 2, 1), (1, 2, 2, 1), "VALID")
    f = jnp.max(x, axis=(1, 2))
    h = jnp.maximum(f @ p["lin1_w"] + p["lin1_b"], 0.0)
    z = h @ p["lin2_w"] + p["lin2_b"]
    return jax.nn.sigmoid(z)


def init_params(key):
    ks = jax.random.split(key, 8)

    def w(k, shape, fan_in):
        return jax.random.normal(k, shape, jnp.float32) / jnp.sqrt(fan_in)

    return {
        "conv1_w": w(ks[0], (3, 3, 3, 32), 3 * 3 * 3),        # HWIO
        "conv1_b": 0.1 * jax.random.normal(ks[1], (32,), jnp.float32),
        "conv2_w": w(ks[2], (5, 5, 32, 64), 5 * 5 * 32),      # HWIO
        "conv2_b": 0.1 * jax.random.normal(ks[3], (64,), jnp.float32),
        "lin1_w": w(ks[4], (64, 32), 64),
        "lin1_b": 0.1 * jax.random.normal(ks[5], (32,), jnp.float32),
        "lin2_w": w(ks[6], (32, 1), 32),
        "lin2_b": 0.1 * jax.random.normal(ks[7], (1,), jnp.float32),
    }


if __name__ == "__main__":
    key = jax.random.PRNGKey(0)
    pkey, xkey = jax.random.split(key)
    params = init_params(pkey)
    x = jax.random.normal(xkey, (2, 3, 16, 16), jnp.float32)   # NCHW like PyTorch

    fwd = jax.jit(net_forward)
    y = jax.block_until_ready(fwd(x, params))
    assert y.shape == (2, 1), y.shape
    assert bool(jnp.all(jnp.isfinite(y))), y

    y_ref = jax.block_until_ready(ref_forward(x, params))
    assert bool(jnp.allclose(y, y_ref, atol=5e-3, rtol=5e-3)), (y, y_ref)

    print("KERNEL_OK")
</pallas_src>

<mosaic_0001>
module attributes {stable_mosaic.version = 11 : i64} {
  func.func @_fused_net_kernel(%arg0: i32, %arg1: memref<112x378xf32, #tpu.memory_space<vmem>>, %arg2: memref<378x448xf32, #tpu.memory_space<vmem>>, %arg3: memref<1x448xf32, #tpu.memory_space<vmem>>, %arg4: memref<2080x128xf32, #tpu.memory_space<vmem>>, %arg5: memref<1x64xf32, #tpu.memory_space<vmem>>, %arg6: memref<64x32xf32, #tpu.memory_space<vmem>>, %arg7: memref<1x32xf32, #tpu.memory_space<vmem>>, %arg8: memref<1x32xf32, #tpu.memory_space<vmem>>, %arg9: memref<1x1xf32, #tpu.memory_space<vmem>>, %arg10: memref<1x1x8xf32, #tpu.memory_space<vmem>>) attributes {dimension_semantics = [#tpu.dimension_semantics<parallel>], iteration_bounds = array<i64: 1>, scalar_prefetch = 0 : i64, scratch_operands = 0 : i64, tpu.core_type = #tpu.core_type<tc>, window_params = [{transform_indices = @transform_0, window_bounds = array<i64: 112, 378>}, {pipeline_mode = #tpu.pipeline_mode<synchronous>, transform_indices = @transform_1, window_bounds = array<i64: 378, 448>}, {pipeline_mode = #tpu.pipeline_mode<synchronous>, transform_indices = @transform_2, window_bounds = array<i64: 1, 448>}, {pipeline_mode = #tpu.pipeline_mode<synchronous>, transform_indices = @transform_3, window_bounds = array<i64: 2080, 128>}, {pipeline_mode = #tpu.pipeline_mode<synchronous>, transform_indices = @transform_4, window_bounds = array<i64: 1, 64>}, {pipeline_mode = #tpu.pipeline_mode<synchronous>, transform_indices = @transform_5, window_bounds = array<i64: 64, 32>}, {pipeline_mode = #tpu.pipeline_mode<synchronous>, transform_indices = @transform_6, window_bounds = array<i64: 1, 32>}, {pipeline_mode = #tpu.pipeline_mode<synchronous>, transform_indices = @transform_7, window_bounds = array<i64: 1, 32>}, {pipeline_mode = #tpu.pipeline_mode<synchronous>, transform_indices = @transform_8, window_bounds = array<i64: 1, 1>}, {transform_indices = @transform_9, window_bounds = array<i64: 1, 1, 8>}]} {
    %c0 = arith.constant 0 : index
    %c0_0 = arith.constant 0 : index
    %0 = vector.load %arg1[%c0, %c0_0] : memref<112x378xf32, #tpu.memory_space<vmem>>, vector<112x378xf32>
    %c0_1 = arith.constant 0 : index
    %c0_2 = arith.constant 0 : index
    %1 = vector.load %arg2[%c0_1, %c0_2] : memref<378x448xf32, #tpu.memory_space<vmem>>, vector<378x448xf32>
    %cst = arith.constant dense<0.000000e+00> : vector<112x448xf32>
    %2 = tpu.matmul %0, %1, %cst {dimension_numbers = #tpu.dot_dimension_numbers<[1], [0], [0], [1], [0, 0, 1, 1], [], []>} : vector<112x378xf32>, vector<378x448xf32>, vector<112x448xf32> -> vector<112x448xf32>
    %c0_3 = arith.constant 0 : index
    %c0_4 = arith.constant 0 : index
    %3 = vector.load %arg3[%c0_3, %c0_4] : memref<1x448xf32, #tpu.memory_space<vmem>>, vector<1x448xf32>
    %4 = vector.broadcast %3 : vector<1x448xf32> to vector<112x448xf32>
    %5 = arith.addf %2, %4 : vector<112x448xf32>
    %6 = vector.extract_strided_slice %5 {offsets = [0, 0], sizes = [112, 416], strides = [1, 1]} : vector<112x448xf32> to vector<112x416xf32>
    %7 = vector.extract_strided_slice %5 {offsets = [0, 32], sizes = [112, 416], strides = [1, 1]} : vector<112x448xf32> to vector<112x416xf32>
    %8 = arith.maximumf %6, %7 : vector<112x416xf32>
    %9 = vector.extract_strided_slice %8 {offsets = [0, 0], sizes = [8, 416], strides = [1, 1]} : vector<112x416xf32> to vector<8x416xf32>
    %10 = vector.extract_strided_slice %8 {offsets = [8, 0], sizes = [8, 416], strides = [1, 1]} : vector<112x416xf32> to vector<8x416xf32>
    %11 = arith.maximumf %9, %10 : vector<8x416xf32>
    %12 = vector.extract_strided_slice %8 {offsets = [16, 0], sizes = [8, 416], strides = [1, 1]} : vector<112x416xf32> to vector<8x416xf32>
    %13 = vector.extract_strided_slice %8 {offsets = [24, 0], sizes = [8, 416], strides = [1, 1]} : vector<112x416xf32> to vector<8x416xf32>
    %14 = arith.maximumf %12, %13 : vector<8x416xf32>
    %15 = vector.extract_strided_slice %8 {offsets = [32, 0], sizes = [8, 416], strides = [1, 1]} : vector<112x416xf32> to vector<8x416xf32>
    %16 = vector.extract_strided_slice %8 {offsets = [40, 0], sizes = [8, 416], strides = [1, 1]} : vector<112x416xf32> to vector<8x416xf32>
    %17 = arith.maximumf %15, %16 : vector<8x416xf32>
    %18 = vector.extract_strided_slice %8 {offsets = [48, 0], sizes = [8, 416], strides = [1, 1]} : vector<112x416xf32> to vector<8x416xf32>
    %19 = vector.extract_strided_slice %8 {offsets = [56, 0], sizes = [8, 416], strides = [1, 1]} : vector<112x416xf32> to vector<8x416xf32>
    %20 = arith.maximumf %18, %19 : vector<8x416xf32>
    %21 = vector.extract_strided_slice %8 {offsets = [64, 0], sizes = [8, 416], strides = [1, 1]} : vector<112x416xf32> to vector<8x416xf32>
    %22 = vector.extract_strided_slice %8 {offsets = [72, 0], sizes = [8, 416], strides = [1, 1]} : vector<112x416xf32> to vector<8x416xf32>
    %23 = arith.maximumf %21, %22 : vector<8x416xf32>
    %24 = vector.extract_strided_slice %8 {offsets = [80, 0], sizes = [8, 416], strides = [1, 1]} : vector<112x416xf32> to vector<8x416xf32>
    %25 = vector.extract_strided_slice %8 {offsets = [88, 0], sizes = [8, 416], strides = [1, 1]} : vector<112x416xf32> to vector<8x416xf32>
    %26 = arith.maximumf %24, %25 : vector<8x416xf32>
    %27 = tpu.concatenate %11, %14, %17, %20, %23 in 1 : vector<8x416xf32>, vector<8x416xf32>, vector<8x416xf32>, vector<8x416xf32>, vector<8x416xf32> -> vector<8x2080xf32>
    %28 = tpu.concatenate %14, %17, %20, %23, %26 in 1 : vector<8x416xf32>, vector<8x416xf32>, vector<8x416xf32>, vector<8x416xf32>, vector<8x416xf32> -> vector<8x2080xf32>
    %c0_5 = arith.constant 0 : index
    %c0_6 = arith.constant 0 : index
    %29 = vector.load %arg4[%c0_5, %c0_6] : memref<2080x128xf32, #tpu.memory_space<vmem>>, vector<2080x128xf32>
    %cst_7 = arith.constant dense<0.000000e+00> : vector<8x128xf32>
    %30 = tpu.matmul %27, %29, %cst_7 {dimension_numbers = #tpu.dot_dimension_numbers<[1], [0], [0], [1], [0, 0, 1, 1], [], []>} : vector<8x2080xf32>, vector<2080x128xf32>, vector<8x128xf32> -> vector<8x128xf32>
    %c0_8 = arith.constant 0 : index
    %c0_9 = arith.constant 0 : index
    %31 = vector.load %arg4[%c0_8, %c0_9] : memref<2080x128xf32, #tpu.memory_space<vmem>>, vector<2080x128xf32>
    %cst_10 = arith.constant dense<0.000000e+00> : vector<8x128xf32>
    %32 = tpu.matmul %28, %31, %cst_10 {dimension_numbers = #tpu.dot_dimension_numbers<[1], [0], [0], [1], [0, 0, 1, 1], [], []>} : vector<8x2080xf32>, vector<2080x128xf32>, vector<8x128xf32> -> vector<8x128xf32>
    %33 = arith.maximumf %30, %32 : vector<8x128xf32>
    %34 = vector.extract_strided_slice %33 {offsets = [0, 0], sizes = [8, 64], strides = [1, 1]} : vector<8x128xf32> to vector<8x64xf32>
    %35 = vector.extract_strided_slice %33 {offsets = [0, 64], sizes = [8, 64], strides = [1, 1]} : vector<8x128xf32> to vector<8x64xf32>
    %36 = arith.maximumf %34, %35 : vector<8x64xf32>
    %c0_11 = arith.constant 0 : index
    %c0_12 = arith.constant 0 : index
    %37 = vector.load %arg5[%c0_11, %c0_12] : memref<1x64xf32, #tpu.memory_space<vmem>>, vector<1x64xf32>
    %38 = vector.broadcast %37 : vector<1x64xf32> to vector<8x64xf32>
    %39 = arith.addf %36, %38 : vector<8x64xf32>
    %c0_13 = arith.constant 0 : index
    %c0_14 = arith.constant 0 : index
    %40 = vector.load %arg6[%c0_13, %c0_14] : memref<64x32xf32, #tpu.memory_space<vmem>>, vector<64x32xf32>
    %cst_15 = arith.constant dense<0.000000e+00> : vector<8x32xf32>
    %41 = tpu.matmul %39, %40, %cst_15 {dimension_numbers = #tpu.dot_dimension_numbers<[1], [0], [0], [1], [0, 0, 1, 1], [], []>} : vector<8x64xf32>, vector<64x32xf32>, vector<8x32xf32> -> vector<8x32xf32>
    %c0_16 = arith.constant 0 : index
    %c0_17 = arith.constant 0 : index
    %42 = vector.load %arg7[%c0_16, %c0_17] : memref<1x32xf32, #tpu.memory_space<vmem>>, vector<1x32xf32>
    %43 = vector.broadcast %42 : vector<1x32xf32> to vector<8x32xf32>
    %44 = arith.addf %41, %43 : vector<8x32xf32>
    %cst_18 = arith.constant 0.000000e+00 : f32
    %45 = vector.broadcast %cst_18 : f32 to vector<8x32xf32>
    %46 = arith.maximumf %44, %45 : vector<8x32xf32>
    %c0_19 = arith.constant 0 : index
    %c0_20 = arith.constant 0 : index
    %47 = vector.load %arg8[%c0_19, %c0_20] : memref<1x32xf32, #tpu.memory_space<vmem>>, vector<1x32xf32>
    %cst_21 = arith.constant dense<0.000000e+00> : vector<1x8xf32>
    %48 = tpu.matmul %47, %46, %cst_21 {dimension_numbers = #tpu.dot_dimension_numbers<[1], [1], [0], [0], [0, 0, 1, 0], [], []>} : vector<1x32xf32>, vector<8x32xf32>, vector<1x8xf32> -> vector<1x8xf32>
    %c0_22 = arith.constant 0 : index
    %c0_23 = arith.constant 0 : index
    %49 = vector.load %arg9[%c0_22, %c0_23] : memref<1x1xf32, #tpu.memory_space<vmem>>, vector<1x1xf32>
    %50 = vector.broadcast %49 : vector<1x1xf32> to vector<1x8xf32>
    %51 = arith.addf %48, %50 : vector<1x8xf32>
    %52 = math.absf %51 : vector<1x8xf32>
    %cst_24 = arith.constant 0.000000e+00 : f32
    %53 = vector.broadcast %cst_24 : f32 to vector<1x8xf32>
    %54 = arith.subf %53, %52 : vector<1x8xf32>
    %55 = math.exp %54 : vector<1x8xf32>
    %cst_25 = arith.constant 0.000000e+00 : f32
    %56 = vector.broadcast %cst_25 : f32 to vector<1x8xf32>
    %57 = arith.cmpf oge, %51, %56 : vector<1x8xf32>
    %cst_26 = arith.constant 1.000000e+00 : f32
    %58 = vector.broadcast %cst_26 : f32 to vector<1x8xf32>
    %59 = arith.addf %58, %55 : vector<1x8xf32>
    %cst_27 = arith.constant 1.000000e+00 : f32
    %60 = vector.broadcast %cst_27 : f32 to vector<1x8xf32>
    %61 = arith.divf %60, %59 : vector<1x8xf32>
    %cst_28 = arith.constant 1.000000e+00 : f32
    %62 = vector.broadcast %cst_28 : f32 to vector<1x8xf32>
    %63 = arith.addf %62, %55 : vector<1x8xf32>
    %64 = arith.divf %55, %63 : vector<1x8xf32>
    %65 = arith.select %57, %61, %64 : vector<1x8xi1>, vector<1x8xf32>
    %66 = vector.shape_cast %65 : vector<1x8xf32> to vector<1x1x8xf32>
    %c0_29 = arith.constant 0 : index
    %c0_30 = arith.constant 0 : index
    %c0_31 = arith.constant 0 : index
    %67 = vector.load %arg10[%c0_29, %c0_30, %c0_31] : memref<1x1x8xf32, #tpu.memory_space<vmem>>, vector<1x1x8xf32>
    tpu.vector_store %arg10[%c0_29, %c0_30, %c0_31], %66 {strides = array<i32>} : memref<1x1x8xf32, #tpu.memory_space<vmem>>, vector<1x1x8xf32>,
    return
  }
  func.func @transform_0(%arg0: i32) -> (i32, i32) {
    %c0_i32 = arith.constant 0 : i32
    %c0_i32_0 = arith.constant 0 : i32
    return %arg0, %c0_i32 : i32, i32
  }
  func.func @transform_1(%arg0: i32) -> (i32, i32) {
    %c0_i32 = arith.constant 0 : i32
    %c0_i32_0 = arith.constant 0 : i32
    %c0_i32_1 = arith.constant 0 : i32
    return %c0_i32, %c0_i32_0 : i32, i32
  }
  func.func @transform_2(%arg0: i32) -> (i32, i32) {
    %c0_i32 = arith.constant 0 : i32
    %c0_i32_0 = arith.constant 0 : i32
    %c0_i32_1 = arith.constant 0 : i32
    return %c0_i32, %c0_i32_0 : i32, i32
  }
  func.func @transform_3(%arg0: i32) -> (i32, i32) {
    %c0_i32 = arith.constant 0 : i32
    %c0_i32_0 = arith.constant 0 : i32
    %c0_i32_1 = arith.constant 0 : i32
    return %c0_i32, %c0_i32_0 : i32, i32
  }
  func.func @transform_4(%arg0: i32) -> (i32, i32) {
    %c0_i32 = arith.constant 0 : i32
    %c0_i32_0 = arith.constant 0 : i32
    %c0_i32_1 = arith.constant 0 : i32
    return %c0_i32, %c0_i32_0 : i32, i32
  }
  func.func @transform_5(%arg0: i32) -> (i32, i32) {
    %c0_i32 = arith.constant 0 : i32
    %c0_i32_0 = arith.constant 0 : i32
    %c0_i32_1 = arith.constant 0 : i32
    return %c0_i32, %c0_i32_0 : i32, i32
  }
  func.func @transform_6(%arg0: i32) -> (i32, i32) {
    %c0_i32 = arith.constant 0 : i32
    %c0_i32_0 = arith.constant 0 : i32
    %c0_i32_1 = arith.constant 0 : i32
    return %c0_i32, %c0_i32_0 : i32, i32
  }
  func.func @transform_7(%arg0: i32) -> (i32, i32) {
    %c0_i32 = arith.constant 0 : i32
    %c0_i32_0 = arith.constant 0 : i32
    %c0_i32_1 = arith.constant 0 : i32
    return %c0_i32, %c0_i32_0 : i32, i32
  }
  func.func @transform_8(%arg0: i32) -> (i32, i32) {
    %c0_i32 = arith.constant 0 : i32
    %c0_i32_0 = arith.constant 0 : i32
    %c0_i32_1 = arith.constant 0 : i32
    return %c0_i32, %c0_i32_0 : i32, i32
  }
  func.func @transform_9(%arg0: i32) -> (i32, i32, i32) {
    %c0_i32 = arith.constant 0 : i32
    %c0_i32_0 = arith.constant 0 : i32
    %c0_i32_1 = arith.constant 0 : i32
    return %arg0, %c0_i32, %c0_i32_0 : i32, i32, i32
  }
}

</mosaic_0001>

<llo_original>
// kernel: mul.4
$region0: #{mul.4}
  %s0 = inlined_call_operand.vmem [shape: f32[3,3,3,32], index: 0, kind: input, shape index: {}]
  %s1 = inlined_call_operand.vmem [shape: f32[27,32], index: 1, kind: output, shape index: {}]
  $region1: #{mul.4} parent=0
    #allocation0 [shape = 'u8[36864]{0}', space=vmem, size = 0x9000, scoped, tag = 'scoped mem for input reshape']
    %s3 = sshllo.u32 0, 4
    %s4 = smul.addr 4, 8
    %s5 = scalar_lea.vmem %s0, %s4
    %v6 = vld [vmem:[%s5] sm:%s3]
    %s7 = scalar_lea.vmem [#allocation0], 64
    %8 = vst [vmem:[%s7] sm:%s3] %v6
    %s9 = smul.addr 4, 7
    %s10 = scalar_lea.vmem %s0, %s9
    %v11 = vld [vmem:[%s10] sm:%s3]
    %s12 = scalar_lea.vmem [#allocation0], 56
    %13 = vst [vmem:[%s12] sm:%s3] %v11
    %s14 = smul.addr 4, 6
    %s15 = scalar_lea.vmem %s0, %s14
    %v16 = vld [vmem:[%s15] sm:%s3]
    %s17 = scalar_lea.vmem [#allocation0], 48
    %18 = vst [vmem:[%s17] sm:%s3] %v16
    %s19 = smul.addr 4, 5
    %s20 = scalar_lea.vmem %s0, %s19
    %v21 = vld [vmem:[%s20] sm:%s3]
    %s22 = scalar_lea.vmem [#allocation0], 40
    %23 = vst [vmem:[%s22] sm:%s3] %v21
    %s24 = smul.addr 4, 4
    %s25 = scalar_lea.vmem %s0, %s24
    %v26 = vld [vmem:[%s25] sm:%s3]
    %s27 = scalar_lea.vmem [#allocation0], 32
    %28 = vst [vmem:[%s27] sm:%s3] %v26
    %s29 = smul.addr 4, 3
    %s30 = scalar_lea.vmem %s0, %s29
    %v31 = vld [vmem:[%s30] sm:%s3]
    %s32 = scalar_lea.vmem [#allocation0], 24
    %33 = vst [vmem:[%s32] sm:%s3] %v31
    %s34 = smul.addr 4, 2
    %s35 = scalar_lea.vmem %s0, %s34
    %v36 = vld [vmem:[%s35] sm:%s3]
    %s37 = scalar_lea.vmem [#allocation0], 16
    %38 = vst [vmem:[%s37] sm:%s3] %v36
    %s39 = scalar_lea.vmem %s0, 4
    %v40 = vld [vmem:[%s39] sm:%s3]
    %s41 = scalar_lea.vmem [#allocation0], 8
    %42 = vst [vmem:[%s41] sm:%s3] %v40
    %v43 = vld [vmem:[%s0] sm:%s3]
    %44 = vst [vmem:[#allocation0] sm:%s3] %v43
    %v45 = vld [vmem:[#allocation0] sm:$0x7]
    %vm46 = vcmask 261120
    %47 = vst.msk [vmem:[%s1] sm:$0x7] %vm46, %v45
    %s48 = scalar_lea.vmem [#allocation0], 8
    %v49 = vld [vmem:[%s48] sm:$0x7]
    %vm50 = vcmask 261120
    %s51 = scalar_lea.vmem %s1, 3
    %52 = vst.msk [vmem:[%s51] sm:$0x7] %vm50, %v49
    %s53 = scalar_lea.vmem [#allocation0], 16
    %v54 = vld [vmem:[%s53] sm:$0x7]
    %vm55 = vcmask 261120
    %s56 = scalar_lea.vmem %s1, 6
    %57 = vst.msk [vmem:[%s56] sm:$0x7] %vm55, %v54
    %s58 = scalar_lea.vmem [#allocation0], 24
    %v59 = vld [vmem:[%s58] sm:$0x7]
    %vm60 = vcmask 261120
    %s61 = scalar_lea.vmem %s1, 9
    %62 = vst.msk [vmem:[%s61] sm:$0x7] %vm60, %v59
    %s63 = scalar_lea.vmem [#allocation0], 32
    %v64 = vld [vmem:[%s63] sm:$0x7]
    %vm65 = vcmask 261120
    %s66 = scalar_lea.vmem %s1, 12
    %67 = vst.msk [vmem:[%s66] sm:$0x7] %vm65, %v64
    %s68 = scalar_lea.vmem [#allocation0], 40
    %v69 = vld [vmem:[%s68] sm:$0x7]
    %vm70 = vcmask 261120
    %s71 = scalar_lea.vmem %s1, 15
    %72 = vst.msk [vmem:[%s71] sm:$0x7] %vm70, %v69
    %s73 = scalar_lea.vmem [#allocation0], 48
    %v74 = vld [vmem:[%s73] sm:$0x7]
    %vm75 = vcmask 261120
    %s76 = scalar_lea.vmem %s1, 18
    %77 = vst.msk [vmem:[%s76] sm:$0x7] %vm75, %v74
    %s78 = scalar_lea.vmem [#allocation0], 56
    %v79 = vld [vmem:[%s78] sm:$0x7]
    %vm80 = vcmask 261120
    %s81 = scalar_lea.vmem %s1, 21
    %82 = vst.msk [vmem:[%s81] sm:$0x7] %vm80, %v79
    %s83 = scalar_lea.vmem [#allocation0], 64
    %v84 = vld [vmem:[%s83] sm:$0x7]
    %vm85 = vcmask 261120
    %s86 = scalar_lea.vmem %s1, 24
    %87 = vst.msk [vmem:[%s86] sm:$0x7] %vm85, %v84

// kernel: net_forward.1
$region0: #{net_forward.1}
  #allocation0 [shape = 'u32[]', space=smem, size = 0x4, offset = 0x4, fixed_abs, tag = 'smem constant byte address 0x4 - core index']
  #allocation1 [shape = 'u32[144,128]{1,0:T(1,128)}', space=vmem, size = 0x12000, scoped, tag = 'internal scratch']
  #allocation2 [shape = 'f32[1,1]{1,0:T(1,128)S(1)}', space=vmem, size = 0x200, scoped, tag = 'scoped memory for net_forward.1']
  %s0 = inlined_call_operand.vmem [shape: f32[112,378], index: 0, kind: input, shape index: {}]
  %s1 = inlined_call_operand.vmem [shape: f32[378,448], index: 1, kind: input, shape index: {}]
  %s2 = inlined_call_operand.vmem [shape: f32[1,448], index: 2, kind: input, shape index: {}]
  %s3 = inlined_call_operand.vmem [shape: f32[2080,128], index: 3, kind: input, shape index: {}]
  %s4 = inlined_call_operand.vmem [shape: f32[1,64], index: 4, kind: input, shape index: {}]
  %s5 = inlined_call_operand.vmem [shape: f32[64,32], index: 5, kind: input, shape index: {}]
  %s6 = inlined_call_operand.vmem [shape: f32[1,32], index: 6, kind: input, shape index: {}]
  %s7 = inlined_call_operand.vmem [shape: f32[1,32], index: 7, kind: input, shape index: {}]
  %s8 = inlined_call_operand.<no memory space> [shape: f32[1,1], index: 8, kind: input, shape index: {}]
  %s9 = inlined_call_operand.vmem [shape: f32[1,1,8], index: 9, kind: output, shape index: {}]
  %s10 = sld [smem:[#allocation0]]
  $region46: #{net_forward.1} parent=0
    _
  %s12 = ssub.s32 1, %s10
  %s13 = scalar_select 0, %s12, %s10
  %v14 = vstv %s8
  %15 = vst [vmem:[#allocation2] sm:$0x1] %v14
  // Predicated region
  $region2: #{net_forward.1} parent=0 // pred_check
    _
  $region3: #{net_forward.1} parent=0 // pred_check_branch
    %17 = sbr.rel (0) target = $region5
  $region4: #{net_forward.1} parent=0 // pred_region
    _
  $region5: #{net_forward.1} parent=0 // pred_fallthru
    _
  // Predicated region
  $region6: #{net_forward.1} parent=0 // pred_check
    _
  $region7: #{net_forward.1} parent=0 // pred_check_branch
    %19 = sbr.rel (0) target = $region9
  $region8: #{net_forward.1} parent=0 // pred_region
    _
  $region9: #{net_forward.1} parent=0 // pred_fallthru
    _
  // Predicated region
  $region10: #{net_forward.1} parent=0 // pred_check
    _
  $region11: #{net_forward.1} parent=0 // pred_check_branch
    %21 = sbr.rel (0) target = $region13
  $region12: #{net_forward.1} parent=0 // pred_region
    _
  $region13: #{net_forward.1} parent=0 // pred_fallthru
    _
  // Predicated region
  $region14: #{net_forward.1} parent=0 // pred_check
    _
  $region15: #{net_forward.1} parent=0 // pred_check_branch
    %23 = sbr.rel (0) target = $region17
  $region16: #{net_forward.1} parent=0 // pred_region
    _
  $region17: #{net_forward.1} parent=0 // pred_fallthru
    _
  // Predicated region
  $region18: #{net_forward.1} parent=0 // pred_check
    _
  $region19: #{net_forward.1} parent=0 // pred_check_branch
    %25 = sbr.rel (0) target = $region21
  $region20: #{net_forward.1} parent=0 // pred_region
    _
  $region21: #{net_forward.1} parent=0 // pred_fallthru
    _
  // Predicated region
  $region22: #{net_forward.1} parent=0 // pred_check
    _
  $region23: #{net_forward.1} parent=0 // pred_check_branch
    %27 = sbr.rel (0) target = $region25
  $region24: #{net_forward.1} parent=0 // pred_region
    _
  $region25: #{net_forward.1} parent=0 // pred_fallthru
    _
  // Predicated region
  $region26: #{net_forward.1} parent=0 // pred_check
    _
  $region27: #{net_forward.1} parent=0 // pred_check_branch
    %29 = sbr.rel (0) target = $region29
  $region28: #{net_forward.1} parent=0 // pred_region
    _
  $region29: #{net_forward.1} parent=0 // pred_fallthru
    _
  // Predicated region
  $region30: #{net_forward.1} parent=0 // pred_check
    _
  $region31: #{net_forward.1} parent=0 // pred_check_branch
    %31 = sbr.rel (0) target = $region33
  $region32: #{net_forward.1} parent=0 // pred_region
    _
  $region33: #{net_forward.1} parent=0 // pred_fallthru
    _
  // Predicated region
  $region34: #{net_forward.1} parent=0 // pred_check
    _
  $region35: #{net_forward.1} parent=0 // pred_check_branch
    %33 = sbr.rel (0) target = $region37
  $region36: #{net_forward.1} parent=0 // pred_region
    _
  $region37: #{net_forward.1} parent=0 // pred_fallthru
    _
  %v34 = vld [vmem:[%s0] sm:$0xff]
  %v35 = vld [vmem:[%s0 + $0x8] sm:$0xff]
  %v36 = vld [vmem:[%s0 + $0x10] sm:$0xff]
  %v37 = vld [vmem:[%s0 + $0x18] sm:$0xff]
  %v38 = vld [vmem:[%s0 + $0x20] sm:$0xff]
  %v39 = vld [vmem:[%s0 + $0x28] sm:$0xff]
  %v40 = vld [vmem:[%s0 + $0x30] sm:$0xff]
  %v41 = vld [vmem:[%s0 + $0x38] sm:$0xff]
  %v42 = vld [vmem:[%s0 + $0x40] sm:$0xff]
  %v43 = vld [vmem:[%s0 + $0x48] sm:$0xff]
  %v44 = vld [vmem:[%s0 + $0x50] sm:$0xff]
  %v45 = vld [vmem:[%s0 + $0x58] sm:$0xff]
  %v46 = vld [vmem:[%s0 + $0x60] sm:$0xff]
  %v47 = vld [vmem:[%s0 + $0x68] sm:$0xff]
  %v48 = vld [vmem:[%s0 + $0x70] sm:$0xff]
  %v49 = vld [vmem:[%s0 + $0x78] sm:$0xff]
  %v50 = vld [vmem:[%s0 + $0x80] sm:$0xff]
  %v51 = vld [vmem:[%s0 + $0x88] sm:$0xff]
  %v52 = vld [vmem:[%s0 + $0x90] sm:$0xff]
  %v53 = vld [vmem:[%s0 + $0x98] sm:$0xff]
  %v54 = vld [vmem:[%s0 + $0xa0] sm:$0xff]
  %v55 = vld [vmem:[%s0 + $0xa8] sm:$0xff]
  %v56 = vld [vmem:[%s0 + $0xb0] sm:$0xff]
  %v57 = vld [vmem:[%s0 + $0xb8] sm:$0xff]
  %v58 = vld [vmem:[%s0 + $0xc0] sm:$0xff]
  %v59 = vld [vmem:[%s0 + $0xc8] sm:$0xff]
  %v60 = vld [vmem:[%s0 + $0xd0] sm:$0xff]
  %v61 = vld [vmem:[%s0 + $0xd8] sm:$0xff]
  %v62 = vld [vmem:[%s0 + $0xe0] sm:$0xff]
  %v63 = vld [vmem:[%s0 + $0xe8] sm:$0xff]
  %v64 = vld [vmem:[%s0 + $0xf0] sm:$0xff]
  %v65 = vld [vmem:[%s0 + $0xf8] sm:$0xff]
  %v66 = vld [vmem:[%s0 + $0x100] sm:$0xff]
  %v67 = vld [vmem:[%s0 + $0x108] sm:$0xff]
  %v68 = vld [vmem:[%s0 + $0x110] sm:$0xff]
  %v69 = vld [vmem:[%s0 + $0x118] sm:$0xff]
  %v70 = vld [vmem:[%s0 + $0x120] sm:$0xff]
  %v71 = vld [vmem:[%s0 + $0x128] sm:$0xff]
  %v72 = vld [vmem:[%s0 + $0x130] sm:$0xff]
  %v73 = vld [vmem:[%s0 + $0x138] sm:$0xff]
  %v74 = vld [vmem:[%s0 + $0x140] sm:$0xff]
  %v75 = vld [vmem:[%s0 + $0x148] sm:$0xff]
  %v76 = vld [vmem:[%s1] sm:$0xff]
  %v77 = vld [vmem:[%s1 + $0x8] sm:$0xff]
  %v78 = vld [vmem:[%s1 + $0x10] sm:$0xff]
  %v79 = vld [vmem:[%s1 + $0x18] sm:$0xff]
  %v80 = vld [vmem:[%s1 + $0x20] sm:$0xff]
  %v81 = vld [vmem:[%s1 + $0x28] sm:$0xff]
  %v82 = vld [vmem:[%s1 + $0x30] sm:$0xff]
  %v83 = vld [vmem:[%s1 + $0x38] sm:$0xff]
  %v84 = vld [vmem:[%s1 + $0x40] sm:$0xff]
  %v85 = vld [vmem:[%s1 + $0x48] sm:$0xff]
  %v86 = vld [vmem:[%s1 + $0x50] sm:$0xff]
  %v87 = vld [vmem:[%s1 + $0x58] sm:$0xff]
  %v88 = vld [vmem:[%s1 + $0x60] sm:$0xff]
  %v89 = vld [vmem:[%s1 + $0x68] sm:$0xff]
  %v90 = vld [vmem:[%s1 + $0x70] sm:$0xff]
  %v91 = vld [vmem:[%s1 + $0x78] sm:$0xff]
  %v92 = vld [vmem:[%s1 + $0x80] sm:$0xff]
  %v93 = vld [vmem:[%s1 + $0x88] sm:$0xff]
  %v94 = vld [vmem:[%s1 + $0x90] sm:$0xff]
  %v95 = vld [vmem:[%s1 + $0x98] sm:$0xff]
  %v96 = vld [vmem:[%s1 + $0xa0] sm:$0xff]
  %v97 = vld [vmem:[%s1 + $0xa8] sm:$0xff]
  %v98 = vld [vmem:[%s1 + $0xb0] sm:$0xff]
  %v99 = vld [vmem:[%s1 + $0xb8] sm:$0xff]
  %v100 = vld [vmem:[%s1 + $0xc0] sm:$0xff]
  %v101 = vld [vmem:[%s1 + $0xc8] sm:$0xff]
  %v102 = vld [vmem:[%s1 + $0xd0] sm:$0xff]
  %v103 = vld [vmem:[%s1 + $0xd8] sm:$0xff]
  %v104 = vld [vmem:[%s1 + $0xe0] sm:$0xff]
  %v105 = vld [vmem:[%s1 + $0xe8] sm:$0xff]
  %v106 = vld [vmem:[%s1 + $0xf0] sm:$0xff]
  %v107 = vld [vmem:[%s1 + $0xf8] sm:$0xff]
  %v108 = vld [vmem:[%s1 + $0x100] sm:$0xff]
  %v109 = vld [vmem:[%s1 + $0x108] sm:$0xff]
  %v110 = vld [vmem:[%s1 + $0x110] sm:$0xff]
  %v111 = vld [vmem:[%s1 + $0x118] sm:$0xff]
  %v112 = vld [vmem:[%s1 + $0x120] sm:$0xff]
  %v113 = vld [vmem:[%s1 + $0x128] sm:$0xff]
  %v114 = vld [vmem:[%s1 + $0x130] sm:$0xff]
  %v115 = vld [vmem:[%s1 + $0x138] sm:$0xff]
  %v116 = vld [vmem:[%s1 + $0x140] sm:$0xff]
  %v117 = vld [vmem:[%s1 + $0x148] sm:$0xff]
  %v118 = vld [vmem:[%s1 + $0x150] sm:$0xff]
  %v119 = vld [vmem:[%s1 + $0x158] sm:$0xff]
  %v120 = vld [vmem:[%s1 + $0x160] sm:$0xff]
  %v121 = vld [vmem:[%s1 + $0x168] sm:$0xff]
  %v122 = vld [vmem:[%s1 + $0x170] sm:$0xff]
  %v123 = vld [vmem:[%s1 + $0x178] sm:$0xff]
  %v124 = vld [vmem:[%s1 + $0x180] sm:$0xff]
  %v125 = vld [vmem:[%s1 + $0x188] sm:$0xff]
  %v126 = vld [vmem:[%s1 + $0x190] sm:$0xff]
  %v127 = vld [vmem:[%s1 + $0x198] sm:$0xff]
  %v128 = vld [vmem:[%s1 + $0x1a0] sm:$0xff]
  %v129 = vld [vmem:[%s1 + $0x1a8] sm:$0xff]
  %v130 = vld [vmem:[%s1 + $0x1b0] sm:$0xff]
  %v131 = vld [vmem:[%s1 + $0x1b8] sm:$0xff]
  %v132 = vld [vmem:[%s1 + $0x1c0] sm:$0xff]
  %v133 = vld [vmem:[%s1 + $0x1c8] sm:$0xff]
  %v134 = vld [vmem:[%s1 + $0x1d0] sm:$0xff]
  %v135 = vld [vmem:[%s1 + $0x1d8] sm:$0xff]
  %v136 = vld [vmem:[%s1 + $0x1e0] sm:$0xff]
  %v137 = vld [vmem:[%s1 + $0x1e8] sm:$0xff]
  %v138 = vld [vmem:[%s1 + $0x1f0] sm:$0xff]
  %v139 = vld [vmem:[%s1 + $0x1f8] sm:$0xff]
  %v140 = vld [vmem:[%s1 + $0x200] sm:$0xff]
  %v141 = vld [vmem:[%s1 + $0x208] sm:$0xff]
  %v142 = vld [vmem:[%s1 + $0x210] sm:$0xff]
  %v143 = vld [vmem:[%s1 + $0x218] sm:$0xff]
  %v144 = vld [vmem:[%s1 + $0x220] sm:$0xff]
  %v145 = vld [vmem:[%s1 + $0x228] sm:$0xff]
  %v146 = vld [vmem:[%s1 + $0x230] sm:$0xff]
  %v147 = vld [vmem:[%s1 + $0x238] sm:$0xff]
  %v148 = vld [vmem:[%s1 + $0x240] sm:$0xff]
  %v149 = vld [vmem:[%s1 + $0x248] sm:$0xff]
  %v150 = vld [vmem:[%s1 + $0x250] sm:$0xff]
  %v151 = vld [vmem:[%s1 + $0x258] sm:$0xff]
  %v152 = vld [vmem:[%s1 + $0x260] sm:$0xff]
  %v153 = vld [vmem:[%s1 + $0x268] sm:$0xff]
  %v154 = vld [vmem:[%s1 + $0x270] sm:$0xff]
  %v155 = vld [vmem:[%s1 + $0x278] sm:$0xff]
  %v156 = vld [vmem:[%s1 + $0x280] sm:$0xff]
  %v157 = vld [vmem:[%s1 + $0x288] sm:$0xff]
  %v158 = vld [vmem:[%s1 + $0x290] sm:$0xff]
  %v159 = vld [vmem:[%s1 + $0x298] sm:$0xff]
  %v160 = vld [vmem:[%s1 + $0x2a0] sm:$0xff]
  %v161 = vld [vmem:[%s1 + $0x2a8] sm:$0xff]
  %v162 = vld [vmem:[%s1 + $0x2b0] sm:$0xff]
  %v163 = vld [vmem:[%s1 + $0x2b8] sm:$0xff]
  %v164 = vld [vmem:[%s1 + $0x2c0] sm:$0xff]
  %v165 = vld [vmem:[%s1 + $0x2c8] sm:$0xff]
  %v166 = vld [vmem:[%s1 + $0x2d0] sm:$0xff]
  %v167 = vld [vmem:[%s1 + $0x2d8] sm:$0xff]
  %v168 = vld [vmem:[%s1 + $0x2e0] sm:$0xff]
  %v169 = vld [vmem:[%s1 + $0x2e8] sm:$0xff]
  %v170 = vld [vmem:[%s1 + $0x2f0] sm:$0xff]
  %v171 = vld [vmem:[%s1 + $0x2f8] sm:$0xff]
  %v172 = vld [vmem:[%s1 + $0x300] sm:$0xff]
  %v173 = vld [vmem:[%s1 + $0x308] sm:$0xff]
  %v174 = vld [vmem:[%s1 + $0x310] sm:$0xff]
  %v175 = vld [vmem:[%s1 + $0x318] sm:$0xff]
  %v176 = vld [vmem:[%s1 + $0x320] sm:$0xff]
  %v177 = vld [vmem:[%s1 + $0x328] sm:$0xff]
  %v178 = vld [vmem:[%s1 + $0x330] sm:$0xff]
  %v179 = vld [vmem:[%s1 + $0x338] sm:$0xff]
  %v180 = vld [vmem:[%s1 + $0x340] sm:$0xff]
  %v181 = vld [vmem:[%s1 + $0x348] sm:$0xff]
  %v182 = vld [vmem:[%s1 + $0x350] sm:$0xff]
  %v183 = vld [vmem:[%s1 + $0x358] sm:$0xff]
  %v184 = vld [vmem:[%s1 + $0x360] sm:$0xff]
  %v185 = vld [vmem:[%s1 + $0x368] sm:$0xff]
  %v186 = vld [vmem:[%s1 + $0x370] sm:$0xff]
  %v187 = vld [vmem:[%s1 + $0x378] sm:$0xff]
  %v188 = vld [vmem:[%s1 + $0x380] sm:$0xff]
  %v189 = vld [vmem:[%s1 + $0x388] sm:$0xff]
  %v190 = vld [vmem:[%s1 + $0x390] sm:$0xff]
  %v191 = vld [vmem:[%s1 + $0x398] sm:$0xff]
  %v192 = vld [vmem:[%s1 + $0x3a0] sm:$0xff]
  %v193 = vld [vmem:[%s1 + $0x3a8] sm:$0xff]
  %v194 = vld [vmem:[%s1 + $0x3b0] sm:$0xff]
  %v195 = vld [vmem:[%s1 + $0x3b8] sm:$0xff]
  %v196 = vld [vmem:[%s1 + $0x3c0] sm:$0xff]
  %v197 = vld [vmem:[%s1 + $0x3c8] sm:$0xff]
  %v198 = vld [vmem:[%s1 + $0x3d0] sm:$0xff]
  %v199 = vld [vmem:[%s1 + $0x3d8] sm:$0xff]
  %v200 = vld [vmem:[%s1 + $0x3e0] sm:$0xff]
  %v201 = vld [vmem:[%s1 + $0x3e8] sm:$0xff]
  %v202 = vld [vmem:[%s1 + $0x3f0] sm:$0xff]
  %v203 = vld [vmem:[%s1 + $0x3f8] sm:$0xff]
  %v204 = vld [vmem:[%s1 + $0x400] sm:$0xff]
  %v205 = vld [vmem:[%s1 + $0x408] sm:$0xff]
  %v206 = vld [vmem:[%s1 + $0x410] sm:$0xff]
  %v207 = vld [vmem:[%s1 + $0x418] sm:$0xff]
  %v208 = vld [vmem:[%s1 + $0x420] sm:$0xff]
  %v209 = vld [vmem:[%s1 + $0x428] sm:$0xff]
  %v210 = vld [vmem:[%s1 + $0x430] sm:$0xff]
  %v211 = vld [vmem:[%s1 + $0x438] sm:$0xff]
  %v212 = vld [vmem:[%s1 + $0x440] sm:$0xff]
  %v213 = vld [vmem:[%s1 + $0x448] sm:$0xff]
  %v214 = vld [vmem:[%s1 + $0x450] sm:$0xff]
  %v215 = vld [vmem:[%s1 + $0x458] sm:$0xff]
  %v216 = vld [vmem:[%s1 + $0x460] sm:$0xff]
  %v217 = vld [vmem:[%s1 + $0x468] sm:$0xff]
  %v218 = vld [vmem:[%s1 + $0x470] sm:$0xff]
  %v219 = vld [vmem:[%s1 + $0x478] sm:$0xff]
  %v220 = vld [vmem:[%s1 + $0x480] sm:$0xff]
  %v221 = vld [vmem:[%s1 + $0x488] sm:$0xff]
  %v222 = vld [vmem:[%s1 + $0x490] sm:$0xff]
  %v223 = vld [vmem:[%s1 + $0x498] sm:$0xff]
  %v224 = vld [vmem:[%s1 + $0x4a0] sm:$0xff]
  %v225 = vld [vmem:[%s1 + $0x4a8] sm:$0xff]
  %v226 = vld [vmem:[%s1 + $0x4b0] sm:$0xff]
  %v227 = vld [vmem:[%s1 + $0x4b8] sm:$0xff]
  %v228 = vld [vmem:[%s1 + $0x4c0] sm:$0xff]
  %v229 = vld [vmem:[%s1 + $0x4c8] sm:$0xff]
  %v230 = vld [vmem:[%s1 + $0x4d0] sm:$0xff]
  %v231 = vld [vmem:[%s1 + $0x4d8] sm:$0xff]
  %v232 = vld [vmem:[%s1 + $0x4e0] sm:$0xff]
  %v233 = vld [vmem:[%s1 + $0x4e8] sm:$0xff]
  %v234 = vld [vmem:[%s1 + $0x4f0] sm:$0xff]
  %v235 = vld [vmem:[%s1 + $0x4f8] sm:$0xff]
  %v236 = vld [vmem:[%s1 + $0x500] sm:$0xff]
  %v237 = vld [vmem:[%s1 + $0x508] sm:$0xff]
  %v238 = vld [vmem:[%s1 + $0x510] sm:$0xff]
  %v239 = vld [vmem:[%s1 + $0x518] sm:$0xff]
  %v240 = vld [vmem:[%s1 + $0x520] sm:$0xff]
  %v241 = vld [vmem:[%s1 + $0x528] sm:$0xff]
  %v242 = vld [vmem:[%s1 + $0x530] sm:$0xff]
  %v243 = vld [vmem:[%s1 + $0x538] sm:$0xff]
  %v244 = vld [vmem:[%s1 + $0x540] sm:$0xff]
  %v245 = vld [vmem:[%s1 + $0x548] sm:$0xff]
  %v246 = vld [vmem:[%s1 + $0x550] sm:$0xff]
  %v247 = vld [vmem:[%s1 + $0x558] sm:$0xff]
  %v248 = vld [vmem:[%s1 + $0x560] sm:$0xff]
  %v249 = vld [vmem:[%s1 + $0x568] sm:$0xff]
  %v250 = vld [vmem:[%s1 + $0x570] sm:$0xff]
  %v251 = vld [vmem:[%s1 + $0x578] sm:$0xff]
  %v252 = vld [vmem:[%s1 + $0x580] sm:$0xff]
  %v253 = vld [vmem:[%s1 + $0x588] sm:$0xff]
  %v254 = vld [vmem:[%s1 + $0x590] sm:$0xff]
  %v255 = vld [vmem:[%s1 + $0x598] sm:$0xff]
  %v256 = vld [vmem:[%s1 + $0x5a0] sm:$0xff]
  %v257 = vld [vmem:[%s1 + $0x5a8] sm:$0xff]
  %v258 = vld [vmem:[%s1 + $0x5b0] sm:$0xff]
  %v259 = vld [vmem:[%s1 + $0x5b8] sm:$0xff]
  %v260 = vld [vmem:[%s1 + $0x5c0] sm:$0xff]
  %v261 = vld [vmem:[%s1 + $0x5c8] sm:$0xff]
  %v262 = vld [vmem:[%s1 + $0x5d0] sm:$0xff]
  %v263 = vld [vmem:[%s1 + $0x5d8] sm:$0xff]
  %v264 = vld [vmem:[%s1 + $0x5e0] sm:$0x3]
  %v265 = vld [vmem:[%s1 + $0x5e8] sm:$0x3]
  %v266 = vld [vmem:[%s1 + $0x5f0] sm:$0x3]
  %v267 = vld [vmem:[%s1 + $0x5f8] sm:$0x3]
  %v268 = vld [vmem:[%s2] sm:$0xf]
  %v270 = vlaneseq
  %v271 = vshrl.u32 %v270, 7
  %v272 = vsub.s32 0, %v271
  %v273 = vrot.slane %v268, %v272
  %v274 = vlaneseq
  %v275 = vshrl.u32 %v274, 7
  %v276 = vsub.s32 1, %v275
  %v277 = vrot.slane %v268, %v276
  %v278 = vlaneseq
  %v279 = vshrl.u32 %v278, 7
  %v280 = vsub.s32 2, %v279
  %v281 = vrot.slane %v268, %v280
  %v282 = vlaneseq
  %v283 = vshrl.u32 %v282, 7
  %v284 = vsub.s32 3, %v283
  %v285 = vrot.slane %v268, %v284
  %vm290 = vcmask 998400
  %v292 = vsel %vm290, %v36, 0
  %v295 = vsel %vm290, %v39, 0
  %v298 = vsel %vm290, %v42, 0
  %v301 = vsel %vm290, %v45, 0
  %v304 = vsel %vm290, %v48, 0
  %v307 = vsel %vm290, %v51, 0
  %v310 = vsel %vm290, %v54, 0
  %v313 = vsel %vm290, %v57, 0
  %v316 = vsel %vm290, %v60, 0
  %v319 = vsel %vm290, %v63, 0
  %v322 = vsel %vm290, %v66, 0
  %v325 = vsel %vm290, %v69, 0
  %v328 = vsel %vm290, %v72, 0
  %v331 = vsel %vm290, %v75, 0
  %vm333 = vcmask 1041408
  %v335 = vsel %vm333, %v264, 0
  %v338 = vsel %vm333, %v265, 0
  %v341 = vsel %vm333, %v266, 0
  %v344 = vsel %vm333, %v267, 0
  %346 = vmatprep.subr.mxu0 %v77
  %347 = vmatpush1.msra.mxu0 %v76
  %348 = vmatprep.subr.mxu0 %v81
  %349 = vmatpush1.msra.mxu0 %v80
  %350 = vmatprep.subr.mxu0 %v85
  %351 = vmatpush1.msra.mxu0 %v84
  %352 = vmatprep.subr.mxu0 %v89
  %353 = vmatpush1.msra.mxu0 %v88
  %354 = vmatprep.subr.mxu0 %v93
  %355 = vmatpush1.msra.mxu0 %v92
  %356 = vmatprep.subr.mxu0 %v97
  %357 = vmatpush1.msra.mxu0 %v96
  %358 = vmatprep.subr.mxu0 %v101
  %359 = vmatpush1.msra.mxu0 %v100
  %360 = vmatprep.subr.mxu0 %v105
  %361 = vmatpush1.msra.mxu0 %v104
  %362 = vmatprep.subr.mxu0 %v109
  %363 = vmatpush1.msra.mxu0 %v108
  %364 = vmatprep.subr.mxu0 %v113
  %365 = vmatpush1.msra.mxu0 %v112
  %366 = vmatprep.subr.mxu0 %v117
  %367 = vmatpush1.msra.mxu0 %v116
  %368 = vmatprep.subr.mxu0 %v121
  %369 = vmatpush1.msra.mxu0 %v120
  %370 = vmatprep.subr.mxu0 %v125
  %371 = vmatpush1.msra.mxu0 %v124
  %372 = vmatprep.subr.mxu0 %v129
  %373 = vmatpush1.msra.mxu0 %v128
  %374 = vmatprep.subr.mxu0 %v133
  %375 = vmatpush1.msra.mxu0 %v132
  %376 = vmatprep.subr.mxu0 %v137
  %377 = vmatpush1.msra.mxu0 %v136
  %378 = vmatprep.subr.mxu0 %v141
  %379 = vmatpush1.msra.mxu0 %v140
  %380 = vmatprep.subr.mxu0 %v145
  %381 = vmatpush1.msra.mxu0 %v144
  %382 = vmatprep.subr.mxu0 %v149
  %383 = vmatpush1.msra.mxu0 %v148
  %384 = vmatprep.subr.mxu0 %v153
  %385 = vmatpush1.msra.mxu0 %v152
  %386 = vmatprep.subr.mxu0 %v157
  %387 = vmatpush1.msra.mxu0 %v156
  %388 = vmatprep.subr.mxu0 %v161
  %389 = vmatpush1.msra.mxu0 %v160
  %390 = vmatprep.subr.mxu0 %v165
  %391 = vmatpush1.msra.mxu0 %v164
  %392 = vmatprep.subr.mxu0 %v169
  %393 = vmatpush1.msra.mxu0 %v168
  %394 = vmatprep.subr.mxu0 %v173
  %395 = vmatpush1.msra.mxu0 %v172
  %396 = vmatprep.subr.mxu0 %v177
  %397 = vmatpush1.msra.mxu0 %v176
  %398 = vmatprep.subr.mxu0 %v181
  %399 = vmatpush1.msra.mxu0 %v180
  %400 = vmatprep.subr.mxu0 %v185
  %401 = vmatpush1.msra.mxu0 %v184
  %402 = vmatprep.subr.mxu0 %v189
  %403 = vmatpush1.msra.mxu0 %v188
  %404 = vmatprep.subr.mxu0 %v193
  %405 = vmatpush1.msra.mxu0 %v192
  %406 = vmatprep.subr.mxu0 %v197
  %407 = vmatpush1.msra.mxu0 %v196
  %408 = vmatprep.subr.mxu0 %v201
  %409 = vmatpush1.msra.mxu0 %v200
  %410 = vmatprep.mubr.f32.mxu0 %v35
  %411 = vmatmul.mubr.f32.gmra.mrb[0].mxu0 %v34
  %v412 = vpop.f32.mrb[0].mxu0
  %v413 = vadd.f32 %v273, %v412
  %v414 = vpop.f32.mrb[0].mxu0
  %v415 = vadd.f32 %v277, %v414
  %416 = vmatprep.mubr.f32.mxu0 %v38
  %417 = vmatmul.mubr.f32.gmra.mrb[0].mxu0 %v37
  %v418 = vpop.f32.mrb[0].mxu0
  %v419 = vadd.f32 %v273, %v418
  %v420 = vpop.f32.mrb[0].mxu0
  %v421 = vadd.f32 %v277, %v420
  %422 = vmatprep.mubr.f32.mxu0 %v41
  %423 = vmatmul.mubr.f32.gmra.mrb[0].mxu0 %v40
  %v424 = vpop.f32.mrb[0].mxu0
  %v425 = vadd.f32 %v273, %v424
  %v426 = vpop.f32.mrb[0].mxu0
  %v427 = vadd.f32 %v277, %v426
  %428 = vmatprep.mubr.f32.mxu0 %v44
  %429 = vmatmul.mubr.f32.gmra.mrb[0].mxu0 %v43
  %v430 = vpop.f32.mrb[0].mxu0
  %v431 = vadd.f32 %v273, %v430
  %v432 = vpop.f32.mrb[0].mxu0
  %v433 = vadd.f32 %v277, %v432
  %434 = vmatprep.mubr.f32.mxu0 %v47
  %435 = vmatmul.mubr.f32.gmra.mrb[0].mxu0 %v46
  %v436 = vpop.f32.mrb[0].mxu0
  %v437 = vadd.f32 %v273, %v436
  %v438 = vpop.f32.mrb[0].mxu0
  %v439 = vadd.f32 %v277, %v438
  %440 = vmatprep.mubr.f32.mxu0 %v50
  %441 = vmatmul.mubr.f32.gmra.mrb[0].mxu0 %v49
  %v442 = vpop.f32.mrb[0].mxu0
  %v443 = vadd.f32 %v273, %v442
  %v444 = vpop.f32.mrb[0].mxu0
  %v445 = vadd.f32 %v277, %v444
  %446 = vmatprep.mubr.f32.mxu0 %v53
  %447 = vmatmul.mubr.f32.gmra.mrb[0].mxu0 %v52
  %v448 = vpop.f32.mrb[0].mxu0
  %v449 = vadd.f32 %v273, %v448
  %v450 = vpop.f32.mrb[0].mxu0
  %v451 = vadd.f32 %v277, %v450
  %452 = vmatprep.mubr.f32.mxu0 %v56
  %453 = vmatmul.mubr.f32.gmra.mrb[0].mxu0 %v55
  %v454 = vpop.f32.mrb[0].mxu0
  %v455 = vadd.f32 %v273, %v454
  %v456 = vpop.f32.mrb[0].mxu0
  %v457 = vadd.f32 %v277, %v456
  %458 = vmatprep.mubr.f32.mxu0 %v59
  %459 = vmatmul.mubr.f32.gmra.mrb[0].mxu0 %v58
  %v460 = vpop.f32.mrb[0].mxu0
  %v461 = vadd.f32 %v273, %v460
  %v462 = vpop.f32.mrb[0].mxu0
  %v463 = vadd.f32 %v277, %v462
  %464 = vmatprep.mubr.f32.mxu0 %v62
  %465 = vmatmul.mubr.f32.gmra.mrb[0].mxu0 %v61
  %v466 = vpop.f32.mrb[0].mxu0
  %v467 = vadd.f32 %v273, %v466
  %v468 = vpop.f32.mrb[0].mxu0
  %v469 = vadd.f32 %v277, %v468
  %470 = vmatprep.mubr.f32.mxu0 %v65
  %471 = vmatmul.mubr.f32.gmra.mrb[0].mxu0 %v64
  %v472 = vpop.f32.mrb[0].mxu0
  %v473 = vadd.f32 %v273, %v472
  %v474 = vpop.f32.mrb[0].mxu0
  %v475 = vadd.f32 %v277, %v474
  %476 = vmatprep.mubr.f32.mxu0 %v68
  %477 = vmatmul.mubr.f32.gmra.mrb[0].mxu0 %v67
  %v478 = vpop.f32.mrb[0].mxu0
  %v479 = vadd.f32 %v273, %v478
  %v480 = vpop.f32.mrb[0].mxu0
  %v481 = vadd.f32 %v277, %v480
  %482 = vmatprep.mubr.f32.mxu0 %v71
  %483 = vmatmul.mubr.f32.gmra.mrb[0].mxu0 %v70
  %v484 = vpop.f32.mrb[0].mxu0
  %v485 = vpop.f32.mrb[0].mxu0
  %486 = vmatprep.mubr.f32.mxu0 %v74
  %487 = vmatmul.mubr.f32.gmra.mrb[0].mxu0 %v73
  %v488 = vpop.f32.mrb[0].mxu0
  %v489 = vpop.f32.mrb[0].mxu0
  %490 = vdwg.mxu0
  %491 = vmatprep.subr.mxu0 %v205
  %492 = vmatpush1.msra.mxu0 %v204
  %493 = vmatprep.subr.mxu0 %v209
  %494 = vmatpush1.msra.mxu0 %v208
  %495 = vmatprep.subr.mxu0 %v213
  %496 = vmatpush1.msra.mxu0 %v212
  %497 = vmatprep.subr.mxu0 %v217
  %498 = vmatpush1.msra.mxu0 %v216
  %499 = vmatprep.subr.mxu0 %v221
  %500 = vmatpush1.msra.mxu0 %v220
  %501 = vmatprep.subr.mxu0 %v225
  %502 = vmatpush1.msra.mxu0 %v224
  %503 = vmatprep.subr.mxu0 %v229
  %504 = vmatpush1.msra.mxu0 %v228
  %505 = vmatprep.subr.mxu0 %v233
  %506 = vmatpush1.msra.mxu0 %v232
  %507 = vmatprep.subr.mxu0 %v237
  %508 = vmatpush1.msra.mxu0 %v236
  %509 = vmatprep.subr.mxu0 %v241
  %510 = vmatpush1.msra.mxu0 %v240
  %511 = vmatprep.subr.mxu0 %v245
  %512 = vmatpush1.msra.mxu0 %v244
  %513 = vmatprep.subr.mxu0 %v249
  %514 = vmatpush1.msra.mxu0 %v248
  %515 = vmatprep.subr.mxu0 %v253
  %516 = vmatpush1.msra.mxu0 %v252
  %517 = vmatprep.subr.mxu0 %v257
  %518 = vmatpush1.msra.mxu0 %v256
  %519 = vmatprep.subr.mxu0 %v261
  %520 = vmatpush1.msra.mxu0 %v260
  %521 = vmatprep.subr.mxu0 %v338
  %522 = vmatpush1.msra.mxu0 %v335
  %523 = vmatprep.subr.mxu0 0.0
  %524 = vmatpush1.msra.mxu0 0.0
  %525 = vmatprep.subr.mxu0 0.0
  %526 = vmatpush1.msra.mxu0 0.0
  %527 = vmatprep.subr.mxu0 0.0
  %528 = vmatpush1.msra.mxu0 0.0
  %529 = vmatprep.subr.mxu0 0.0
  %530 = vmatpush1.msra.mxu0 0.0
  %531 = vmatprep.subr.mxu0 0.0
  %532 = vmatpush1.msra.mxu0 0.0
  %533 = vmatprep.subr.mxu0 0.0
  %534 = vmatpush1.msra.mxu0 0.0
  %535 = vmatprep.subr.mxu0 0.0
  %536 = vmatpush1.msra.mxu0 0.0
  %537 = vmatprep.subr.mxu0 0.0
  %538 = vmatpush1.msra.mxu0 0.0
  %539 = vmatprep.subr.mxu0 0.0
  %540 = vmatpush1.msra.mxu0 0.0
  %541 = vmatprep.subr.mxu0 0.0
  %542 = vmatpush1.msra.mxu0 0.0
  %543 = vmatprep.subr.mxu0 0.0
  %544 = vmatpush1.msra.mxu0 0.0
  %545 = vmatprep.subr.mxu0 0.0
  %546 = vmatpush1.msra.mxu0 0.0
  %547 = vmatprep.subr.mxu0 0.0
  %548 = vmatpush1.msra.mxu0 0.0
  %549 = vmatprep.subr.mxu0 0.0
  %550 = vmatpush1.msra.mxu0 0.0
  %551 = vmatprep.subr.mxu0 0.0
  %552 = vmatpush1.msra.mxu0 0.0
  %553 = vmatprep.subr.mxu0 0.0
  %554 = vmatpush1.msra.mxu0 0.0
  %555 = vmatprep.mubr.f32.mxu0 0.0
  %556 = vmatmul.mubr.f32.gmra.mrb[0].mxu0 %v292
  %v557 = vpop.f32.mrb[0].mxu0
  %v558 = vadd.f32 %v413, %v557
  %v559 = vpop.f32.mrb[0].mxu0
  %v560 = vadd.f32 %v415, %v559
  %561 = vmatprep.mubr.f32.mxu0 0.0
  %562 = vmatmul.mubr.f32.gmra.mrb[0].mxu0 %v295
  %v563 = vpop.f32.mrb[0].mxu0
  %v564 = vadd.f32 %v419, %v563
  %v565 = vpop.f32.mrb[0].mxu0
  %v566 = vadd.f32 %v421, %v565
  %567 = vmatprep.mubr.f32.mxu0 0.0
  %568 = vmatmul.mubr.f32.gmra.mrb[0].mxu0 %v298
  %v569 = vpop.f32.mrb[0].mxu0
  %v570 = vadd.f32 %v425, %v569
  %v571 = vpop.f32.mrb[0].mxu0
  %v572 = vadd.f32 %v427, %v571
  %573 = vmatprep.mubr.f32.mxu0 0.0
  %574 = vmatmul.mubr.f32.gmra.mrb[0].mxu0 %v301
  %v575 = vpop.f32.mrb[0].mxu0
  %v576 = vadd.f32 %v431, %v575
  %v577 = vpop.f32.mrb[0].mxu0
  %v578 = vadd.f32 %v433, %v577
  %579 = vmatprep.mubr.f32.mxu0 0.0
  %580 = vmatmul.mubr.f32.gmra.mrb[0].mxu0 %v304
  %v581 = vpop.f32.mrb[0].mxu0
  %v582 = vadd.f32 %v437, %v581
  %v583 = vpop.f32.mrb[0].mxu0
  %v584 = vadd.f32 %v439, %v583
  %585 = vmatprep.mubr.f32.mxu0 0.0
  %586 = vmatmul.mubr.f32.gmra.mrb[0].mxu0 %v307
  %v587 = vpop.f32.mrb[0].mxu0
  %v588 = vadd.f32 %v443, %v587
  %v589 = vpop.f32.mrb[0].mxu0
  %v590 = vadd.f32 %v445, %v589
  %591 = vmatprep.mubr.f32.mxu0 0.0
  %592 = vmatmul.mubr.f32.gmra.mrb[0].mxu0 %v310
  %v593 = vpop.f32.mrb[0].mxu0
  %v594 = vadd.f32 %v449, %v593
  %v595 = vpop.f32.mrb[0].mxu0
  %v596 = vadd.f32 %v451, %v595
  %597 = vmatprep.mubr.f32.mxu0 0.0
  %598 = vmatmul.mubr.f32.gmra.mrb[0].mxu0 %v313
  %v599 = vpop.f32.mrb[0].mxu0
  %v600 = vadd.f32 %v455, %v599
  %v601 = vpop.f32.mrb[0].mxu0
  %v602 = vadd.f32 %v457, %v601
  %603 = vmatprep.mubr.f32.mxu0 0.0
  %604 = vmatmul.mubr.f32.gmra.mrb[0].mxu0 %v316
  %v605 = vpop.f32.mrb[0].mxu0
  %v606 = vadd.f32 %v461, %v605
  %v607 = vpop.f32.mrb[0].mxu0
  %v608 = vadd.f32 %v463, %v607
  %609 = vmatprep.mubr.f32.mxu0 0.0
  %610 = vmatmul.mubr.f32.gmra.mrb[0].mxu0 %v319
  %v611 = vpop.f32.mrb[0].mxu0
  %v612 = vadd.f32 %v467, %v611
  %v613 = vpop.f32.mrb[0].mxu0
  %v614 = vadd.f32 %v469, %v613
  %615 = vmatprep.mubr.f32.mxu0 0.0
  %616 = vmatmul.mubr.f32.gmra.mrb[0].mxu0 %v322
  %v617 = vpop.f32.mrb[0].mxu0
  %v618 = vadd.f32 %v473, %v617
  %v619 = vpop.f32.mrb[0].mxu0
  %v620 = vadd.f32 %v475, %v619
  %621 = vmatprep.mubr.f32.mxu0 0.0
  %622 = vmatmul.mubr.f32.gmra.mrb[0].mxu0 %v325
  %v623 = vpop.f32.mrb[0].mxu0
  %v624 = vadd.f32 %v479, %v623
  %v625 = vpop.f32.mrb[0].mxu0
  %v626 = vadd.f32 %v481, %v625
  %627 = vmatprep.mubr.f32.mxu0 0.0
  %628 = vmatmul.mubr.f32.gmra.mrb[0].mxu0 %v328
  %v629 = vpop.f32.mrb[0].mxu0
  %v630 = vpop.f32.mrb[0].mxu0
  %631 = vmatprep.mubr.f32.mxu0 0.0
  %632 = vmatmul.mubr.f32.gmra.mrb[0].mxu0 %v331
  %v633 = vpop.f32.mrb[0].mxu0
  %v634 = vpop.f32.mrb[0].mxu0
  %635 = vdwg.mxu0
  %636 = vmatprep.subr.mxu0 %v79
  %637 = vmatpush1.msra.mxu0 %v78
  %638 = vmatprep.subr.mxu0 %v83
  %639 = vmatpush1.msra.mxu0 %v82
  %640 = vmatprep.subr.mxu0 %v87
  %641 = vmatpush1.msra.mxu0 %v86
  %642 = vmatprep.subr.mxu0 %v91
  %643 = vmatpush1.msra.mxu0 %v90
  %644 = vmatprep.subr.mxu0 %v95
  %645 = vmatpush1.msra.mxu0 %v94
  %646 = vmatprep.subr.mxu0 %v99
  %647 = vmatpush1.msra.mxu0 %v98
  %648 = vmatprep.subr.mxu0 %v103
  %649 = vmatpush1.msra.mxu0 %v102
  %650 = vmatprep.subr.mxu0 %v107
  %651 = vmatpush1.msra.mxu0 %v106
  %652 = vmatprep.subr.mxu0 %v111
  %653 = vmatpush1.msra.mxu0 %v110
  %654 = vmatprep.subr.mxu0 %v115
  %655 = vmatpush1.msra.mxu0 %v114
  %656 = vmatprep.subr.mxu0 %v119
  %657 = vmatpush1.msra.mxu0 %v118
  %658 = vmatprep.subr.mxu0 %v123
  %659 = vmatpush1.msra.mxu0 %v122
  %660 = vmatprep.subr.mxu0 %v127
  %661 = vmatpush1.msra.mxu0 %v126
  %662 = vmatprep.subr.mxu0 %v131
  %663 = vmatpush1.msra.mxu0 %v130
  %664 = vmatprep.subr.mxu0 %v135
  %665 = vmatpush1.msra.mxu0 %v134
  %666 = vmatprep.subr.mxu0 %v139
  %667 = vmatpush1.msra.mxu0 %v138
  %668 = vmatprep.subr.mxu0 %v143
  %669 = vmatpush1.msra.mxu0 %v142
  %670 = vmatprep.subr.mxu0 %v147
  %671 = vmatpush1.msra.mxu0 %v146
  %672 = vmatprep.subr.mxu0 %v151
  %673 = vmatpush1.msra.mxu0 %v150
  %674 = vmatprep.subr.mxu0 %v155
  %675 = vmatpush1.msra.mxu0 %v154
  %676 = vmatprep.subr.mxu0 %v159
  %677 = vmatpush1.msra.mxu0 %v158
  %678 = vmatprep.subr.mxu0 %v163
  %679 = vmatpush1.msra.mxu0 %v162
  %680 = vmatprep.subr.mxu0 %v167
  %681 = vmatpush1.msra.mxu0 %v166
  %682 = vmatprep.subr.mxu0 %v171
  %683 = vmatpush1.msra.mxu0 %v170
  %684 = vmatprep.subr.mxu0 %v175
  %685 = vmatpush1.msra.mxu0 %v174
  %686 = vmatprep.subr.mxu0 %v179
  %687 = vmatpush1.msra.mxu0 %v178
  %688 = vmatprep.subr.mxu0 %v183
  %689 = vmatpush1.msra.mxu0 %v182
  %690 = vmatprep.subr.mxu0 %v187
  %691 = vmatpush1.msra.mxu0 %v186
  %692 = vmatprep.subr.mxu0 %v191
  %693 = vmatpush1.msra.mxu0 %v190
  %694 = vmatprep.subr.mxu0 %v195
  %695 = vmatpush1.msra.mxu0 %v194
  %696 = vmatprep.subr.mxu0 %v199
  %697 = vmatpush1.msra.mxu0 %v198
  %698 = vmatprep.subr.mxu0 %v203
  %699 = vmatpush1.msra.mxu0 %v202
  %700 = vmatprep.mubr.f32.mxu0 %v35
  %701 = vmatmul.mubr.f32.gmra.mrb[0].mxu0 %v34
  %v702 = vpop.f32.mrb[0].mxu0
  %v703 = vadd.f32 %v281, %v702
  %v704 = vpop.f32.mrb[0].mxu0
  %v705 = vadd.f32 %v285, %v704
  %706 = vmatprep.mubr.f32.mxu0 %v38
  %707 = vmatmul.mubr.f32.gmra.mrb[0].mxu0 %v37
  %v708 = vpop.f32.mrb[0].mxu0
  %v709 = vadd.f32 %v281, %v708
  %v710 = vpop.f32.mrb[0].mxu0
  %v711 = vadd.f32 %v285, %v710
  %712 = vmatprep.mubr.f32.mxu0 %v41
  %713 = vmatmul.mubr.f32.gmra.mrb[0].mxu0 %v40
  %v714 = vpop.f32.mrb[0].mxu0
  %v715 = vadd.f32 %v281, %v714
  %v716 = vpop.f32.mrb[0].mxu0
  %v717 = vadd.f32 %v285, %v716
  %718 = vmatprep.mubr.f32.mxu0 %v44
  %719 = vmatmul.mubr.f32.gmra.mrb[0].mxu0 %v43
  %v720 = vpop.f32.mrb[0].mxu0
  %v721 = vadd.f32 %v281, %v720
  %v722 = vpop.f32.mrb[0].mxu0
  %v723 = vadd.f32 %v285, %v722
  %724 = vmatprep.mubr.f32.mxu0 %v47
  %725 = vmatmul.mubr.f32.gmra.mrb[0].mxu0 %v46
  %v726 = vpop.f32.mrb[0].mxu0
  %v727 = vadd.f32 %v281, %v726
  %v728 = vpop.f32.mrb[0].mxu0
  %v729 = vadd.f32 %v285, %v728
  %730 = vmatprep.mubr.f32.mxu0 %v50
  %731 = vmatmul.mubr.f32.gmra.mrb[0].mxu0 %v49
  %v732 = vpop.f32.mrb[0].mxu0
  %v733 = vadd.f32 %v281, %v732
  %v734 = vpop.f32.mrb[0].mxu0
  %v735 = vadd.f32 %v285, %v734
  %736 = vmatprep.mubr.f32.mxu0 %v53
  %737 = vmatmul.mubr.f32.gmra.mrb[0].mxu0 %v52
  %v738 = vpop.f32.mrb[0].mxu0
  %v739 = vadd.f32 %v281, %v738
  %v740 = vpop.f32.mrb[0].mxu0
  %v741 = vadd.f32 %v285, %v740
  %742 = vmatprep.mubr.f32.mxu0 %v56
  %743 = vmatmul.mubr.f32.gmra.mrb[0].mxu0 %v55
  %v744 = vpop.f32.mrb[0].mxu0
  %v745 = vadd.f32 %v281, %v744
  %v746 = vpop.f32.mrb[0].mxu0
  %v747 = vadd.f32 %v285, %v746
  %748 = vmatprep.mubr.f32.mxu0 %v59
  %749 = vmatmul.mubr.f32.gmra.mrb[0].mxu0 %v58
  %v750 = vpop.f32.mrb[0].mxu0
  %v751 = vadd.f32 %v281, %v750
  %v752 = vpop.f32.mrb[0].mxu0
  %v753 = vadd.f32 %v285, %v752
  %754 = vmatprep.mubr.f32.mxu0 %v62
  %755 = vmatmul.mubr.f32.gmra.mrb[0].mxu0 %v61
  %v756 = vpop.f32.mrb[0].mxu0
  %v757 = vadd.f32 %v281, %v756
  %v758 = vpop.f32.mrb[0].mxu0
  %v759 = vadd.f32 %v285, %v758
  %760 = vmatprep.mubr.f32.mxu0 %v65
  %761 = vmatmul.mubr.f32.gmra.mrb[0].mxu0 %v64
  %v762 = vpop.f32.mrb[0].mxu0
  %v763 = vadd.f32 %v281, %v762
  %v764 = vpop.f32.mrb[0].mxu0
  %v765 = vadd.f32 %v285, %v764
  %766 = vmatprep.mubr.f32.mxu0 %v68
  %767 = vmatmul.mubr.f32.gmra.mrb[0].mxu0 %v67
  %v768 = vpop.f32.mrb[0].mxu0
  %v769 = vadd.f32 %v281, %v768
  %v770 = vpop.f32.mrb[0].mxu0
  %v771 = vadd.f32 %v285, %v770
  %772 = vmatprep.mubr.f32.mxu0 %v71
  %773 = vmatmul.mubr.f32.gmra.mrb[0].mxu0 %v70
  %v774 = vpop.f32.mrb[0].mxu0
  %v775 = vpop.f32.mrb[0].mxu0
  %776 = vmatprep.mubr.f32.mxu0 %v74
  %777 = vmatmul.mubr.f32.gmra.mrb[0].mxu0 %v73
  %v778 = vpop.f32.mrb[0].mxu0
  %v779 = vpop.f32.mrb[0].mxu0
  %780 = vdwg.mxu0
  %781 = vmatprep.subr.mxu0 %v207
  %782 = vmatpush1.msra.mxu0 %v206
  %783 = vmatprep.subr.mxu0 %v211
  %784 = vmatpush1.msra.mxu0 %v210
  %785 = vmatprep.subr.mxu0 %v215
  %786 = vmatpush1.msra.mxu0 %v214
  %787 = vmatprep.subr.mxu0 %v219
  %788 = vmatpush1.msra.mxu0 %v218
  %789 = vmatprep.subr.mxu0 %v223
  %790 = vmatpush1.msra.mxu0 %v222
  %791 = vmatprep.subr.mxu0 %v227
  %792 = vmatpush1.msra.mxu0 %v226
  %793 = vmatprep.subr.mxu0 %v231
  %794 = vmatpush1.msra.mxu0 %v230
  %795 = vmatprep.subr.mxu0 %v235
  %796 = vmatpush1.msra.mxu0 %v234
  %797 = vmatprep.subr.mxu0 %v239
  %798 = vmatpush1.msra.mxu0 %v238
  %799 = vmatprep.subr.mxu0 %v243
  %800 = vmatpush1.msra.mxu0 %v242
  %801 = vmatprep.subr.mxu0 %v247
  %802 = vmatpush1.msra.mxu0 %v246
  %803 = vmatprep.subr.mxu0 %v251
  %804 = vmatpush1.msra.mxu0 %v250
  %805 = vmatprep.subr.mxu0 %v255
  %806 = vmatpush1.msra.mxu0 %v254
  %807 = vmatprep.subr.mxu0 %v259
  %808 = vmatpush1.msra.mxu0 %v258
  %809 = vmatprep.subr.mxu0 %v263
  %810 = vmatpush1.msra.mxu0 %v262
  %811 = vmatprep.subr.mxu0 %v344
  %812 = vmatpush1.msra.mxu0 %v341
  %813 = vmatprep.subr.mxu0 0.0
  %814 = vmatpush1.msra.mxu0 0.0
  %815 = vmatprep.subr.mxu0 0.0
  %816 = vmatpush1.msra.mxu0 0.0
  %817 = vmatprep.subr.mxu0 0.0
  %818 = vmatpush1.msra.mxu0 0.0
  %819 = vmatprep.subr.mxu0 0.0
  %820 = vmatpush1.msra.mxu0 0.0
  %821 = vmatprep.subr.mxu0 0.0
  %822 = vmatpush1.msra.mxu0 0.0
  %823 = vmatprep.subr.mxu0 0.0
  %824 = vmatpush1.msra.mxu0 0.0
  %825 = vmatprep.subr.mxu0 0.0
  %826 = vmatpush1.msra.mxu0 0.0
  %827 = vmatprep.subr.mxu0 0.0
  %828 = vmatpush1.msra.mxu0 0.0
  %829 = vmatprep.subr.mxu0 0.0
  %830 = vmatpush1.msra.mxu0 0.0
  %831 = vmatprep.subr.mxu0 0.0
  %832 = vmatpush1.msra.mxu0 0.0
  %833 = vmatprep.subr.mxu0 0.0
  %834 = vmatpush1.msra.mxu0 0.0
  %835 = vmatprep.subr.mxu0 0.0
  %836 = vmatpush1.msra.mxu0 0.0
  %837 = vmatprep.subr.mxu0 0.0
  %838 = vmatpush1.msra.mxu0 0.0
  %839 = vmatprep.subr.mxu0 0.0
  %840 = vmatpush1.msra.mxu0 0.0
  %841 = vmatprep.subr.mxu0 0.0
  %842 = vmatpush1.msra.mxu0 0.0
  %843 = vmatprep.subr.mxu0 0.0
  %844 = vmatpush1.msra.mxu0 0.0
  %845 = vmatprep.mubr.f32.mxu0 0.0
  %846 = vmatmul.mubr.f32.gmra.mrb[0].mxu0 %v292
  %v847 = vpop.f32.mrb[0].mxu0
  %v848 = vadd.f32 %v703, %v847
  %v849 = vpop.f32.mrb[0].mxu0
  %v850 = vadd.f32 %v705, %v849
  %851 = vmatprep.mubr.f32.mxu0 0.0
  %852 = vmatmul.mubr.f32.gmra.mrb[0].mxu0 %v295
  %v853 = vpop.f32.mrb[0].mxu0
  %v854 = vadd.f32 %v709, %v853
  %v855 = vpop.f32.mrb[0].mxu0
  %v856 = vadd.f32 %v711, %v855
  %857 = vmatprep.mubr.f32.mxu0 0.0
  %858 = vmatmul.mubr.f32.gmra.mrb[0].mxu0 %v298
  %v859 = vpop.f32.mrb[0].mxu0
  %v860 = vadd.f32 %v715, %v859
  %v861 = vpop.f32.mrb[0].mxu0
  %v862 = vadd.f32 %v717, %v861
  %863 = vmatprep.mubr.f32.mxu0 0.0
  %864 = vmatmul.mubr.f32.gmra.mrb[0].mxu0 %v301
  %v865 = vpop.f32.mrb[0].mxu0
  %v866 = vadd.f32 %v721, %v865
  %v867 = vpop.f32.mrb[0].mxu0
  %v868 = vadd.f32 %v723, %v867
  %869 = vmatprep.mubr.f32.mxu0 0.0
  %870 = vmatmul.mubr.f32.gmra.mrb[0].mxu0 %v304
  %v871 = vpop.f32.mrb[0].mxu0
  %v872 = vadd.f32 %v727, %v871
  %v873 = vpop.f32.mrb[0].mxu0
  %v874 = vadd.f32 %v729, %v873
  %875 = vmatprep.mubr.f32.mxu0 0.0
  %876 = vmatmul.mubr.f32.gmra.mrb[0].mxu0 %v307
  %v877 = vpop.f32.mrb[0].mxu0
  %v878 = vadd.f32 %v733, %v877
  %v879 = vpop.f32.mrb[0].mxu0
  %v880 = vadd.f32 %v735, %v879
  %881 = vmatprep.mubr.f32.mxu0 0.0
  %882 = vmatmul.mubr.f32.gmra.mrb[0].mxu0 %v310
  %v883 = vpop.f32.mrb[0].mxu0
  %v884 = vadd.f32 %v739, %v883
  %v885 = vpop.f32.mrb[0].mxu0
  %v886 = vadd.f32 %v741, %v885
  %887 = vmatprep.mubr.f32.mxu0 0.0
  %888 = vmatmul.mubr.f32.gmra.mrb[0].mxu0 %v313
  %v889 = vpop.f32.mrb[0].mxu0
  %v890 = vadd.f32 %v745, %v889
  %v891 = vpop.f32.mrb[0].mxu0
  %v892 = vadd.f32 %v747, %v891
  %893 = vmatprep.mubr.f32.mxu0 0.0
  %894 = vmatmul.mubr.f32.gmra.mrb[0].mxu0 %v316
  %v895 = vpop.f32.mrb[0].mxu0
  %v896 = vadd.f32 %v751, %v895
  %v897 = vpop.f32.mrb[0].mxu0
  %v898 = vadd.f32 %v753, %v897
  %899 = vmatprep.mubr.f32.mxu0 0.0
  %900 = vmatmul.mubr.f32.gmra.mrb[0].mxu0 %v319
  %v901 = vpop.f32.mrb[0].mxu0
  %v902 = vadd.f32 %v757, %v901
  %v903 = vpop.f32.mrb[0].mxu0
  %v904 = vadd.f32 %v759, %v903
  %905 = vmatprep.mubr.f32.mxu0 0.0
  %906 = vmatmul.mubr.f32.gmra.mrb[0].mxu0 %v322
  %v907 = vpop.f32.mrb[0].mxu0
  %v908 = vadd.f32 %v763, %v907
  %v909 = vpop.f32.mrb[0].mxu0
  %v910 = vadd.f32 %v765, %v909
  %911 = vmatprep.mubr.f32.mxu0 0.0
  %912 = vmatmul.mubr.f32.gmra.mrb[0].mxu0 %v325
  %v913 = vpop.f32.mrb[0].mxu0
  %v914 = vadd.f32 %v769, %v913
  %v915 = vpop.f32.mrb[0].mxu0
  %v916 = vadd.f32 %v771, %v915
  %917 = vmatprep.mubr.f32.mxu0 0.0
  %918 = vmatmul.mubr.f32.gmra.mrb[0].mxu0 %v328
  %v919 = vpop.f32.mrb[0].mxu0
  %v920 = vpop.f32.mrb[0].mxu0
  %921 = vmatprep.mubr.f32.mxu0 0.0
  %922 = vmatmul.mubr.f32.gmra.mrb[0].mxu0 %v331
  %v923 = vpop.f32.mrb[0].mxu0
  %v924 = vpop.f32.mrb[0].mxu0
  %925 = vdwg.mxu0
  %974 = vrot.lane.b32.xlu0 %v558, 96
  %v975 = vpop.permute.xlu0 %974
  %976 = vrot.lane.b32.xlu0 %v560, 96
  %v977 = vpop.permute.xlu0 %976
  %978 = vrot.lane.b32.xlu0 %v848, 96
  %v979 = vpop.permute.xlu0 %978
  %980 = vrot.lane.b32.xlu0 %v850, 96
  %v981 = vpop.permute.xlu0 %980
  %982 = vrot.lane.b32.xlu0 %v564, 96
  %v983 = vpop.permute.xlu0 %982
  %984 = vrot.lane.b32.xlu0 %v566, 96
  %v985 = vpop.permute.xlu0 %984
  %986 = vrot.lane.b32.xlu0 %v854, 96
  %v987 = vpop.permute.xlu0 %986
  %988 = vrot.lane.b32.xlu0 %v856, 96
  %v989 = vpop.permute.xlu0 %988
  %990 = vrot.lane.b32.xlu0 %v570, 96
  %v991 = vpop.permute.xlu0 %990
  %992 = vrot.lane.b32.xlu0 %v572, 96
  %v993 = vpop.permute.xlu0 %992
  %994 = vrot.lane.b32.xlu0 %v860, 96
  %v995 = vpop.permute.xlu0 %994
  %996 = vrot.lane.b32.xlu0 %v862, 96
  %v997 = vpop.permute.xlu0 %996
  %998 = vrot.lane.b32.xlu0 %v576, 96
  %v999 = vpop.permute.xlu0 %998
  %1000 = vrot.lane.b32.xlu0 %v578, 96
  %v1001 = vpop.permute.xlu0 %1000
  %1002 = vrot.lane.b32.xlu0 %v866, 96
  %v1003 = vpop.permute.xlu0 %1002
  %1004 = vrot.lane.b32.xlu0 %v868, 96
  %v1005 = vpop.permute.xlu0 %1004
  %1006 = vrot.lane.b32.xlu0 %v582, 96
  %v1007 = vpop.permute.xlu0 %1006
  %1008 = vrot.lane.b32.xlu0 %v584, 96
  %v1009 = vpop.permute.xlu0 %1008
  %1010 = vrot.lane.b32.xlu0 %v872, 96
  %v1011 = vpop.permute.xlu0 %1010
  %1012 = vrot.lane.b32.xlu0 %v874, 96
  %v1013 = vpop.permute.xlu0 %1012
  %1014 = vrot.lane.b32.xlu0 %v588, 96
  %v1015 = vpop.permute.xlu0 %1014
  %1016 = vrot.lane.b32.xlu0 %v590, 96
  %v1017 = vpop.permute.xlu0 %1016
  %1018 = vrot.lane.b32.xlu0 %v878, 96
  %v1019 = vpop.permute.xlu0 %1018
  %1020 = vrot.lane.b32.xlu0 %v880, 96
  %v1021 = vpop.permute.xlu0 %1020
  %1022 = vrot.lane.b32.xlu0 %v594, 96
  %v1023 = vpop.permute.xlu0 %1022
  %1024 = vrot.lane.b32.xlu0 %v596, 96
  %v1025 = vpop.permute.xlu0 %1024
  %1026 = vrot.lane.b32.xlu0 %v884, 96
  %v1027 = vpop.permute.xlu0 %1026
  %1028 = vrot.lane.b32.xlu0 %v886, 96
  %v1029 = vpop.permute.xlu0 %1028
  %1030 = vrot.lane.b32.xlu0 %v600, 96
  %v1031 = vpop.permute.xlu0 %1030
  %1032 = vrot.lane.b32.xlu0 %v602, 96
  %v1033 = vpop.permute.xlu0 %1032
  %1034 = vrot.lane.b32.xlu0 %v890, 96
  %v1035 = vpop.permute.xlu0 %1034
  %1036 = vrot.lane.b32.xlu0 %v892, 96
  %v1037 = vpop.permute.xlu0 %1036
  %1038 = vrot.lane.b32.xlu0 %v606, 96
  %v1039 = vpop.permute.xlu0 %1038
  %1040 = vrot.lane.b32.xlu0 %v608, 96
  %v1041 = vpop.permute.xlu0 %1040
  %1042 = vrot.lane.b32.xlu0 %v896, 96
  %v1043 = vpop.permute.xlu0 %1042
  %1044 = vrot.lane.b32.xlu0 %v898, 96
  %v1045 = vpop.permute.xlu0 %1044
  %1046 = vrot.lane.b32.xlu0 %v612, 96
  %v1047 = vpop.permute.xlu0 %1046
  %1048 = vrot.lane.b32.xlu0 %v614, 96
  %v1049 = vpop.permute.xlu0 %1048
  %1050 = vrot.lane.b32.xlu0 %v902, 96
  %v1051 = vpop.permute.xlu0 %1050
  %1052 = vrot.lane.b32.xlu0 %v904, 96
  %v1053 = vpop.permute.xlu0 %1052
  %1054 = vrot.lane.b32.xlu0 %v618, 96
  %v1055 = vpop.permute.xlu0 %1054
  %1056 = vrot.lane.b32.xlu0 %v620, 96
  %v1057 = vpop.permute.xlu0 %1056
  %1058 = vrot.lane.b32.xlu0 %v908, 96
  %v1059 = vpop.permute.xlu0 %1058
  %1060 = vrot.lane.b32.xlu0 %v910, 96
  %v1061 = vpop.permute.xlu0 %1060
  %1062 = vrot.lane.b32.xlu0 %v624, 96
  %v1063 = vpop.permute.xlu0 %1062
  %1064 = vrot.lane.b32.xlu0 %v626, 96
  %v1065 = vpop.permute.xlu0 %1064
  %1066 = vrot.lane.b32.xlu0 %v914, 96
  %v1067 = vpop.permute.xlu0 %1066
  %1068 = vrot.lane.b32.xlu0 %v916, 96
  %v1069 = vpop.permute.xlu0 %1068
  %vm1070 = vcmask 785408
  %v1071 = vsel %vm1070, %v975, %v977
  %v1072 = vsel %vm1070, %v977, %v979
  %v1073 = vsel %vm1070, %v979, %v981
  %v1074 = vsel %vm1070, %v983, %v985
  %v1075 = vsel %vm1070, %v985, %v987
  %v1076 = vsel %vm1070, %v987, %v989
  %v1077 = vsel %vm1070, %v991, %v993
  %v1078 = vsel %vm1070, %v993, %v995
  %v1079 = vsel %vm1070, %v995, %v997
  %v1080 = vsel %vm1070, %v999, %v1001
  %v1081 = vsel %vm1070, %v1001, %v1003
  %v1082 = vsel %vm1070, %v1003, %v1005
  %v1083 = vsel %vm1070, %v1007, %v1009
  %v1084 = vsel %vm1070, %v1009, %v1011
  %v1085 = vsel %vm1070, %v1011, %v1013
  %v1086 = vsel %vm1070, %v1015, %v1017
  %v1087 = vsel %vm1070, %v1017, %v1019
  %v1088 = vsel %vm1070, %v1019, %v1021
  %v1089 = vsel %vm1070, %v1023, %v1025
  %v1090 = vsel %vm1070, %v1025, %v1027
  %v1091 = vsel %vm1070, %v1027, %v1029
  %v1092 = vsel %vm1070, %v1031, %v1033
  %v1093 = vsel %vm1070, %v1033, %v1035
  %v1094 = vsel %vm1070, %v1035, %v1037
  %v1095 = vsel %vm1070, %v1039, %v1041
  %v1096 = vsel %vm1070, %v1041, %v1043
  %v1097 = vsel %vm1070, %v1043, %v1045
  %v1098 = vsel %vm1070, %v1047, %v1049
  %v1099 = vsel %vm1070, %v1049, %v1051
  %v1100 = vsel %vm1070, %v1051, %v1053
  %v1101 = vsel %vm1070, %v1055, %v1057
  %v1102 = vsel %vm1070, %v1057, %v1059
  %v1103 = vsel %vm1070, %v1059, %v1061
  %v1104 = vsel %vm1070, %v1063, %v1065
  %v1105 = vsel %vm1070, %v1065, %v1067
  %v1106 = vsel %vm1070, %v1067, %v1069
  %v1155 = vmax.f32 %v558, %v1071
  %v1156 = vmax.f32 %v560, %v1072
  %v1157 = vmax.f32 %v848, %v1073
  %v1158 = vmax.f32 %v850, %v981
  %v1159 = vmax.f32 %v564, %v1074
  %v1160 = vmax.f32 %v566, %v1075
  %v1161 = vmax.f32 %v854, %v1076
  %v1162 = vmax.f32 %v856, %v989
  %v1163 = vmax.f32 %v570, %v1077
  %v1164 = vmax.f32 %v572, %v1078
  %v1165 = vmax.f32 %v860, %v1079
  %v1166 = vmax.f32 %v862, %v997
  %v1167 = vmax.f32 %v576, %v1080
  %v1168 = vmax.f32 %v578, %v1081
  %v1169 = vmax.f32 %v866, %v1082
  %v1170 = vmax.f32 %v868, %v1005
  %v1171 = vmax.f32 %v582, %v1083
  %v1172 = vmax.f32 %v584, %v1084
  %v1173 = vmax.f32 %v872, %v1085
  %v1174 = vmax.f32 %v874, %v1013
  %v1175 = vmax.f32 %v588, %v1086
  %v1176 = vmax.f32 %v590, %v1087
  %v1177 = vmax.f32 %v878, %v1088
  %v1178 = vmax.f32 %v880, %v1021
  %v1179 = vmax.f32 %v594, %v1089
  %v1180 = vmax.f32 %v596, %v1090
  %v1181 = vmax.f32 %v884, %v1091
  %v1182 = vmax.f32 %v886, %v1029
  %v1183 = vmax.f32 %v600, %v1092
  %v1184 = vmax.f32 %v602, %v1093
  %v1185 = vmax.f32 %v890, %v1094
  %v1186 = vmax.f32 %v892, %v1037
  %v1187 = vmax.f32 %v606, %v1095
  %v1188 = vmax.f32 %v608, %v1096
  %v1189 = vmax.f32 %v896, %v1097
  %v1190 = vmax.f32 %v898, %v1045
  %v1191 = vmax.f32 %v612, %v1098
  %v1192 = vmax.f32 %v614, %v1099
  %v1193 = vmax.f32 %v902, %v1100
  %v1194 = vmax.f32 %v904, %v1053
  %v1195 = vmax.f32 %v618, %v1101
  %v1196 = vmax.f32 %v620, %v1102
  %v1197 = vmax.f32 %v908, %v1103
  %v1198 = vmax.f32 %v910, %v1061
  %v1199 = vmax.f32 %v624, %v1104
  %v1200 = vmax.f32 %v626, %v1105
  %v1201 = vmax.f32 %v914, %v1106
  %v1202 = vmax.f32 %v916, %v1069
  %v1203 = vmax.f32 %v1155, %v1159
  %v1204 = vmax.f32 %v1156, %v1160
  %v1205 = vmax.f32 %v1157, %v1161
  %v1206 = vmax.f32 %v1158, %v1162
  %v1207 = vmax.f32 %v1163, %v1167
  %v1208 = vmax.f32 %v1164, %v1168
  %v1209 = vmax.f32 %v1165, %v1169
  %v1210 = vmax.f32 %v1166, %v1170
  %v1211 = vmax.f32 %v1171, %v1175
  %v1212 = vmax.f32 %v1172, %v1176
  %v1213 = vmax.f32 %v1173, %v1177
  %v1214 = vmax.f32 %v1174, %v1178
  %v1215 = vmax.f32 %v1179, %v1183
  %v1216 = vmax.f32 %v1180, %v1184
  %v1217 = vmax.f32 %v1181, %v1185
  %v1218 = vmax.f32 %v1182, %v1186
  %v1219 = vmax.f32 %v1187, %v1191
  %v1220 = vmax.f32 %v1188, %v1192
  %v1221 = vmax.f32 %v1189, %v1193
  %v1222 = vmax.f32 %v1190, %v1194
  %v1223 = vmax.f32 %v1195, %v1199
  %v1224 = vmax.f32 %v1196, %v1200
  %v1225 = vmax.f32 %v1197, %v1201
  %v1226 = vmax.f32 %v1198, %v1202
  %1231 = vrot.lane.b32.xlu0 %v1207, 32
  %v1232 = vpop.permute.xlu0 %1231
  %1233 = vrot.lane.b32.xlu0 %v1208, 32
  %v1234 = vpop.permute.xlu0 %1233
  %1235 = vrot.lane.b32.xlu0 %v1209, 32
  %v1236 = vpop.permute.xlu0 %1235
  %1237 = vrot.lane.b32.xlu0 %v1210, 32
  %v1238 = vpop.permute.xlu0 %1237
  %vm1239 = vcmask 261120
  %v1240 = vsel %vm1239, %v1232, %v1234
  %v1241 = vsel %vm1239, %v1234, %v1236
  %v1242 = vsel %vm1239, %v1236, %v1238
  %1251 = vrot.lane.b32.xlu0 %v1211, 64
  %v1252 = vpop.permute.xlu0 %1251
  %1253 = vrot.lane.b32.xlu0 %v1212, 64
  %v1254 = vpop.permute.xlu0 %1253
  %1255 = vrot.lane.b32.xlu0 %v1213, 64
  %v1256 = vpop.permute.xlu0 %1255
  %1257 = vrot.lane.b32.xlu0 %v1214, 64
  %v1258 = vpop.permute.xlu0 %1257
  %vm1259 = vcmask 523264
  %v1260 = vsel %vm1259, %v1252, %v1254
  %v1261 = vsel %vm1259, %v1254, %v1256
  %v1262 = vsel %vm1259, %v1256, %v1258
  %1271 = vrot.lane.b32.xlu0 %v1215, 96
  %v1272 = vpop.permute.xlu0 %1271
  %1273 = vrot.lane.b32.xlu0 %v1216, 96
  %v1274 = vpop.permute.xlu0 %1273
  %1275 = vrot.lane.b32.xlu0 %v1217, 96
  %v1276 = vpop.permute.xlu0 %1275
  %1277 = vrot.lane.b32.xlu0 %v1218, 96
  %v1278 = vpop.permute.xlu0 %1277
  %v1279 = vsel %vm1070, %v1272, %v1274
  %v1280 = vsel %vm1070, %v1274, %v1276
  %v1281 = vsel %vm1070, %v1276, %v1278
  %v1286 = vsel %vm1239, %v1206, %v1232
  %v1287 = vsel %vm1259, %v1242, %v1252
  %v1288 = vsel %vm1070, %v1262, %v1272
  %1289 = vrot.lane.b32.xlu0 %v1211, 32
  %v1290 = vpop.permute.xlu0 %1289
  %1291 = vrot.lane.b32.xlu0 %v1212, 32
  %v1292 = vpop.permute.xlu0 %1291
  %1293 = vrot.lane.b32.xlu0 %v1213, 32
  %v1294 = vpop.permute.xlu0 %1293
  %1295 = vrot.lane.b32.xlu0 %v1214, 32
  %v1296 = vpop.permute.xlu0 %1295
  %v1297 = vsel %vm1239, %v1290, %v1292
  %v1298 = vsel %vm1239, %v1292, %v1294
  %v1299 = vsel %vm1239, %v1294, %v1296
  %1304 = vrot.lane.b32.xlu0 %v1215, 64
  %v1305 = vpop.permute.xlu0 %1304
  %1306 = vrot.lane.b32.xlu0 %v1216, 64
  %v1307 = vpop.permute.xlu0 %1306
  %1308 = vrot.lane.b32.xlu0 %v1217, 64
  %v1309 = vpop.permute.xlu0 %1308
  %1310 = vrot.lane.b32.xlu0 %v1218, 64
  %v1311 = vpop.permute.xlu0 %1310
  %v1312 = vsel %vm1259, %v1305, %v1307
  %v1313 = vsel %vm1259, %v1307, %v1309
  %v1314 = vsel %vm1259, %v1309, %v1311
  %1323 = vrot.lane.b32.xlu0 %v1219, 96
  %v1324 = vpop.permute.xlu0 %1323
  %1325 = vrot.lane.b32.xlu0 %v1220, 96
  %v1326 = vpop.permute.xlu0 %1325
  %1327 = vrot.lane.b32.xlu0 %v1221, 96
  %v1328 = vpop.permute.xlu0 %1327
  %1329 = vrot.lane.b32.xlu0 %v1222, 96
  %v1330 = vpop.permute.xlu0 %1329
  %v1331 = vsel %vm1070, %v1324, %v1326
  %v1332 = vsel %vm1070, %v1326, %v1328
  %v1333 = vsel %vm1070, %v1328, %v1330
  %v1338 = vsel %vm1239, %v1210, %v1290
  %v1339 = vsel %vm1259, %v1299, %v1305
  %v1340 = vsel %vm1070, %v1314, %v1324
  %v1341 = vld [vmem:[%s3] sm:$0xff]
  %v1342 = vld [vmem:[%s3 + $0x8] sm:$0xff]
  %v1343 = vld [vmem:[%s3 + $0x10] sm:$0xff]
  %v1344 = vld [vmem:[%s3 + $0x18] sm:$0xff]
  %v1345 = vld [vmem:[%s3 + $0x20] sm:$0xff]
  %v1346 = vld [vmem:[%s3 + $0x28] sm:$0xff]
  %v1347 = vld [vmem:[%s3 + $0x30] sm:$0xff]
  %v1348 = vld [vmem:[%s3 + $0x38] sm:$0xff]
  %v1349 = vld [vmem:[%s3 + $0x40] sm:$0xff]
  %v1350 = vld [vmem:[%s3 + $0x48] sm:$0xff]
  %v1351 = vld [vmem:[%s3 + $0x50] sm:$0xff]
  %v1352 = vld [vmem:[%s3 + $0x58] sm:$0xff]
  %v1353 = vld [vmem:[%s3 + $0x60] sm:$0xff]
  %v1354 = vld [vmem:[%s3 + $0x68] sm:$0xff]
  %v1355 = vld [vmem:[%s3 + $0x70] sm:$0xff]
  %v1356 = vld [vmem:[%s3 + $0x78] sm:$0xff]
  %v1357 = vld [vmem:[%s3 + $0x80] sm:$0xff]
  %v1358 = vld [vmem:[%s3 + $0x88] sm:$0xff]
  %v1359 = vld [vmem:[%s3 + $0x90] sm:$0xff]
  %v1360 = vld [vmem:[%s3 + $0x98] sm:$0xff]
  %v1361 = vld [vmem:[%s3 + $0xa0] sm:$0xff]
  %v1362 = vld [vmem:[%s3 + $0xa8] sm:$0xff]
  %v1363 = vld [vmem:[%s3 + $0xb0] sm:$0xff]
  %v1364 = vld [vmem:[%s3 + $0xb8] sm:$0xff]
  %v1365 = vld [vmem:[%s3 + $0xc0] sm:$0xff]
  %v1366 = vld [vmem:[%s3 + $0xc8] sm:$0xff]
  %v1367 = vld [vmem:[%s3 + $0xd0] sm:$0xff]
  %v1368 = vld [vmem:[%s3 + $0xd8] sm:$0xff]
  %v1369 = vld [vmem:[%s3 + $0xe0] sm:$0xff]
  %v1370 = vld [vmem:[%s3 + $0xe8] sm:$0xff]
  %v1371 = vld [vmem:[%s3 + $0xf0] sm:$0xff]
  %v1372 = vld [vmem:[%s3 + $0xf8] sm:$0xff]
  %v1373 = vld [vmem:[%s3 + $0x100] sm:$0xff]
  %v1374 = vld [vmem:[%s3 + $0x108] sm:$0xff]
  %v1375 = vld [vmem:[%s3 + $0x110] sm:$0xff]
  %v1376 = vld [vmem:[%s3 + $0x118] sm:$0xff]
  %v1377 = vld [vmem:[%s3 + $0x120] sm:$0xff]
  %v1378 = vld [vmem:[%s3 + $0x128] sm:$0xff]
  %v1379 = vld [vmem:[%s3 + $0x130] sm:$0xff]
  %v1380 = vld [vmem:[%s3 + $0x138] sm:$0xff]
  %v1381 = vld [vmem:[%s3 + $0x140] sm:$0xff]
  %v1382 = vld [vmem:[%s3 + $0x148] sm:$0xff]
  %v1383 = vld [vmem:[%s3 + $0x150] sm:$0xff]
  %v1384 = vld [vmem:[%s3 + $0x158] sm:$0xff]
  %v1385 = vld [vmem:[%s3 + $0x160] sm:$0xff]
  %v1386 = vld [vmem:[%s3 + $0x168] sm:$0xff]
  %v1387 = vld [vmem:[%s3 + $0x170] sm:$0xff]
  %v1388 = vld [vmem:[%s3 + $0x178] sm:$0xff]
  %v1389 = vld [vmem:[%s3 + $0x180] sm:$0xff]
  %v1390 = vld [vmem:[%s3 + $0x188] sm:$0xff]
  %v1391 = vld [vmem:[%s3 + $0x190] sm:$0xff]
  %v1392 = vld [vmem:[%s3 + $0x198] sm:$0xff]
  %v1393 = vld [vmem:[%s3 + $0x1a0] sm:$0xff]
  %v1394 = vld [vmem:[%s3 + $0x1a8] sm:$0xff]
  %v1395 = vld [vmem:[%s3 + $0x1b0] sm:$0xff]
  %v1396 = vld [vmem:[%s3 + $0x1b8] sm:$0xff]
  %v1397 = vld [vmem:[%s3 + $0x1c0] sm:$0xff]
  %v1398 = vld [vmem:[%s3 + $0x1c8] sm:$0xff]
  %v1399 = vld [vmem:[%s3 + $0x1d0] sm:$0xff]
  %v1400 = vld [vmem:[%s3 + $0x1d8] sm:$0xff]
  %v1401 = vld [vmem:[%s3 + $0x1e0] sm:$0xff]
  %v1402 = vld [vmem:[%s3 + $0x1e8] sm:$0xff]
  %v1403 = vld [vmem:[%s3 + $0x1f0] sm:$0xff]
  %v1404 = vld [vmem:[%s3 + $0x1f8] sm:$0xff]
  %v1405 = vld [vmem:[%s3 + $0x200] sm:$0xff]
  %v1406 = vld [vmem:[%s3 + $0x208] sm:$0xff]
  %v1407 = vld [vmem:[%s3 + $0x210] sm:$0xff]
  %v1408 = vld [vmem:[%s3 + $0x218] sm:$0xff]
  %v1409 = vld [vmem:[%s3 + $0x220] sm:$0xff]
  %v1410 = vld [vmem:[%s3 + $0x228] sm:$0xff]
  %v1411 = vld [vmem:[%s3 + $0x230] sm:$0xff]
  %v1412 = vld [vmem:[%s3 + $0x238] sm:$0xff]
  %v1413 = vld [vmem:[%s3 + $0x240] sm:$0xff]
  %v1414 = vld [vmem:[%s3 + $0x248] sm:$0xff]
  %v1415 = vld [vmem:[%s3 + $0x250] sm:$0xff]
  %v1416 = vld [vmem:[%s3 + $0x258] sm:$0xff]
  %v1417 = vld [vmem:[%s3 + $0x260] sm:$0xff]
  %v1418 = vld [vmem:[%s3 + $0x268] sm:$0xff]
  %v1419 = vld [vmem:[%s3 + $0x270] sm:$0xff]
  %v1420 = vld [vmem:[%s3 + $0x278] sm:$0xff]
  %v1421 = vld [vmem:[%s3 + $0x280] sm:$0xff]
  %v1422 = vld [vmem:[%s3 + $0x288] sm:$0xff]
  %v1423 = vld [vmem:[%s3 + $0x290] sm:$0xff]
  %v1424 = vld [vmem:[%s3 + $0x298] sm:$0xff]
  %v1425 = vld [vmem:[%s3 + $0x2a0] sm:$0xff]
  %v1426 = vld [vmem:[%s3 + $0x2a8] sm:$0xff]
  %v1427 = vld [vmem:[%s3 + $0x2b0] sm:$0xff]
  %v1428 = vld [vmem:[%s3 + $0x2b8] sm:$0xff]
  %v1429 = vld [vmem:[%s3 + $0x2c0] sm:$0xff]
  %v1430 = vld [vmem:[%s3 + $0x2c8] sm:$0xff]
  %v1431 = vld [vmem:[%s3 + $0x2d0] sm:$0xff]
  %v1432 = vld [vmem:[%s3 + $0x2d8] sm:$0xff]
  %v1433 = vld [vmem:[%s3 + $0x2e0] sm:$0xff]
  %v1434 = vld [vmem:[%s3 + $0x2e8] sm:$0xff]
  %v1435 = vld [vmem:[%s3 + $0x2f0] sm:$0xff]
  %v1436 = vld [vmem:[%s3 + $0x2f8] sm:$0xff]
  %v1437 = vld [vmem:[%s3 + $0x300] sm:$0xff]
  %v1438 = vld [vmem:[%s3 + $0x308] sm:$0xff]
  %v1439 = vld [vmem:[%s3 + $0x310] sm:$0xff]
  %v1440 = vld [vmem:[%s3 + $0x318] sm:$0xff]
  %v1441 = vld [vmem:[%s3 + $0x320] sm:$0xff]
  %v1442 = vld [vmem:[%s3 + $0x328] sm:$0xff]
  %v1443 = vld [vmem:[%s3 + $0x330] sm:$0xff]
  %v1444 = vld [vmem:[%s3 + $0x338] sm:$0xff]
  %v1445 = vld [vmem:[%s3 + $0x340] sm:$0xff]
  %v1446 = vld [vmem:[%s3 + $0x348] sm:$0xff]
  %v1447 = vld [vmem:[%s3 + $0x350] sm:$0xff]
  %v1448 = vld [vmem:[%s3 + $0x358] sm:$0xff]
  %v1449 = vld [vmem:[%s3 + $0x360] sm:$0xff]
  %v1450 = vld [vmem:[%s3 + $0x368] sm:$0xff]
  %v1451 = vld [vmem:[%s3 + $0x370] sm:$0xff]
  %v1452 = vld [vmem:[%s3 + $0x378] sm:$0xff]
  %v1453 = vld [vmem:[%s3 + $0x380] sm:$0xff]
  %v1454 = vld [vmem:[%s3 + $0x388] sm:$0xff]
  %v1455 = vld [vmem:[%s3 + $0x390] sm:$0xff]
  %v1456 = vld [vmem:[%s3 + $0x398] sm:$0xff]
  %v1457 = vld [vmem:[%s3 + $0x3a0] sm:$0xff]
  %v1458 = vld [vmem:[%s3 + $0x3a8] sm:$0xff]
  %v1459 = vld [vmem:[%s3 + $0x3b0] sm:$0xff]
  %v1460 = vld [vmem:[%s3 + $0x3b8] sm:$0xff]
  %v1461 = vld [vmem:[%s3 + $0x3c0] sm:$0xff]
  %v1462 = vld [vmem:[%s3 + $0x3c8] sm:$0xff]
  %v1463 = vld [vmem:[%s3 + $0x3d0] sm:$0xff]
  %v1464 = vld [vmem:[%s3 + $0x3d8] sm:$0xff]
  %v1465 = vld [vmem:[%s3 + $0x3e0] sm:$0xff]
  %v1466 = vld [vmem:[%s3 + $0x3e8] sm:$0xff]
  %v1467 = vld [vmem:[%s3 + $0x3f0] sm:$0xff]
  %v1468 = vld [vmem:[%s3 + $0x3f8] sm:$0xff]
  %v1469 = vld [vmem:[%s3 + $0x400] sm:$0xff]
  %v1470 = vld [vmem:[%s3 + $0x408] sm:$0xff]
  %v1471 = vld [vmem:[%s3 + $0x410] sm:$0xff]
  %v1472 = vld [vmem:[%s3 + $0x418] sm:$0xff]
  %v1473 = vld [vmem:[%s3 + $0x420] sm:$0xff]
  %v1474 = vld [vmem:[%s3 + $0x428] sm:$0xff]
  %v1475 = vld [vmem:[%s3 + $0x430] sm:$0xff]
  %v1476 = vld [vmem:[%s3 + $0x438] sm:$0xff]
  %v1477 = vld [vmem:[%s3 + $0x440] sm:$0xff]
  %v1478 = vld [vmem:[%s3 + $0x448] sm:$0xff]
  %v1479 = vld [vmem:[%s3 + $0x450] sm:$0xff]
  %v1480 = vld [vmem:[%s3 + $0x458] sm:$0xff]
  %v1481 = vld [vmem:[%s3 + $0x460] sm:$0xff]
  %v1482 = vld [vmem:[%s3 + $0x468] sm:$0xff]
  %v1483 = vld [vmem:[%s3 + $0x470] sm:$0xff]
  %v1484 = vld [vmem:[%s3 + $0x478] sm:$0xff]
  %v1485 = vld [vmem:[%s3 + $0x480] sm:$0xff]
  %v1486 = vld [vmem:[%s3 + $0x488] sm:$0xff]
  %v1487 = vld [vmem:[%s3 + $0x490] sm:$0xff]
  %v1488 = vld [vmem:[%s3 + $0x498] sm:$0xff]
  %v1489 = vld [vmem:[%s3 + $0x4a0] sm:$0xff]
  %v1490 = vld [vmem:[%s3 + $0x4a8] sm:$0xff]
  %v1491 = vld [vmem:[%s3 + $0x4b0] sm:$0xff]
  %v1492 = vld [vmem:[%s3 + $0x4b8] sm:$0xff]
  %v1493 = vld [vmem:[%s3 + $0x4c0] sm:$0xff]
  %v1494 = vld [vmem:[%s3 + $0x4c8] sm:$0xff]
  %v1495 = vld [vmem:[%s3 + $0x4d0] sm:$0xff]
  %v1496 = vld [vmem:[%s3 + $0x4d8] sm:$0xff]
  %v1497 = vld [vmem:[%s3 + $0x4e0] sm:$0xff]
  %v1498 = vld [vmem:[%s3 + $0x4e8] sm:$0xff]
  %v1499 = vld [vmem:[%s3 + $0x4f0] sm:$0xff]
  %v1500 = vld [vmem:[%s3 + $0x4f8] sm:$0xff]
  %v1501 = vld [vmem:[%s3 + $0x500] sm:$0xff]
  %v1502 = vld [vmem:[%s3 + $0x508] sm:$0xff]
  %v1503 = vld [vmem:[%s3 + $0x510] sm:$0xff]
  %v1504 = vld [vmem:[%s3 + $0x518] sm:$0xff]
  %v1505 = vld [vmem:[%s3 + $0x520] sm:$0xff]
  %v1506 = vld [vmem:[%s3 + $0x528] sm:$0xff]
  %v1507 = vld [vmem:[%s3 + $0x530] sm:$0xff]
  %v1508 = vld [vmem:[%s3 + $0x538] sm:$0xff]
  %v1509 = vld [vmem:[%s3 + $0x540] sm:$0xff]
  %v1510 = vld [vmem:[%s3 + $0x548] sm:$0xff]
  %v1511 = vld [vmem:[%s3 + $0x550] sm:$0xff]
  %v1512 = vld [vmem:[%s3 + $0x558] sm:$0xff]
  %v1513 = vld [vmem:[%s3 + $0x560] sm:$0xff]
  %v1514 = vld [vmem:[%s3 + $0x568] sm:$0xff]
  %v1515 = vld [vmem:[%s3 + $0x570] sm:$0xff]
  %v1516 = vld [vmem:[%s3 + $0x578] sm:$0xff]
  %v1517 = vld [vmem:[%s3 + $0x580] sm:$0xff]
  %v1518 = vld [vmem:[%s3 + $0x588] sm:$0xff]
  %v1519 = vld [vmem:[%s3 + $0x590] sm:$0xff]
  %v1520 = vld [vmem:[%s3 + $0x598] sm:$0xff]
  %v1521 = vld [vmem:[%s3 + $0x5a0] sm:$0xff]
  %v1522 = vld [vmem:[%s3 + $0x5a8] sm:$0xff]
  %v1523 = vld [vmem:[%s3 + $0x5b0] sm:$0xff]
  %v1524 = vld [vmem:[%s3 + $0x5b8] sm:$0xff]
  %v1525 = vld [vmem:[%s3 + $0x5c0] sm:$0xff]
  %v1526 = vld [vmem:[%s3 + $0x5c8] sm:$0xff]
  %v1527 = vld [vmem:[%s3 + $0x5d0] sm:$0xff]
  %v1528 = vld [vmem:[%s3 + $0x5d8] sm:$0xff]
  %v1529 = vld [vmem:[%s3 + $0x5e0] sm:$0xff]
  %v1530 = vld [vmem:[%s3 + $0x5e8] sm:$0xff]
  %v1531 = vld [vmem:[%s3 + $0x5f0] sm:$0xff]
  %v1532 = vld [vmem:[%s3 + $0x5f8] sm:$0xff]
  %v1533 = vld [vmem:[%s3 + $0x600] sm:$0xff]
  %v1534 = vld [vmem:[%s3 + $0x608] sm:$0xff]
  %v1535 = vld [vmem:[%s3 + $0x610] sm:$0xff]
  %v1536 = vld [vmem:[%s3 + $0x618] sm:$0xff]
  %v1537 = vld [vmem:[%s3 + $0x620] sm:$0xff]
  %v1538 = vld [vmem:[%s3 + $0x628] sm:$0xff]
  %v1539 = vld [vmem:[%s3 + $0x630] sm:$0xff]
  %v1540 = vld [vmem:[%s3 + $0x638] sm:$0xff]
  %v1541 = vld [vmem:[%s3 + $0x640] sm:$0xff]
  %v1542 = vld [vmem:[%s3 + $0x648] sm:$0xff]
  %v1543 = vld [vmem:[%s3 + $0x650] sm:$0xff]
  %v1544 = vld [vmem:[%s3 + $0x658] sm:$0xff]
  %v1545 = vld [vmem:[%s3 + $0x660] sm:$0xff]
  %v1546 = vld [vmem:[%s3 + $0x668] sm:$0xff]
  %v1547 = vld [vmem:[%s3 + $0x670] sm:$0xff]
  %v1548 = vld [vmem:[%s3 + $0x678] sm:$0xff]
  %v1549 = vld [vmem:[%s3 + $0x680] sm:$0xff]
  %v1550 = vld [vmem:[%s3 + $0x688] sm:$0xff]
  %v1551 = vld [vmem:[%s3 + $0x690] sm:$0xff]
  %v1552 = vld [vmem:[%s3 + $0x698] sm:$0xff]
  %v1553 = vld [vmem:[%s3 + $0x6a0] sm:$0xff]
  %v1554 = vld [vmem:[%s3 + $0x6a8] sm:$0xff]
  %v1555 = vld [vmem:[%s3 + $0x6b0] sm:$0xff]
  %v1556 = vld [vmem:[%s3 + $0x6b8] sm:$0xff]
  %v1557 = vld [vmem:[%s3 + $0x6c0] sm:$0xff]
  %v1558 = vld [vmem:[%s3 + $0x6c8] sm:$0xff]
  %v1559 = vld [vmem:[%s3 + $0x6d0] sm:$0xff]
  %v1560 = vld [vmem:[%s3 + $0x6d8] sm:$0xff]
  %v1561 = vld [vmem:[%s3 + $0x6e0] sm:$0xff]
  %v1562 = vld [vmem:[%s3 + $0x6e8] sm:$0xff]
  %v1563 = vld [vmem:[%s3 + $0x6f0] sm:$0xff]
  %v1564 = vld [vmem:[%s3 + $0x6f8] sm:$0xff]
  %v1565 = vld [vmem:[%s3 + $0x700] sm:$0xff]
  %v1566 = vld [vmem:[%s3 + $0x708] sm:$0xff]
  %v1567 = vld [vmem:[%s3 + $0x710] sm:$0xff]
  %v1568 = vld [vmem:[%s3 + $0x718] sm:$0xff]
  %v1569 = vld [vmem:[%s3 + $0x720] sm:$0xff]
  %v1570 = vld [vmem:[%s3 + $0x728] sm:$0xff]
  %v1571 = vld [vmem:[%s3 + $0x730] sm:$0xff]
  %v1572 = vld [vmem:[%s3 + $0x738] sm:$0xff]
  %v1573 = vld [vmem:[%s3 + $0x740] sm:$0xff]
  %v1574 = vld [vmem:[%s3 + $0x748] sm:$0xff]
  %v1575 = vld [vmem:[%s3 + $0x750] sm:$0xff]
  %v1576 = vld [vmem:[%s3 + $0x758] sm:$0xff]
  %v1577 = vld [vmem:[%s3 + $0x760] sm:$0xff]
  %v1578 = vld [vmem:[%s3 + $0x768] sm:$0xff]
  %v1579 = vld [vmem:[%s3 + $0x770] sm:$0xff]
  %v1580 = vld [vmem:[%s3 + $0x778] sm:$0xff]
  %v1581 = vld [vmem:[%s3 + $0x780] sm:$0xff]
  %v1582 = vld [vmem:[%s3 + $0x788] sm:$0xff]
  %v1583 = vld [vmem:[%s3 + $0x790] sm:$0xff]
  %v1584 = vld [vmem:[%s3 + $0x798] sm:$0xff]
  %v1585 = vld [vmem:[%s3 + $0x7a0] sm:$0xff]
  %v1586 = vld [vmem:[%s3 + $0x7a8] sm:$0xff]
  %v1587 = vld [vmem:[%s3 + $0x7b0] sm:$0xff]
  %v1588 = vld [vmem:[%s3 + $0x7b8] sm:$0xff]
  %v1589 = vld [vmem:[%s3 + $0x7c0] sm:$0xff]
  %v1590 = vld [vmem:[%s3 + $0x7c8] sm:$0xff]
  %v1591 = vld [vmem:[%s3 + $0x7d0] sm:$0xff]
  %v1592 = vld [vmem:[%s3 + $0x7d8] sm:$0xff]
  %v1593 = vld [vmem:[%s3 + $0x7e0] sm:$0xff]
  %v1594 = vld [vmem:[%s3 + $0x7e8] sm:$0xff]
  %v1595 = vld [vmem:[%s3 + $0x7f0] sm:$0xff]
  %v1596 = vld [vmem:[%s3 + $0x7f8] sm:$0xff]
  %v1597 = vld [vmem:[%s3 + $0x800] sm:$0xff]
  %v1598 = vld [vmem:[%s3 + $0x808] sm:$0xff]
  %v1599 = vld [vmem:[%s3 + $0x810] sm:$0xff]
  %v1600 = vld [vmem:[%s3 + $0x818] sm:$0xff]
  %v1601 = vsel %vm1239, %v1222, 0
  %1603 = vmatprep.subr.mxu0 0.0
  %1604 = vmatpush1.msra.mxu0 %v1341
  %1605 = vmatprep.subr.mxu0 0.0
  %1606 = vmatpush1.msra.mxu0 %v1342
  %1607 = vmatprep.subr.mxu0 0.0
  %1608 = vmatpush1.msra.mxu0 %v1343
  %1609 = vmatprep.subr.mxu0 0.0
  %1610 = vmatpush1.msra.mxu0 %v1344
  %1611 = vmatprep.subr.mxu0 0.0
  %1612 = vmatpush1.msra.mxu0 %v1345
  %1613 = vmatprep.subr.mxu0 0.0
  %1614 = vmatpush1.msra.mxu0 %v1346
  %1615 = vmatprep.subr.mxu0 0.0
  %1616 = vmatpush1.msra.mxu0 %v1347
  %1617 = vmatprep.subr.mxu0 0.0
  %1618 = vmatpush1.msra.mxu0 %v1348
  %1619 = vmatprep.subr.mxu0 0.0
  %1620 = vmatpush1.msra.mxu0 %v1349
  %1621 = vmatprep.subr.mxu0 0.0
  %1622 = vmatpush1.msra.mxu0 %v1350
  %1623 = vmatprep.subr.mxu0 0.0
  %1624 = vmatpush1.msra.mxu0 %v1351
  %1625 = vmatprep.subr.mxu0 0.0
  %1626 = vmatpush1.msra.mxu0 %v1352
  %1627 = vmatprep.subr.mxu0 0.0
  %1628 = vmatpush1.msra.mxu0 %v1353
  %1629 = vmatprep.subr.mxu0 0.0
  %1630 = vmatpush1.msra.mxu0 %v1354
  %1631 = vmatprep.subr.mxu0 0.0
  %1632 = vmatpush1.msra.mxu0 %v1355
  %1633 = vmatprep.subr.mxu0 0.0
  %1634 = vmatpush1.msra.mxu0 %v1356
  %1635 = vmatprep.subr.mxu0 0.0
  %1636 = vmatpush1.msra.mxu0 %v1357
  %1637 = vmatprep.subr.mxu0 0.0
  %1638 = vmatpush1.msra.mxu0 %v1358
  %1639 = vmatprep.subr.mxu0 0.0
  %1640 = vmatpush1.msra.mxu0 %v1359
  %1641 = vmatprep.subr.mxu0 0.0
  %1642 = vmatpush1.msra.mxu0 %v1360
  %1643 = vmatprep.subr.mxu0 0.0
  %1644 = vmatpush1.msra.mxu0 %v1361
  %1645 = vmatprep.subr.mxu0 0.0
  %1646 = vmatpush1.msra.mxu0 %v1362
  %1647 = vmatprep.subr.mxu0 0.0
  %1648 = vmatpush1.msra.mxu0 %v1363
  %1649 = vmatprep.subr.mxu0 0.0
  %1650 = vmatpush1.msra.mxu0 %v1364
  %1651 = vmatprep.subr.mxu0 0.0
  %1652 = vmatpush1.msra.mxu0 %v1365
  %1653 = vmatprep.subr.mxu0 0.0
  %1654 = vmatpush1.msra.mxu0 %v1366
  %1655 = vmatprep.subr.mxu0 0.0
  %1656 = vmatpush1.msra.mxu0 %v1367
  %1657 = vmatprep.subr.mxu0 0.0
  %1658 = vmatpush1.msra.mxu0 %v1368
  %1659 = vmatprep.subr.mxu0 0.0
  %1660 = vmatpush1.msra.mxu0 %v1369
  %1661 = vmatprep.subr.mxu0 0.0
  %1662 = vmatpush1.msra.mxu0 %v1370
  %1663 = vmatprep.subr.mxu0 0.0
  %1664 = vmatpush1.msra.mxu0 %v1371
  %1665 = vmatprep.subr.mxu0 0.0
  %1666 = vmatpush1.msra.mxu0 %v1372
  %1667 = vmatprep.mubr.f32.mxu0 %v1204
  %1668 = vmatmul.mubr.f32.gmra.mrb[0].mxu0 %v1203
  %v1669 = vpop.f32.mrb[0].mxu0
  %v1670 = vadd.f32 0.0, %v1669
  %v1671 = vpop.f32.mrb[0].mxu0
  %1672 = vdwg.mxu0
  %1673 = vmatprep.subr.mxu0 0.0
  %1674 = vmatpush1.msra.mxu0 %v1373
  %1675 = vmatprep.subr.mxu0 0.0
  %1676 = vmatpush1.msra.mxu0 %v1374
  %1677 = vmatprep.subr.mxu0 0.0
  %1678 = vmatpush1.msra.mxu0 %v1375
  %1679 = vmatprep.subr.mxu0 0.0
  %1680 = vmatpush1.msra.mxu0 %v1376
  %1681 = vmatprep.subr.mxu0 0.0
  %1682 = vmatpush1.msra.mxu0 %v1377
  %1683 = vmatprep.subr.mxu0 0.0
  %1684 = vmatpush1.msra.mxu0 %v1378
  %1685 = vmatprep.subr.mxu0 0.0
  %1686 = vmatpush1.msra.mxu0 %v1379
  %1687 = vmatprep.subr.mxu0 0.0
  %1688 = vmatpush1.msra.mxu0 %v1380
  %1689 = vmatprep.subr.mxu0 0.0
  %1690 = vmatpush1.msra.mxu0 %v1381
  %1691 = vmatprep.subr.mxu0 0.0
  %1692 = vmatpush1.msra.mxu0 %v1382
  %1693 = vmatprep.subr.mxu0 0.0
  %1694 = vmatpush1.msra.mxu0 %v1383
  %1695 = vmatprep.subr.mxu0 0.0
  %1696 = vmatpush1.msra.mxu0 %v1384
  %1697 = vmatprep.subr.mxu0 0.0
  %1698 = vmatpush1.msra.mxu0 %v1385
  %1699 = vmatprep.subr.mxu0 0.0
  %1700 = vmatpush1.msra.mxu0 %v1386
  %1701 = vmatprep.subr.mxu0 0.0
  %1702 = vmatpush1.msra.mxu0 %v1387
  %1703 = vmatprep.subr.mxu0 0.0
  %1704 = vmatpush1.msra.mxu0 %v1388
  %1705 = vmatprep.subr.mxu0 0.0
  %1706 = vmatpush1.msra.mxu0 %v1389
  %1707 = vmatprep.subr.mxu0 0.0
  %1708 = vmatpush1.msra.mxu0 %v1390
  %1709 = vmatprep.subr.mxu0 0.0
  %1710 = vmatpush1.msra.mxu0 %v1391
  %1711 = vmatprep.subr.mxu0 0.0
  %1712 = vmatpush1.msra.mxu0 %v1392
  %1713 = vmatprep.subr.mxu0 0.0
  %1714 = vmatpush1.msra.mxu0 %v1393
  %1715 = vmatprep.subr.mxu0 0.0
  %1716 = vmatpush1.msra.mxu0 %v1394
  %1717 = vmatprep.subr.mxu0 0.0
  %1718 = vmatpush1.msra.mxu0 %v1395
  %1719 = vmatprep.subr.mxu0 0.0
  %1720 = vmatpush1.msra.mxu0 %v1396
  %1721 = vmatprep.subr.mxu0 0.0
  %1722 = vmatpush1.msra.mxu0 %v1397
  %1723 = vmatprep.subr.mxu0 0.0
  %1724 = vmatpush1.msra.mxu0 %v1398
  %1725 = vmatprep.subr.mxu0 0.0
  %1726 = vmatpush1.msra.mxu0 %v1399
  %1727 = vmatprep.subr.mxu0 0.0
  %1728 = vmatpush1.msra.mxu0 %v1400
  %1729 = vmatprep.subr.mxu0 0.0
  %1730 = vmatpush1.msra.mxu0 %v1401
  %1731 = vmatprep.subr.mxu0 0.0
  %1732 = vmatpush1.msra.mxu0 %v1402
  %1733 = vmatprep.subr.mxu0 0.0
  %1734 = vmatpush1.msra.mxu0 %v1403
  %1735 = vmatprep.subr.mxu0 0.0
  %1736 = vmatpush1.msra.mxu0 %v1404
  %1737 = vmatprep.mubr.f32.mxu0 %v1286
  %1738 = vmatmul.mubr.f32.gmra.mrb[0].mxu0 %v1205
  %v1739 = vpop.f32.mrb[0].mxu0
  %v1740 = vadd.f32 %v1670, %v1739
  %v1741 = vpop.f32.mrb[0].mxu0
  %1742 = vdwg.mxu0
  %1743 = vmatprep.subr.mxu0 0.0
  %1744 = vmatpush1.msra.mxu0 %v1405
  %1745 = vmatprep.subr.mxu0 0.0
  %1746 = vmatpush1.msra.mxu0 %v1406
  %1747 = vmatprep.subr.mxu0 0.0
  %1748 = vmatpush1.msra.mxu0 %v1407
  %1749 = vmatprep.subr.mxu0 0.0
  %1750 = vmatpush1.msra.mxu0 %v1408
  %1751 = vmatprep.subr.mxu0 0.0
  %1752 = vmatpush1.msra.mxu0 %v1409
  %1753 = vmatprep.subr.mxu0 0.0
  %1754 = vmatpush1.msra.mxu0 %v1410
  %1755 = vmatprep.subr.mxu0 0.0
  %1756 = vmatpush1.msra.mxu0 %v1411
  %1757 = vmatprep.subr.mxu0 0.0
  %1758 = vmatpush1.msra.mxu0 %v1412
  %1759 = vmatprep.subr.mxu0 0.0
  %1760 = vmatpush1.msra.mxu0 %v1413
  %1761 = vmatprep.subr.mxu0 0.0
  %1762 = vmatpush1.msra.mxu0 %v1414
  %1763 = vmatprep.subr.mxu0 0.0
  %1764 = vmatpush1.msra.mxu0 %v1415
  %1765 = vmatprep.subr.mxu0 0.0
  %1766 = vmatpush1.msra.mxu0 %v1416
  %1767 = vmatprep.subr.mxu0 0.0
  %1768 = vmatpush1.msra.mxu0 %v1417
  %1769 = vmatprep.subr.mxu0 0.0
  %1770 = vmatpush1.msra.mxu0 %v1418
  %1771 = vmatprep.subr.mxu0 0.0
  %1772 = vmatpush1.msra.mxu0 %v1419
  %1773 = vmatprep.subr.mxu0 0.0
  %1774 = vmatpush1.msra.mxu0 %v1420
  %1775 = vmatprep.subr.mxu0 0.0
  %1776 = vmatpush1.msra.mxu0 %v1421
  %1777 = vmatprep.subr.mxu0 0.0
  %1778 = vmatpush1.msra.mxu0 %v1422
  %1779 = vmatprep.subr.mxu0 0.0
  %1780 = vmatpush1.msra.mxu0 %v1423
  %1781 = vmatprep.subr.mxu0 0.0
  %1782 = vmatpush1.msra.mxu0 %v1424
  %1783 = vmatprep.subr.mxu0 0.0
  %1784 = vmatpush1.msra.mxu0 %v1425
  %1785 = vmatprep.subr.mxu0 0.0
  %1786 = vmatpush1.msra.mxu0 %v1426
  %1787 = vmatprep.subr.mxu0 0.0
  %1788 = vmatpush1.msra.mxu0 %v1427
  %1789 = vmatprep.subr.mxu0 0.0
  %1790 = vmatpush1.msra.mxu0 %v1428
  %1791 = vmatprep.subr.mxu0 0.0
  %1792 = vmatpush1.msra.mxu0 %v1429
  %1793 = vmatprep.subr.mxu0 0.0
  %1794 = vmatpush1.msra.mxu0 %v1430
  %1795 = vmatprep.subr.mxu0 0.0
  %1796 = vmatpush1.msra.mxu0 %v1431
  %1797 = vmatprep.subr.mxu0 0.0
  %1798 = vmatpush1.msra.mxu0 %v1432
  %1799 = vmatprep.subr.mxu0 0.0
  %1800 = vmatpush1.msra.mxu0 %v1433
  %1801 = vmatprep.subr.mxu0 0.0
  %1802 = vmatpush1.msra.mxu0 %v1434
  %1803 = vmatprep.subr.mxu0 0.0
  %1804 = vmatpush1.msra.mxu0 %v1435
  %1805 = vmatprep.subr.mxu0 0.0
  %1806 = vmatpush1.msra.mxu0 %v1436
  %1807 = vmatprep.mubr.f32.mxu0 %v1241
  %1808 = vmatmul.mubr.f32.gmra.mrb[0].mxu0 %v1240
  %v1809 = vpop.f32.mrb[0].mxu0
  %v1810 = vadd.f32 %v1740, %v1809
  %v1811 = vpop.f32.mrb[0].mxu0
  %1812 = vdwg.mxu0
  %1813 = vmatprep.subr.mxu0 0.0
  %1814 = vmatpush1.msra.mxu0 %v1437
  %1815 = vmatprep.subr.mxu0 0.0
  %1816 = vmatpush1.msra.mxu0 %v1438
  %1817 = vmatprep.subr.mxu0 0.0
  %1818 = vmatpush1.msra.mxu0 %v1439
  %1819 = vmatprep.subr.mxu0 0.0
  %1820 = vmatpush1.msra.mxu0 %v1440
  %1821 = vmatprep.subr.mxu0 0.0
  %1822 = vmatpush1.msra.mxu0 %v1441
  %1823 = vmatprep.subr.mxu0 0.0
  %1824 = vmatpush1.msra.mxu0 %v1442
  %1825 = vmatprep.subr.mxu0 0.0
  %1826 = vmatpush1.msra.mxu0 %v1443
  %1827 = vmatprep.subr.mxu0 0.0
  %1828 = vmatpush1.msra.mxu0 %v1444
  %1829 = vmatprep.subr.mxu0 0.0
  %1830 = vmatpush1.msra.mxu0 %v1445
  %1831 = vmatprep.subr.mxu0 0.0
  %1832 = vmatpush1.msra.mxu0 %v1446
  %1833 = vmatprep.subr.mxu0 0.0
  %1834 = vmatpush1.msra.mxu0 %v1447
  %1835 = vmatprep.subr.mxu0 0.0
  %1836 = vmatpush1.msra.mxu0 %v1448
  %1837 = vmatprep.subr.mxu0 0.0
  %1838 = vmatpush1.msra.mxu0 %v1449
  %1839 = vmatprep.subr.mxu0 0.0
  %1840 = vmatpush1.msra.mxu0 %v1450
  %1841 = vmatprep.subr.mxu0 0.0
  %1842 = vmatpush1.msra.mxu0 %v1451
  %1843 = vmatprep.subr.mxu0 0.0
  %1844 = vmatpush1.msra.mxu0 %v1452
  %1845 = vmatprep.subr.mxu0 0.0
  %1846 = vmatpush1.msra.mxu0 %v1453
  %1847 = vmatprep.subr.mxu0 0.0
  %1848 = vmatpush1.msra.mxu0 %v1454
  %1849 = vmatprep.subr.mxu0 0.0
  %1850 = vmatpush1.msra.mxu0 %v1455
  %1851 = vmatprep.subr.mxu0 0.0
  %1852 = vmatpush1.msra.mxu0 %v1456
  %1853 = vmatprep.subr.mxu0 0.0
  %1854 = vmatpush1.msra.mxu0 %v1457
  %1855 = vmatprep.subr.mxu0 0.0
  %1856 = vmatpush1.msra.mxu0 %v1458
  %1857 = vmatprep.subr.mxu0 0.0
  %1858 = vmatpush1.msra.mxu0 %v1459
  %1859 = vmatprep.subr.mxu0 0.0
  %1860 = vmatpush1.msra.mxu0 %v1460
  %1861 = vmatprep.subr.mxu0 0.0
  %1862 = vmatpush1.msra.mxu0 %v1461
  %1863 = vmatprep.subr.mxu0 0.0
  %1864 = vmatpush1.msra.mxu0 %v1462
  %1865 = vmatprep.subr.mxu0 0.0
  %1866 = vmatpush1.msra.mxu0 %v1463
  %1867 = vmatprep.subr.mxu0 0.0
  %1868 = vmatpush1.msra.mxu0 %v1464
  %1869 = vmatprep.subr.mxu0 0.0
  %1870 = vmatpush1.msra.mxu0 %v1465
  %1871 = vmatprep.subr.mxu0 0.0
  %1872 = vmatpush1.msra.mxu0 %v1466
  %1873 = vmatprep.subr.mxu0 0.0
  %1874 = vmatpush1.msra.mxu0 %v1467
  %1875 = vmatprep.subr.mxu0 0.0
  %1876 = vmatpush1.msra.mxu0 %v1468
  %1877 = vmatprep.mubr.f32.mxu0 %v1260
  %1878 = vmatmul.mubr.f32.gmra.mrb[0].mxu0 %v1287
  %v1879 = vpop.f32.mrb[0].mxu0
  %v1880 = vadd.f32 %v1810, %v1879
  %v1881 = vpop.f32.mrb[0].mxu0
  %1882 = vdwg.mxu0
  %1883 = vmatprep.subr.mxu0 0.0
  %1884 = vmatpush1.msra.mxu0 %v1469
  %1885 = vmatprep.subr.mxu0 0.0
  %1886 = vmatpush1.msra.mxu0 %v1470
  %1887 = vmatprep.subr.mxu0 0.0
  %1888 = vmatpush1.msra.mxu0 %v1471
  %1889 = vmatprep.subr.mxu0 0.0
  %1890 = vmatpush1.msra.mxu0 %v1472
  %1891 = vmatprep.subr.mxu0 0.0
  %1892 = vmatpush1.msra.mxu0 %v1473
  %1893 = vmatprep.subr.mxu0 0.0
  %1894 = vmatpush1.msra.mxu0 %v1474
  %1895 = vmatprep.subr.mxu0 0.0
  %1896 = vmatpush1.msra.mxu0 %v1475
  %1897 = vmatprep.subr.mxu0 0.0
  %1898 = vmatpush1.msra.mxu0 %v1476
  %1899 = vmatprep.subr.mxu0 0.0
  %1900 = vmatpush1.msra.mxu0 %v1477
  %1901 = vmatprep.subr.mxu0 0.0
  %1902 = vmatpush1.msra.mxu0 %v1478
  %1903 = vmatprep.subr.mxu0 0.0
  %1904 = vmatpush1.msra.mxu0 %v1479
  %1905 = vmatprep.subr.mxu0 0.0
  %1906 = vmatpush1.msra.mxu0 %v1480
  %1907 = vmatprep.subr.mxu0 0.0
  %1908 = vmatpush1.msra.mxu0 %v1481
  %1909 = vmatprep.subr.mxu0 0.0
  %1910 = vmatpush1.msra.mxu0 %v1482
  %1911 = vmatprep.subr.mxu0 0.0
  %1912 = vmatpush1.msra.mxu0 %v1483
  %1913 = vmatprep.subr.mxu0 0.0
  %1914 = vmatpush1.msra.mxu0 %v1484
  %1915 = vmatprep.subr.mxu0 0.0
  %1916 = vmatpush1.msra.mxu0 %v1485
  %1917 = vmatprep.subr.mxu0 0.0
  %1918 = vmatpush1.msra.mxu0 %v1486
  %1919 = vmatprep.subr.mxu0 0.0
  %1920 = vmatpush1.msra.mxu0 %v1487
  %1921 = vmatprep.subr.mxu0 0.0
  %1922 = vmatpush1.msra.mxu0 %v1488
  %1923 = vmatprep.subr.mxu0 0.0
  %1924 = vmatpush1.msra.mxu0 %v1489
  %1925 = vmatprep.subr.mxu0 0.0
  %1926 = vmatpush1.msra.mxu0 %v1490
  %1927 = vmatprep.subr.mxu0 0.0
  %1928 = vmatpush1.msra.mxu0 %v1491
  %1929 = vmatprep.subr.mxu0 0.0
  %1930 = vmatpush1.msra.mxu0 %v1492
  %1931 = vmatprep.subr.mxu0 0.0
  %1932 = vmatpush1.msra.mxu0 %v1493
  %1933 = vmatprep.subr.mxu0 0.0
  %1934 = vmatpush1.msra.mxu0 %v1494
  %1935 = vmatprep.subr.mxu0 0.0
  %1936 = vmatpush1.msra.mxu0 %v1495
  %1937 = vmatprep.subr.mxu0 0.0
  %1938 = vmatpush1.msra.mxu0 %v1496
  %1939 = vmatprep.subr.mxu0 0.0
  %1940 = vmatpush1.msra.mxu0 %v1497
  %1941 = vmatprep.subr.mxu0 0.0
  %1942 = vmatpush1.msra.mxu0 %v1498
  %1943 = vmatprep.subr.mxu0 0.0
  %1944 = vmatpush1.msra.mxu0 %v1499
  %1945 = vmatprep.subr.mxu0 0.0
  %1946 = vmatpush1.msra.mxu0 %v1500
  %1947 = vmatprep.mubr.f32.mxu0 %v1288
  %1948 = vmatmul.mubr.f32.gmra.mrb[0].mxu0 %v1261
  %v1949 = vpop.f32.mrb[0].mxu0
  %v1950 = vadd.f32 %v1880, %v1949
  %v1951 = vpop.f32.mrb[0].mxu0
  %1952 = vdwg.mxu0
  %1953 = vmatprep.subr.mxu0 0.0
  %1954 = vmatpush1.msra.mxu0 %v1501
  %1955 = vmatprep.subr.mxu0 0.0
  %1956 = vmatpush1.msra.mxu0 %v1502
  %1957 = vmatprep.subr.mxu0 0.0
  %1958 = vmatpush1.msra.mxu0 %v1503
  %1959 = vmatprep.subr.mxu0 0.0
  %1960 = vmatpush1.msra.mxu0 %v1504
  %1961 = vmatprep.subr.mxu0 0.0
  %1962 = vmatpush1.msra.mxu0 %v1505
  %1963 = vmatprep.subr.mxu0 0.0
  %1964 = vmatpush1.msra.mxu0 %v1506
  %1965 = vmatprep.subr.mxu0 0.0
  %1966 = vmatpush1.msra.mxu0 %v1507
  %1967 = vmatprep.subr.mxu0 0.0
  %1968 = vmatpush1.msra.mxu0 %v1508
  %1969 = vmatprep.subr.mxu0 0.0
  %1970 = vmatpush1.msra.mxu0 %v1509
  %1971 = vmatprep.subr.mxu0 0.0
  %1972 = vmatpush1.msra.mxu0 %v1510
  %1973 = vmatprep.subr.mxu0 0.0
  %1974 = vmatpush1.msra.mxu0 %v1511
  %1975 = vmatprep.subr.mxu0 0.0
  %1976 = vmatpush1.msra.mxu0 %v1512
  %1977 = vmatprep.subr.mxu0 0.0
  %1978 = vmatpush1.msra.mxu0 %v1513
  %1979 = vmatprep.subr.mxu0 0.0
  %1980 = vmatpush1.msra.mxu0 %v1514
  %1981 = vmatprep.subr.mxu0 0.0
  %1982 = vmatpush1.msra.mxu0 %v1515
  %1983 = vmatprep.subr.mxu0 0.0
  %1984 = vmatpush1.msra.mxu0 %v1516
  %1985 = vmatprep.subr.mxu0 0.0
  %1986 = vmatpush1.msra.mxu0 %v1517
  %1987 = vmatprep.subr.mxu0 0.0
  %1988 = vmatpush1.msra.mxu0 %v1518
  %1989 = vmatprep.subr.mxu0 0.0
  %1990 = vmatpush1.msra.mxu0 %v1519
  %1991 = vmatprep.subr.mxu0 0.0
  %1992 = vmatpush1.msra.mxu0 %v1520
  %1993 = vmatprep.subr.mxu0 0.0
  %1994 = vmatpush1.msra.mxu0 %v1521
  %1995 = vmatprep.subr.mxu0 0.0
  %1996 = vmatpush1.msra.mxu0 %v1522
  %1997 = vmatprep.subr.mxu0 0.0
  %1998 = vmatpush1.msra.mxu0 %v1523
  %1999 = vmatprep.subr.mxu0 0.0
  %2000 = vmatpush1.msra.mxu0 %v1524
  %2001 = vmatprep.subr.mxu0 0.0
  %2002 = vmatpush1.msra.mxu0 %v1525
  %2003 = vmatprep.subr.mxu0 0.0
  %2004 = vmatpush1.msra.mxu0 %v1526
  %2005 = vmatprep.subr.mxu0 0.0
  %2006 = vmatpush1.msra.mxu0 %v1527
  %2007 = vmatprep.subr.mxu0 0.0
  %2008 = vmatpush1.msra.mxu0 %v1528
  %2009 = vmatprep.subr.mxu0 0.0
  %2010 = vmatpush1.msra.mxu0 %v1529
  %2011 = vmatprep.subr.mxu0 0.0
  %2012 = vmatpush1.msra.mxu0 %v1530
  %2013 = vmatprep.subr.mxu0 0.0
  %2014 = vmatpush1.msra.mxu0 %v1531
  %2015 = vmatprep.subr.mxu0 0.0
  %2016 = vmatpush1.msra.mxu0 %v1532
  %2017 = vmatprep.mubr.f32.mxu0 %v1280
  %2018 = vmatmul.mubr.f32.gmra.mrb[0].mxu0 %v1279
  %v2019 = vpop.f32.mrb[0].mxu0
  %v2020 = vadd.f32 %v1950, %v2019
  %v2021 = vpop.f32.mrb[0].mxu0
  %2022 = vdwg.mxu0
  %2023 = vmatprep.subr.mxu0 0.0
  %2024 = vmatpush1.msra.mxu0 %v1533
  %2025 = vmatprep.subr.mxu0 0.0
  %2026 = vmatpush1.msra.mxu0 %v1534
  %2027 = vmatprep.subr.mxu0 0.0
  %2028 = vmatpush1.msra.mxu0 %v1535
  %2029 = vmatprep.subr.mxu0 0.0
  %2030 = vmatpush1.msra.mxu0 %v1536
  %2031 = vmatprep.subr.mxu0 0.0
  %2032 = vmatpush1.msra.mxu0 %v1537
  %2033 = vmatprep.subr.mxu0 0.0
  %2034 = vmatpush1.msra.mxu0 %v1538
  %2035 = vmatprep.subr.mxu0 0.0
  %2036 = vmatpush1.msra.mxu0 %v1539
  %2037 = vmatprep.subr.mxu0 0.0
  %2038 = vmatpush1.msra.mxu0 %v1540
  %2039 = vmatprep.subr.mxu0 0.0
  %2040 = vmatpush1.msra.mxu0 %v1541
  %2041 = vmatprep.subr.mxu0 0.0
  %2042 = vmatpush1.msra.mxu0 %v1542
  %2043 = vmatprep.subr.mxu0 0.0
  %2044 = vmatpush1.msra.mxu0 %v1543
  %2045 = vmatprep.subr.mxu0 0.0
  %2046 = vmatpush1.msra.mxu0 %v1544
  %2047 = vmatprep.subr.mxu0 0.0
  %2048 = vmatpush1.msra.mxu0 %v1545
  %2049 = vmatprep.subr.mxu0 0.0
  %2050 = vmatpush1.msra.mxu0 %v1546
  %2051 = vmatprep.subr.mxu0 0.0
  %2052 = vmatpush1.msra.mxu0 %v1547
  %2053 = vmatprep.subr.mxu0 0.0
  %2054 = vmatpush1.msra.mxu0 %v1548
  %2055 = vmatprep.subr.mxu0 0.0
  %2056 = vmatpush1.msra.mxu0 %v1549
  %2057 = vmatprep.subr.mxu0 0.0
  %2058 = vmatpush1.msra.mxu0 %v1550
  %2059 = vmatprep.subr.mxu0 0.0
  %2060 = vmatpush1.msra.mxu0 %v1551
  %2061 = vmatprep.subr.mxu0 0.0
  %2062 = vmatpush1.msra.mxu0 %v1552
  %2063 = vmatprep.subr.mxu0 0.0
  %2064 = vmatpush1.msra.mxu0 %v1553
  %2065 = vmatprep.subr.mxu0 0.0
  %2066 = vmatpush1.msra.mxu0 %v1554
  %2067 = vmatprep.subr.mxu0 0.0
  %2068 = vmatpush1.msra.mxu0 %v1555
  %2069 = vmatprep.subr.mxu0 0.0
  %2070 = vmatpush1.msra.mxu0 %v1556
  %2071 = vmatprep.subr.mxu0 0.0
  %2072 = vmatpush1.msra.mxu0 %v1557
  %2073 = vmatprep.subr.mxu0 0.0
  %2074 = vmatpush1.msra.mxu0 %v1558
  %2075 = vmatprep.subr.mxu0 0.0
  %2076 = vmatpush1.msra.mxu0 %v1559
  %2077 = vmatprep.subr.mxu0 0.0
  %2078 = vmatpush1.msra.mxu0 %v1560
  %2079 = vmatprep.subr.mxu0 0.0
  %2080 = vmatpush1.msra.mxu0 %v1561
  %2081 = vmatprep.subr.mxu0 0.0
  %2082 = vmatpush1.msra.mxu0 %v1562
  %2083 = vmatprep.subr.mxu0 0.0
  %2084 = vmatpush1.msra.mxu0 %v1563
  %2085 = vmatprep.subr.mxu0 0.0
  %2086 = vmatpush1.msra.mxu0 %v1564
  %2087 = vmatprep.mubr.f32.mxu0 %v1219
  %2088 = vmatmul.mubr.f32.gmra.mrb[0].mxu0 %v1281
  %v2089 = vpop.f32.mrb[0].mxu0
  %v2090 = vadd.f32 %v2020, %v2089
  %v2091 = vpop.f32.mrb[0].mxu0
  %2092 = vdwg.mxu0
  %2093 = vmatprep.subr.mxu0 0.0
  %2094 = vmatpush1.msra.mxu0 %v1565
  %2095 = vmatprep.subr.mxu0 0.0
  %2096 = vmatpush1.msra.mxu0 %v1566
  %2097 = vmatprep.subr.mxu0 0.0
  %2098 = vmatpush1.msra.mxu0 %v1567
  %2099 = vmatprep.subr.mxu0 0.0
  %2100 = vmatpush1.msra.mxu0 %v1568
  %2101 = vmatprep.subr.mxu0 0.0
  %2102 = vmatpush1.msra.mxu0 %v1569
  %2103 = vmatprep.subr.mxu0 0.0
  %2104 = vmatpush1.msra.mxu0 %v1570
  %2105 = vmatprep.subr.mxu0 0.0
  %2106 = vmatpush1.msra.mxu0 %v1571
  %2107 = vmatprep.subr.mxu0 0.0
  %2108 = vmatpush1.msra.mxu0 %v1572
  %2109 = vmatprep.subr.mxu0 0.0
  %2110 = vmatpush1.msra.mxu0 %v1573
  %2111 = vmatprep.subr.mxu0 0.0
  %2112 = vmatpush1.msra.mxu0 %v1574
  %2113 = vmatprep.subr.mxu0 0.0
  %2114 = vmatpush1.msra.mxu0 %v1575
  %2115 = vmatprep.subr.mxu0 0.0
  %2116 = vmatpush1.msra.mxu0 %v1576
  %2117 = vmatprep.subr.mxu0 0.0
  %2118 = vmatpush1.msra.mxu0 %v1577
  %2119 = vmatprep.subr.mxu0 0.0
  %2120 = vmatpush1.msra.mxu0 %v1578
  %2121 = vmatprep.subr.mxu0 0.0
  %2122 = vmatpush1.msra.mxu0 %v1579
  %2123 = vmatprep.subr.mxu0 0.0
  %2124 = vmatpush1.msra.mxu0 %v1580
  %2125 = vmatprep.subr.mxu0 0.0
  %2126 = vmatpush1.msra.mxu0 %v1581
  %2127 = vmatprep.subr.mxu0 0.0
  %2128 = vmatpush1.msra.mxu0 %v1582
  %2129 = vmatprep.subr.mxu0 0.0
  %2130 = vmatpush1.msra.mxu0 %v1583
  %2131 = vmatprep.subr.mxu0 0.0
  %2132 = vmatpush1.msra.mxu0 %v1584
  %2133 = vmatprep.subr.mxu0 0.0
  %2134 = vmatpush1.msra.mxu0 %v1585
  %2135 = vmatprep.subr.mxu0 0.0
  %2136 = vmatpush1.msra.mxu0 %v1586
  %2137 = vmatprep.subr.mxu0 0.0
  %2138 = vmatpush1.msra.mxu0 %v1587
  %2139 = vmatprep.subr.mxu0 0.0
  %2140 = vmatpush1.msra.mxu0 %v1588
  %2141 = vmatprep.subr.mxu0 0.0
  %2142 = vmatpush1.msra.mxu0 %v1589
  %2143 = vmatprep.subr.mxu0 0.0
  %2144 = vmatpush1.msra.mxu0 %v1590
  %2145 = vmatprep.subr.mxu0 0.0
  %2146 = vmatpush1.msra.mxu0 %v1591
  %2147 = vmatprep.subr.mxu0 0.0
  %2148 = vmatpush1.msra.mxu0 %v1592
  %2149 = vmatprep.subr.mxu0 0.0
  %2150 = vmatpush1.msra.mxu0 %v1593
  %2151 = vmatprep.subr.mxu0 0.0
  %2152 = vmatpush1.msra.mxu0 %v1594
  %2153 = vmatprep.subr.mxu0 0.0
  %2154 = vmatpush1.msra.mxu0 %v1595
  %2155 = vmatprep.subr.mxu0 0.0
  %2156 = vmatpush1.msra.mxu0 %v1596
  %2157 = vmatprep.mubr.f32.mxu0 %v1221
  %2158 = vmatmul.mubr.f32.gmra.mrb[0].mxu0 %v1220
  %v2159 = vpop.f32.mrb[0].mxu0
  %v2160 = vadd.f32 %v2090, %v2159
  %v2161 = vpop.f32.mrb[0].mxu0
  %2162 = vdwg.mxu0
  %2163 = vmatprep.subr.mxu0 0.0
  %2164 = vmatpush1.msra.mxu0 %v1597
  %2165 = vmatprep.subr.mxu0 0.0
  %2166 = vmatpush1.msra.mxu0 %v1598
  %2167 = vmatprep.subr.mxu0 0.0
  %2168 = vmatpush1.msra.mxu0 %v1599
  %2169 = vmatprep.subr.mxu0 0.0
  %2170 = vmatpush1.msra.mxu0 %v1600
  %2171 = vmatprep.subr.mxu0 0.0
  %2172 = vmatpush1.msra.mxu0 0.0
  %2173 = vmatprep.subr.mxu0 0.0
  %2174 = vmatpush1.msra.mxu0 0.0
  %2175 = vmatprep.subr.mxu0 0.0
  %2176 = vmatpush1.msra.mxu0 0.0
  %2177 = vmatprep.subr.mxu0 0.0
  %2178 = vmatpush1.msra.mxu0 0.0
  %2179 = vmatprep.subr.mxu0 0.0
  %2180 = vmatpush1.msra.mxu0 0.0
  %2181 = vmatprep.subr.mxu0 0.0
  %2182 = vmatpush1.msra.mxu0 0.0
  %2183 = vmatprep.subr.mxu0 0.0
  %2184 = vmatpush1.msra.mxu0 0.0
  %2185 = vmatprep.subr.mxu0 0.0
  %2186 = vmatpush1.msra.mxu0 0.0
  %2187 = vmatprep.subr.mxu0 0.0
  %2188 = vmatpush1.msra.mxu0 0.0
  %2189 = vmatprep.subr.mxu0 0.0
  %2190 = vmatpush1.msra.mxu0 0.0
  %2191 = vmatprep.subr.mxu0 0.0
  %2192 = vmatpush1.msra.mxu0 0.0
  %2193 = vmatprep.subr.mxu0 0.0
  %2194 = vmatpush1.msra.mxu0 0.0
  %2195 = vmatprep.subr.mxu0 0.0
  %2196 = vmatpush1.msra.mxu0 0.0
  %2197 = vmatprep.subr.mxu0 0.0
  %2198 = vmatpush1.msra.mxu0 0.0
  %2199 = vmatprep.subr.mxu0 0.0
  %2200 = vmatpush1.msra.mxu0 0.0
  %2201 = vmatprep.subr.mxu0 0.0
  %2202 = vmatpush1.msra.mxu0 0.0
  %2203 = vmatprep.subr.mxu0 0.0
  %2204 = vmatpush1.msra.mxu0 0.0
  %2205 = vmatprep.subr.mxu0 0.0
  %2206 = vmatpush1.msra.mxu0 0.0
  %2207 = vmatprep.subr.mxu0 0.0
  %2208 = vmatpush1.msra.mxu0 0.0
  %2209 = vmatprep.subr.mxu0 0.0
  %2210 = vmatpush1.msra.mxu0 0.0
  %2211 = vmatprep.subr.mxu0 0.0
  %2212 = vmatpush1.msra.mxu0 0.0
  %2213 = vmatprep.subr.mxu0 0.0
  %2214 = vmatpush1.msra.mxu0 0.0
  %2215 = vmatprep.subr.mxu0 0.0
  %2216 = vmatpush1.msra.mxu0 0.0
  %2217 = vmatprep.subr.mxu0 0.0
  %2218 = vmatpush1.msra.mxu0 0.0
  %2219 = vmatprep.subr.mxu0 0.0
  %2220 = vmatpush1.msra.mxu0 0.0
  %2221 = vmatprep.subr.mxu0 0.0
  %2222 = vmatpush1.msra.mxu0 0.0
  %2223 = vmatprep.subr.mxu0 0.0
  %2224 = vmatpush1.msra.mxu0 0.0
  %2225 = vmatprep.subr.mxu0 0.0
  %2226 = vmatpush1.msra.mxu0 0.0
  %2227 = vmatprep.mubr.f32.mxu0 0.0
  %2228 = vmatmul.mubr.f32.gmra.mrb[0].mxu0 %v1601
  %v2229 = vpop.f32.mrb[0].mxu0
  %v2230 = vadd.f32 %v2160, %v2229
  %v2231 = vpop.f32.mrb[0].mxu0
  %2232 = vdwg.mxu0
  %v2234 = vsel %vm1239, %v1226, 0
  %2236 = vmatprep.subr.mxu0 0.0
  %2237 = vmatpush1.msra.mxu0 %v1341
  %2238 = vmatprep.subr.mxu0 0.0
  %2239 = vmatpush1.msra.mxu0 %v1342
  %2240 = vmatprep.subr.mxu0 0.0
  %2241 = vmatpush1.msra.mxu0 %v1343
  %2242 = vmatprep.subr.mxu0 0.0
  %2243 = vmatpush1.msra.mxu0 %v1344
  %2244 = vmatprep.subr.mxu0 0.0
  %2245 = vmatpush1.msra.mxu0 %v1345
  %2246 = vmatprep.subr.mxu0 0.0
  %2247 = vmatpush1.msra.mxu0 %v1346
  %2248 = vmatprep.subr.mxu0 0.0
  %2249 = vmatpush1.msra.mxu0 %v1347
  %2250 = vmatprep.subr.mxu0 0.0
  %2251 = vmatpush1.msra.mxu0 %v1348
  %2252 = vmatprep.subr.mxu0 0.0
  %2253 = vmatpush1.msra.mxu0 %v1349
  %2254 = vmatprep.subr.mxu0 0.0
  %2255 = vmatpush1.msra.mxu0 %v1350
  %2256 = vmatprep.subr.mxu0 0.0
  %2257 = vmatpush1.msra.mxu0 %v1351
  %2258 = vmatprep.subr.mxu0 0.0
  %2259 = vmatpush1.msra.mxu0 %v1352
  %2260 = vmatprep.subr.mxu0 0.0
  %2261 = vmatpush1.msra.mxu0 %v1353
  %2262 = vmatprep.subr.mxu0 0.0
  %2263 = vmatpush1.msra.mxu0 %v1354
  %2264 = vmatprep.subr.mxu0 0.0
  %2265 = vmatpush1.msra.mxu0 %v1355
  %2266 = vmatprep.subr.mxu0 0.0
  %2267 = vmatpush1.msra.mxu0 %v1356
  %2268 = vmatprep.subr.mxu0 0.0
  %2269 = vmatpush1.msra.mxu0 %v1357
  %2270 = vmatprep.subr.mxu0 0.0
  %2271 = vmatpush1.msra.mxu0 %v1358
  %2272 = vmatprep.subr.mxu0 0.0
  %2273 = vmatpush1.msra.mxu0 %v1359
  %2274 = vmatprep.subr.mxu0 0.0
  %2275 = vmatpush1.msra.mxu0 %v1360
  %2276 = vmatprep.subr.mxu0 0.0
  %2277 = vmatpush1.msra.mxu0 %v1361
  %2278 = vmatprep.subr.mxu0 0.0
  %2279 = vmatpush1.msra.mxu0 %v1362
  %2280 = vmatprep.subr.mxu0 0.0
  %2281 = vmatpush1.msra.mxu0 %v1363
  %2282 = vmatprep.subr.mxu0 0.0
  %2283 = vmatpush1.msra.mxu0 %v1364
  %2284 = vmatprep.subr.mxu0 0.0
  %2285 = vmatpush1.msra.mxu0 %v1365
  %2286 = vmatprep.subr.mxu0 0.0
  %2287 = vmatpush1.msra.mxu0 %v1366
  %2288 = vmatprep.subr.mxu0 0.0
  %2289 = vmatpush1.msra.mxu0 %v1367
  %2290 = vmatprep.subr.mxu0 0.0
  %2291 = vmatpush1.msra.mxu0 %v1368
  %2292 = vmatprep.subr.mxu0 0.0
  %2293 = vmatpush1.msra.mxu0 %v1369
  %2294 = vmatprep.subr.mxu0 0.0
  %2295 = vmatpush1.msra.mxu0 %v1370
  %2296 = vmatprep.subr.mxu0 0.0
  %2297 = vmatpush1.msra.mxu0 %v1371
  %2298 = vmatprep.subr.mxu0 0.0
  %2299 = vmatpush1.msra.mxu0 %v1372
  %2300 = vmatprep.mubr.f32.mxu0 %v1208
  %2301 = vmatmul.mubr.f32.gmra.mrb[0].mxu0 %v1207
  %v2302 = vpop.f32.mrb[0].mxu0
  %v2303 = vadd.f32 0.0, %v2302
  %v2304 = vpop.f32.mrb[0].mxu0
  %2305 = vdwg.mxu0
  %2306 = vmatprep.subr.mxu0 0.0
  %2307 = vmatpush1.msra.mxu0 %v1373
  %2308 = vmatprep.subr.mxu0 0.0
  %2309 = vmatpush1.msra.mxu0 %v1374
  %2310 = vmatprep.subr.mxu0 0.0
  %2311 = vmatpush1.msra.mxu0 %v1375
  %2312 = vmatprep.subr.mxu0 0.0
  %2313 = vmatpush1.msra.mxu0 %v1376
  %2314 = vmatprep.subr.mxu0 0.0
  %2315 = vmatpush1.msra.mxu0 %v1377
  %2316 = vmatprep.subr.mxu0 0.0
  %2317 = vmatpush1.msra.mxu0 %v1378
  %2318 = vmatprep.subr.mxu0 0.0
  %2319 = vmatpush1.msra.mxu0 %v1379
  %2320 = vmatprep.subr.mxu0 0.0
  %2321 = vmatpush1.msra.mxu0 %v1380
  %2322 = vmatprep.subr.mxu0 0.0
  %2323 = vmatpush1.msra.mxu0 %v1381
  %2324 = vmatprep.subr.mxu0 0.0
  %2325 = vmatpush1.msra.mxu0 %v1382
  %2326 = vmatprep.subr.mxu0 0.0
  %2327 = vmatpush1.msra.mxu0 %v1383
  %2328 = vmatprep.subr.mxu0 0.0
  %2329 = vmatpush1.msra.mxu0 %v1384
  %2330 = vmatprep.subr.mxu0 0.0
  %2331 = vmatpush1.msra.mxu0 %v1385
  %2332 = vmatprep.subr.mxu0 0.0
  %2333 = vmatpush1.msra.mxu0 %v1386
  %2334 = vmatprep.subr.mxu0 0.0
  %2335 = vmatpush1.msra.mxu0 %v1387
  %2336 = vmatprep.subr.mxu0 0.0
  %2337 = vmatpush1.msra.mxu0 %v1388
  %2338 = vmatprep.subr.mxu0 0.0
  %2339 = vmatpush1.msra.mxu0 %v1389
  %2340 = vmatprep.subr.mxu0 0.0
  %2341 = vmatpush1.msra.mxu0 %v1390
  %2342 = vmatprep.subr.mxu0 0.0
  %2343 = vmatpush1.msra.mxu0 %v1391
  %2344 = vmatprep.subr.mxu0 0.0
  %2345 = vmatpush1.msra.mxu0 %v1392
  %2346 = vmatprep.subr.mxu0 0.0
  %2347 = vmatpush1.msra.mxu0 %v1393
  %2348 = vmatprep.subr.mxu0 0.0
  %2349 = vmatpush1.msra.mxu0 %v1394
  %2350 = vmatprep.subr.mxu0 0.0
  %2351 = vmatpush1.msra.mxu0 %v1395
  %2352 = vmatprep.subr.mxu0 0.0
  %2353 = vmatpush1.msra.mxu0 %v1396
  %2354 = vmatprep.subr.mxu0 0.0
  %2355 = vmatpush1.msra.mxu0 %v1397
  %2356 = vmatprep.subr.mxu0 0.0
  %2357 = vmatpush1.msra.mxu0 %v1398
  %2358 = vmatprep.subr.mxu0 0.0
  %2359 = vmatpush1.msra.mxu0 %v1399
  %2360 = vmatprep.subr.mxu0 0.0
  %2361 = vmatpush1.msra.mxu0 %v1400
  %2362 = vmatprep.subr.mxu0 0.0
  %2363 = vmatpush1.msra.mxu0 %v1401
  %2364 = vmatprep.subr.mxu0 0.0
  %2365 = vmatpush1.msra.mxu0 %v1402
  %2366 = vmatprep.subr.mxu0 0.0
  %2367 = vmatpush1.msra.mxu0 %v1403
  %2368 = vmatprep.subr.mxu0 0.0
  %2369 = vmatpush1.msra.mxu0 %v1404
  %2370 = vmatprep.mubr.f32.mxu0 %v1338
  %2371 = vmatmul.mubr.f32.gmra.mrb[0].mxu0 %v1209
  %v2372 = vpop.f32.mrb[0].mxu0
  %v2373 = vadd.f32 %v2303, %v2372
  %v2374 = vpop.f32.mrb[0].mxu0
  %2375 = vdwg.mxu0
  %2376 = vmatprep.subr.mxu0 0.0
  %2377 = vmatpush1.msra.mxu0 %v1405
  %2378 = vmatprep.subr.mxu0 0.0
  %2379 = vmatpush1.msra.mxu0 %v1406
  %2380 = vmatprep.subr.mxu0 0.0
  %2381 = vmatpush1.msra.mxu0 %v1407
  %2382 = vmatprep.subr.mxu0 0.0
  %2383 = vmatpush1.msra.mxu0 %v1408
  %2384 = vmatprep.subr.mxu0 0.0
  %2385 = vmatpush1.msra.mxu0 %v1409
  %2386 = vmatprep.subr.mxu0 0.0
  %2387 = vmatpush1.msra.mxu0 %v1410
  %2388 = vmatprep.subr.mxu0 0.0
  %2389 = vmatpush1.msra.mxu0 %v1411
  %2390 = vmatprep.subr.mxu0 0.0
  %2391 = vmatpush1.msra.mxu0 %v1412
  %2392 = vmatprep.subr.mxu0 0.0
  %2393 = vmatpush1.msra.mxu0 %v1413
  %2394 = vmatprep.subr.mxu0 0.0
  %2395 = vmatpush1.msra.mxu0 %v1414
  %2396 = vmatprep.subr.mxu0 0.0
  %2397 = vmatpush1.msra.mxu0 %v1415
  %2398 = vmatprep.subr.mxu0 0.0
  %2399 = vmatpush1.msra.mxu0 %v1416
  %2400 = vmatprep.subr.mxu0 0.0
  %2401 = vmatpush1.msra.mxu0 %v1417
  %2402 = vmatprep.subr.mxu0 0.0
  %2403 = vmatpush1.msra.mxu0 %v1418
  %2404 = vmatprep.subr.mxu0 0.0
  %2405 = vmatpush1.msra.mxu0 %v1419
  %2406 = vmatprep.subr.mxu0 0.0
  %2407 = vmatpush1.msra.mxu0 %v1420
  %2408 = vmatprep.subr.mxu0 0.0
  %2409 = vmatpush1.msra.mxu0 %v1421
  %2410 = vmatprep.subr.mxu0 0.0
  %2411 = vmatpush1.msra.mxu0 %v1422
  %2412 = vmatprep.subr.mxu0 0.0
  %2413 = vmatpush1.msra.mxu0 %v1423
  %2414 = vmatprep.subr.mxu0 0.0
  %2415 = vmatpush1.msra.mxu0 %v1424
  %2416 = vmatprep.subr.mxu0 0.0
  %2417 = vmatpush1.msra.mxu0 %v1425
  %2418 = vmatprep.subr.mxu0 0.0
  %2419 = vmatpush1.msra.mxu0 %v1426
  %2420 = vmatprep.subr.mxu0 0.0
  %2421 = vmatpush1.msra.mxu0 %v1427
  %2422 = vmatprep.subr.mxu0 0.0
  %2423 = vmatpush1.msra.mxu0 %v1428
  %2424 = vmatprep.subr.mxu0 0.0
  %2425 = vmatpush1.msra.mxu0 %v1429
  %2426 = vmatprep.subr.mxu0 0.0
  %2427 = vmatpush1.msra.mxu0 %v1430
  %2428 = vmatprep.subr.mxu0 0.0
  %2429 = vmatpush1.msra.mxu0 %v1431
  %2430 = vmatprep.subr.mxu0 0.0
  %2431 = vmatpush1.msra.mxu0 %v1432
  %2432 = vmatprep.subr.mxu0 0.0
  %2433 = vmatpush1.msra.mxu0 %v1433
  %2434 = vmatprep.subr.mxu0 0.0
  %2435 = vmatpush1.msra.mxu0 %v1434
  %2436 = vmatprep.subr.mxu0 0.0
  %2437 = vmatpush1.msra.mxu0 %v1435
  %2438 = vmatprep.subr.mxu0 0.0
  %2439 = vmatpush1.msra.mxu0 %v1436
  %2440 = vmatprep.mubr.f32.mxu0 %v1298
  %2441 = vmatmul.mubr.f32.gmra.mrb[0].mxu0 %v1297
  %v2442 = vpop.f32.mrb[0].mxu0
  %v2443 = vadd.f32 %v2373, %v2442
  %v2444 = vpop.f32.mrb[0].mxu0
  %2445 = vdwg.mxu0
  %2446 = vmatprep.subr.mxu0 0.0
  %2447 = vmatpush1.msra.mxu0 %v1437
  %2448 = vmatprep.subr.mxu0 0.0
  %2449 = vmatpush1.msra.mxu0 %v1438
  %2450 = vmatprep.subr.mxu0 0.0
  %2451 = vmatpush1.msra.mxu0 %v1439
  %2452 = vmatprep.subr.mxu0 0.0
  %2453 = vmatpush1.msra.mxu0 %v1440
  %2454 = vmatprep.subr.mxu0 0.0
  %2455 = vmatpush1.msra.mxu0 %v1441
  %2456 = vmatprep.subr.mxu0 0.0
  %2457 = vmatpush1.msra.mxu0 %v1442
  %2458 = vmatprep.subr.mxu0 0.0
  %2459 = vmatpush1.msra.mxu0 %v1443
  %2460 = vmatprep.subr.mxu0 0.0
  %2461 = vmatpush1.msra.mxu0 %v1444
  %2462 = vmatprep.subr.mxu0 0.0
  %2463 = vmatpush1.msra.mxu0 %v1445
  %2464 = vmatprep.subr.mxu0 0.0
  %2465 = vmatpush1.msra.mxu0 %v1446
  %2466 = vmatprep.subr.mxu0 0.0
  %2467 = vmatpush1.msra.mxu0 %v1447
  %2468 = vmatprep.subr.mxu0 0.0
  %2469 = vmatpush1.msra.mxu0 %v1448
  %2470 = vmatprep.subr.mxu0 0.0
  %2471 = vmatpush1.msra.mxu0 %v1449
  %2472 = vmatprep.subr.mxu0 0.0
  %2473 = vmatpush1.msra.mxu0 %v1450
  %2474 = vmatprep.subr.mxu0 0.0
  %2475 = vmatpush1.msra.mxu0 %v1451
  %2476 = vmatprep.subr.mxu0 0.0
  %2477 = vmatpush1.msra.mxu0 %v1452
  %2478 = vmatprep.subr.mxu0 0.0
  %2479 = vmatpush1.msra.mxu0 %v1453
  %2480 = vmatprep.subr.mxu0 0.0
  %2481 = vmatpush1.msra.mxu0 %v1454
  %2482 = vmatprep.subr.mxu0 0.0
  %2483 = vmatpush1.msra.mxu0 %v1455
  %2484 = vmatprep.subr.mxu0 0.0
  %2485 = vmatpush1.msra.mxu0 %v1456
  %2486 = vmatprep.subr.mxu0 0.0
  %2487 = vmatpush1.msra.mxu0 %v1457
  %2488 = vmatprep.subr.mxu0 0.0
  %2489 = vmatpush1.msra.mxu0 %v1458
  %2490 = vmatprep.subr.mxu0 0.0
  %2491 = vmatpush1.msra.mxu0 %v1459
  %2492 = vmatprep.subr.mxu0 0.0
  %2493 = vmatpush1.msra.mxu0 %v1460
  %2494 = vmatprep.subr.mxu0 0.0
  %2495 = vmatpush1.msra.mxu0 %v1461
  %2496 = vmatprep.subr.mxu0 0.0
  %2497 = vmatpush1.msra.mxu0 %v1462
  %2498 = vmatprep.subr.mxu0 0.0
  %2499 = vmatpush1.msra.mxu0 %v1463
  %2500 = vmatprep.subr.mxu0 0.0
  %2501 = vmatpush1.msra.mxu0 %v1464
  %2502 = vmatprep.subr.mxu0 0.0
  %2503 = vmatpush1.msra.mxu0 %v1465
  %2504 = vmatprep.subr.mxu0 0.0
  %2505 = vmatpush1.msra.mxu0 %v1466
  %2506 = vmatprep.subr.mxu0 0.0
  %2507 = vmatpush1.msra.mxu0 %v1467
  %2508 = vmatprep.subr.mxu0 0.0
  %2509 = vmatpush1.msra.mxu0 %v1468
  %2510 = vmatprep.mubr.f32.mxu0 %v1312
  %2511 = vmatmul.mubr.f32.gmra.mrb[0].mxu0 %v1339
  %v2512 = vpop.f32.mrb[0].mxu0
  %v2513 = vadd.f32 %v2443, %v2512
  %v2514 = vpop.f32.mrb[0].mxu0
  %2515 = vdwg.mxu0
  %2516 = vmatprep.subr.mxu0 0.0
  %2517 = vmatpush1.msra.mxu0 %v1469
  %2518 = vmatprep.subr.mxu0 0.0
  %2519 = vmatpush1.msra.mxu0 %v1470
  %2520 = vmatprep.subr.mxu0 0.0
  %2521 = vmatpush1.msra.mxu0 %v1471
  %2522 = vmatprep.subr.mxu0 0.0
  %2523 = vmatpush1.msra.mxu0 %v1472
  %2524 = vmatprep.subr.mxu0 0.0
  %2525 = vmatpush1.msra.mxu0 %v1473
  %2526 = vmatprep.subr.mxu0 0.0
  %2527 = vmatpush1.msra.mxu0 %v1474
  %2528 = vmatprep.subr.mxu0 0.0
  %2529 = vmatpush1.msra.mxu0 %v1475
  %2530 = vmatprep.subr.mxu0 0.0
  %2531 = vmatpush1.msra.mxu0 %v1476
  %2532 = vmatprep.subr.mxu0 0.0
  %2533 = vmatpush1.msra.mxu0 %v1477
  %2534 = vmatprep.subr.mxu0 0.0
  %2535 = vmatpush1.msra.mxu0 %v1478
  %2536 = vmatprep.subr.mxu0 0.0
  %2537 = vmatpush1.msra.mxu0 %v1479
  %2538 = vmatprep.subr.mxu0 0.0
  %2539 = vmatpush1.msra.mxu0 %v1480
  %2540 = vmatprep.subr.mxu0 0.0
  %2541 = vmatpush1.msra.mxu0 %v1481
  %2542 = vmatprep.subr.mxu0 0.0
  %2543 = vmatpush1.msra.mxu0 %v1482
  %2544 = vmatprep.subr.mxu0 0.0
  %2545 = vmatpush1.msra.mxu0 %v1483
  %2546 = vmatprep.subr.mxu0 0.0
  %2547 = vmatpush1.msra.mxu0 %v1484
  %2548 = vmatprep.subr.mxu0 0.0
  %2549 = vmatpush1.msra.mxu0 %v1485
  %2550 = vmatprep.subr.mxu0 0.0
  %2551 = vmatpush1.msra.mxu0 %v1486
  %2552 = vmatprep.subr.mxu0 0.0
  %2553 = vmatpush1.msra.mxu0 %v1487
  %2554 = vmatprep.subr.mxu0 0.0
  %2555 = vmatpush1.msra.mxu0 %v1488
  %2556 = vmatprep.subr.mxu0 0.0
  %2557 = vmatpush1.msra.mxu0 %v1489
  %2558 = vmatprep.subr.mxu0 0.0
  %2559 = vmatpush1.msra.mxu0 %v1490
  %2560 = vmatprep.subr.mxu0 0.0
  %2561 = vmatpush1.msra.mxu0 %v1491
  %2562 = vmatprep.subr.mxu0 0.0
  %2563 = vmatpush1.msra.mxu0 %v1492
  %2564 = vmatprep.subr.mxu0 0.0
  %2565 = vmatpush1.msra.mxu0 %v1493
  %2566 = vmatprep.subr.mxu0 0.0
  %2567 = vmatpush1.msra.mxu0 %v1494
  %2568 = vmatprep.subr.mxu0 0.0
  %2569 = vmatpush1.msra.mxu0 %v1495
  %2570 = vmatprep.subr.mxu0 0.0
  %2571 = vmatpush1.msra.mxu0 %v1496
  %2572 = vmatprep.subr.mxu0 0.0
  %2573 = vmatpush1.msra.mxu0 %v1497
  %2574 = vmatprep.subr.mxu0 0.0
  %2575 = vmatpush1.msra.mxu0 %v1498
  %2576 = vmatprep.subr.mxu0 0.0
  %2577 = vmatpush1.msra.mxu0 %v1499
  %2578 = vmatprep.subr.mxu0 0.0
  %2579 = vmatpush1.msra.mxu0 %v1500
  %2580 = vmatprep.mubr.f32.mxu0 %v1340
  %2581 = vmatmul.mubr.f32.gmra.mrb[0].mxu0 %v1313
  %v2582 = vpop.f32.mrb[0].mxu0
  %v2583 = vadd.f32 %v2513, %v2582
  %v2584 = vpop.f32.mrb[0].mxu0
  %2585 = vdwg.mxu0
  %2586 = vmatprep.subr.mxu0 0.0
  %2587 = vmatpush1.msra.mxu0 %v1501
  %2588 = vmatprep.subr.mxu0 0.0
  %2589 = vmatpush1.msra.mxu0 %v1502
  %2590 = vmatprep.subr.mxu0 0.0
  %2591 = vmatpush1.msra.mxu0 %v1503
  %2592 = vmatprep.subr.mxu0 0.0
  %2593 = vmatpush1.msra.mxu0 %v1504
  %2594 = vmatprep.subr.mxu0 0.0
  %2595 = vmatpush1.msra.mxu0 %v1505
  %2596 = vmatprep.subr.mxu0 0.0
  %2597 = vmatpush1.msra.mxu0 %v1506
  %2598 = vmatprep.subr.mxu0 0.0
  %2599 = vmatpush1.msra.mxu0 %v1507
  %2600 = vmatprep.subr.mxu0 0.0
  %2601 = vmatpush1.msra.mxu0 %v1508
  %2602 = vmatprep.subr.mxu0 0.0
  %2603 = vmatpush1.msra.mxu0 %v1509
  %2604 = vmatprep.subr.mxu0 0.0
  %2605 = vmatpush1.msra.mxu0 %v1510
  %2606 = vmatprep.subr.mxu0 0.0
  %2607 = vmatpush1.msra.mxu0 %v1511
  %2608 = vmatprep.subr.mxu0 0.0
  %2609 = vmatpush1.msra.mxu0 %v1512
  %2610 = vmatprep.subr.mxu0 0.0
  %2611 = vmatpush1.msra.mxu0 %v1513
  %2612 = vmatprep.subr.mxu0 0.0
  %2613 = vmatpush1.msra.mxu0 %v1514
  %2614 = vmatprep.subr.mxu0 0.0
  %2615 = vmatpush1.msra.mxu0 %v1515
  %2616 = vmatprep.subr.mxu0 0.0
  %2617 = vmatpush1.msra.mxu0 %v1516
  %2618 = vmatprep.subr.mxu0 0.0
  %2619 = vmatpush1.msra.mxu0 %v1517
  %2620 = vmatprep.subr.mxu0 0.0
  %2621 = vmatpush1.msra.mxu0 %v1518
  %2622 = vmatprep.subr.mxu0 0.0
  %2623 = vmatpush1.msra.mxu0 %v1519
  %2624 = vmatprep.subr.mxu0 0.0
  %2625 = vmatpush1.msra.mxu0 %v1520
  %2626 = vmatprep.subr.mxu0 0.0
  %2627 = vmatpush1.msra.mxu0 %v1521
  %2628 = vmatprep.subr.mxu0 0.0
  %2629 = vmatpush1.msra.mxu0 %v1522
  %2630 = vmatprep.subr.mxu0 0.0
  %2631 = vmatpush1.msra.mxu0 %v1523
  %2632 = vmatprep.subr.mxu0 0.0
  %2633 = vmatpush1.msra.mxu0 %v1524
  %2634 = vmatprep.subr.mxu0 0.0
  %2635 = vmatpush1.msra.mxu0 %v1525
  %2636 = vmatprep.subr.mxu0 0.0
  %2637 = vmatpush1.msra.mxu0 %v1526
  %2638 = vmatprep.subr.mxu0 0.0
  %2639 = vmatpush1.msra.mxu0 %v1527
  %2640 = vmatprep.subr.mxu0 0.0
  %2641 = vmatpush1.msra.mxu0 %v1528
  %2642 = vmatprep.subr.mxu0 0.0
  %2643 = vmatpush1.msra.mxu0 %v1529
  %2644 = vmatprep.subr.mxu0 0.0
  %2645 = vmatpush1.msra.mxu0 %v1530
  %2646 = vmatprep.subr.mxu0 0.0
  %2647 = vmatpush1.msra.mxu0 %v1531
  %2648 = vmatprep.subr.mxu0 0.0
  %2649 = vmatpush1.msra.mxu0 %v1532
  %2650 = vmatprep.mubr.f32.mxu0 %v1332
  %2651 = vmatmul.mubr.f32.gmra.mrb[0].mxu0 %v1331
  %v2652 = vpop.f32.mrb[0].mxu0
  %v2653 = vadd.f32 %v2583, %v2652
  %v2654 = vpop.f32.mrb[0].mxu0
  %2655 = vdwg.mxu0
  %2656 = vmatprep.subr.mxu0 0.0
  %2657 = vmatpush1.msra.mxu0 %v1533
  %2658 = vmatprep.subr.mxu0 0.0
  %2659 = vmatpush1.msra.mxu0 %v1534
  %2660 = vmatprep.subr.mxu0 0.0
  %2661 = vmatpush1.msra.mxu0 %v1535
  %2662 = vmatprep.subr.mxu0 0.0
  %2663 = vmatpush1.msra.mxu0 %v1536
  %2664 = vmatprep.subr.mxu0 0.0
  %2665 = vmatpush1.msra.mxu0 %v1537
  %2666 = vmatprep.subr.mxu0 0.0
  %2667 = vmatpush1.msra.mxu0 %v1538
  %2668 = vmatprep.subr.mxu0 0.0
  %2669 = vmatpush1.msra.mxu0 %v1539
  %2670 = vmatprep.subr.mxu0 0.0
  %2671 = vmatpush1.msra.mxu0 %v1540
  %2672 = vmatprep.subr.mxu0 0.0
  %2673 = vmatpush1.msra.mxu0 %v1541
  %2674 = vmatprep.subr.mxu0 0.0
  %2675 = vmatpush1.msra.mxu0 %v1542
  %2676 = vmatprep.subr.mxu0 0.0
  %2677 = vmatpush1.msra.mxu0 %v1543
  %2678 = vmatprep.subr.mxu0 0.0
  %2679 = vmatpush1.msra.mxu0 %v1544
  %2680 = vmatprep.subr.mxu0 0.0
  %2681 = vmatpush1.msra.mxu0 %v1545
  %2682 = vmatprep.subr.mxu0 0.0
  %2683 = vmatpush1.msra.mxu0 %v1546
  %2684 = vmatprep.subr.mxu0 0.0
  %2685 = vmatpush1.msra.mxu0 %v1547
  %2686 = vmatprep.subr.mxu0 0.0
  %2687 = vmatpush1.msra.mxu0 %v1548
  %2688 = vmatprep.subr.mxu0 0.0
  %2689 = vmatpush1.msra.mxu0 %v1549
  %2690 = vmatprep.subr.mxu0 0.0
  %2691 = vmatpush1.msra.mxu0 %v1550
  %2692 = vmatprep.subr.mxu0 0.0
  %2693 = vmatpush1.msra.mxu0 %v1551
  %2694 = vmatprep.subr.mxu0 0.0
  %2695 = vmatpush1.msra.mxu0 %v1552
  %2696 = vmatprep.subr.mxu0 0.0
  %2697 = vmatpush1.msra.mxu0 %v1553
  %2698 = vmatprep.subr.mxu0 0.0
  %2699 = vmatpush1.msra.mxu0 %v1554
  %2700 = vmatprep.subr.mxu0 0.0
  %2701 = vmatpush1.msra.mxu0 %v1555
  %2702 = vmatprep.subr.mxu0 0.0
  %2703 = vmatpush1.msra.mxu0 %v1556
  %2704 = vmatprep.subr.mxu0 0.0
  %2705 = vmatpush1.msra.mxu0 %v1557
  %2706 = vmatprep.subr.mxu0 0.0
  %2707 = vmatpush1.msra.mxu0 %v1558
  %2708 = vmatprep.subr.mxu0 0.0
  %2709 = vmatpush1.msra.mxu0 %v1559
  %2710 = vmatprep.subr.mxu0 0.0
  %2711 = vmatpush1.msra.mxu0 %v1560
  %2712 = vmatprep.subr.mxu0 0.0
  %2713 = vmatpush1.msra.mxu0 %v1561
  %2714 = vmatprep.subr.mxu0 0.0
  %2715 = vmatpush1.msra.mxu0 %v1562
  %2716 = vmatprep.subr.mxu0 0.0
  %2717 = vmatpush1.msra.mxu0 %v1563
  %2718 = vmatprep.subr.mxu0 0.0
  %2719 = vmatpush1.msra.mxu0 %v1564
  %2720 = vmatprep.mubr.f32.mxu0 %v1223
  %2721 = vmatmul.mubr.f32.gmra.mrb[0].mxu0 %v1333
  %v2722 = vpop.f32.mrb[0].mxu0
  %v2723 = vadd.f32 %v2653, %v2722
  %v2724 = vpop.f32.mrb[0].mxu0
  %2725 = vdwg.mxu0
  %2726 = vmatprep.subr.mxu0 0.0
  %2727 = vmatpush1.msra.mxu0 %v1565
  %2728 = vmatprep.subr.mxu0 0.0
  %2729 = vmatpush1.msra.mxu0 %v1566
  %2730 = vmatprep.subr.mxu0 0.0
  %2731 = vmatpush1.msra.mxu0 %v1567
  %2732 = vmatprep.subr.mxu0 0.0
  %2733 = vmatpush1.msra.mxu0 %v1568
  %2734 = vmatprep.subr.mxu0 0.0
  %2735 = vmatpush1.msra.mxu0 %v1569
  %2736 = vmatprep.subr.mxu0 0.0
  %2737 = vmatpush1.msra.mxu0 %v1570
  %2738 = vmatprep.subr.mxu0 0.0
  %2739 = vmatpush1.msra.mxu0 %v1571
  %2740 = vmatprep.subr.mxu0 0.0
  %2741 = vmatpush1.msra.mxu0 %v1572
  %2742 = vmatprep.subr.mxu0 0.0
  %2743 = vmatpush1.msra.mxu0 %v1573
  %2744 = vmatprep.subr.mxu0 0.0
  %2745 = vmatpush1.msra.mxu0 %v1574
  %2746 = vmatprep.subr.mxu0 0.0
  %2747 = vmatpush1.msra.mxu0 %v1575
  %2748 = vmatprep.subr.mxu0 0.0
  %2749 = vmatpush1.msra.mxu0 %v1576
  %2750 = vmatprep.subr.mxu0 0.0
  %2751 = vmatpush1.msra.mxu0 %v1577
  %2752 = vmatprep.subr.mxu0 0.0
  %2753 = vmatpush1.msra.mxu0 %v1578
  %2754 = vmatprep.subr.mxu0 0.0
  %2755 = vmatpush1.msra.mxu0 %v1579
  %2756 = vmatprep.subr.mxu0 0.0
  %2757 = vmatpush1.msra.mxu0 %v1580
  %2758 = vmatprep.subr.mxu0 0.0
  %2759 = vmatpush1.msra.mxu0 %v1581
  %2760 = vmatprep.subr.mxu0 0.0
  %2761 = vmatpush1.msra.mxu0 %v1582
  %2762 = vmatprep.subr.mxu0 0.0
  %2763 = vmatpush1.msra.mxu0 %v1583
  %2764 = vmatprep.subr.mxu0 0.0
  %2765 = vmatpush1.msra.mxu0 %v1584
  %2766 = vmatprep.subr.mxu0 0.0
  %2767 = vmatpush1.msra.mxu0 %v1585
  %2768 = vmatprep.subr.mxu0 0.0
  %2769 = vmatpush1.msra.mxu0 %v1586
  %2770 = vmatprep.subr.mxu0 0.0
  %2771 = vmatpush1.msra.mxu0 %v1587
  %2772 = vmatprep.subr.mxu0 0.0
  %2773 = vmatpush1.msra.mxu0 %v1588
  %2774 = vmatprep.subr.mxu0 0.0
  %2775 = vmatpush1.msra.mxu0 %v1589
  %2776 = vmatprep.subr.mxu0 0.0
  %2777 = vmatpush1.msra.mxu0 %v1590
  %2778 = vmatprep.subr.mxu0 0.0
  %2779 = vmatpush1.msra.mxu0 %v1591
  %2780 = vmatprep.subr.mxu0 0.0
  %2781 = vmatpush1.msra.mxu0 %v1592
  %2782 = vmatprep.subr.mxu0 0.0
  %2783 = vmatpush1.msra.mxu0 %v1593
  %2784 = vmatprep.subr.mxu0 0.0
  %2785 = vmatpush1.msra.mxu0 %v1594
  %2786 = vmatprep.subr.mxu0 0.0
  %2787 = vmatpush1.msra.mxu0 %v1595
  %2788 = vmatprep.subr.mxu0 0.0
  %2789 = vmatpush1.msra.mxu0 %v1596
  %2790 = vmatprep.mubr.f32.mxu0 %v1225
  %2791 = vmatmul.mubr.f32.gmra.mrb[0].mxu0 %v1224
  %v2792 = vpop.f32.mrb[0].mxu0
  %v2793 = vadd.f32 %v2723, %v2792
  %v2794 = vpop.f32.mrb[0].mxu0
  %2795 = vdwg.mxu0
  %2796 = vmatprep.subr.mxu0 0.0
  %2797 = vmatpush1.msra.mxu0 %v1597
  %2798 = vmatprep.subr.mxu0 0.0
  %2799 = vmatpush1.msra.mxu0 %v1598
  %2800 = vmatprep.subr.mxu0 0.0
  %2801 = vmatpush1.msra.mxu0 %v1599
  %2802 = vmatprep.subr.mxu0 0.0
  %2803 = vmatpush1.msra.mxu0 %v1600
  %2804 = vmatprep.subr.mxu0 0.0
  %2805 = vmatpush1.msra.mxu0 0.0
  %2806 = vmatprep.subr.mxu0 0.0
  %2807 = vmatpush1.msra.mxu0 0.0
  %2808 = vmatprep.subr.mxu0 0.0
  %2809 = vmatpush1.msra.mxu0 0.0
  %2810 = vmatprep.subr.mxu0 0.0
  %2811 = vmatpush1.msra.mxu0 0.0
  %2812 = vmatprep.subr.mxu0 0.0
  %2813 = vmatpush1.msra.mxu0 0.0
  %2814 = vmatprep.subr.mxu0 0.0
  %2815 = vmatpush1.msra.mxu0 0.0
  %2816 = vmatprep.subr.mxu0 0.0
  %2817 = vmatpush1.msra.mxu0 0.0
  %2818 = vmatprep.subr.mxu0 0.0
  %2819 = vmatpush1.msra.mxu0 0.0
  %2820 = vmatprep.subr.mxu0 0.0
  %2821 = vmatpush1.msra.mxu0 0.0
  %2822 = vmatprep.subr.mxu0 0.0
  %2823 = vmatpush1.msra.mxu0 0.0
  %2824 = vmatprep.subr.mxu0 0.0
  %2825 = vmatpush1.msra.mxu0 0.0
  %2826 = vmatprep.subr.mxu0 0.0
  %2827 = vmatpush1.msra.mxu0 0.0
  %2828 = vmatprep.subr.mxu0 0.0
  %2829 = vmatpush1.msra.mxu0 0.0
  %2830 = vmatprep.subr.mxu0 0.0
  %2831 = vmatpush1.msra.mxu0 0.0
  %2832 = vmatprep.subr.mxu0 0.0
  %2833 = vmatpush1.msra.mxu0 0.0
  %2834 = vmatprep.subr.mxu0 0.0
  %2835 = vmatpush1.msra.mxu0 0.0
  %2836 = vmatprep.subr.mxu0 0.0
  %2837 = vmatpush1.msra.mxu0 0.0
  %2838 = vmatprep.subr.mxu0 0.0
  %2839 = vmatpush1.msra.mxu0 0.0
  %2840 = vmatprep.subr.mxu0 0.0
  %2841 = vmatpush1.msra.mxu0 0.0
  %2842 = vmatprep.subr.mxu0 0.0
  %2843 = vmatpush1.msra.mxu0 0.0
  %2844 = vmatprep.subr.mxu0 0.0
  %2845 = vmatpush1.msra.mxu0 0.0
  %2846 = vmatprep.subr.mxu0 0.0
  %2847 = vmatpush1.msra.mxu0 0.0
  %2848 = vmatprep.subr.mxu0 0.0
  %2849 = vmatpush1.msra.mxu0 0.0
  %2850 = vmatprep.subr.mxu0 0.0
  %2851 = vmatpush1.msra.mxu0 0.0
  %2852 = vmatprep.subr.mxu0 0.0
  %2853 = vmatpush1.msra.mxu0 0.0
  %2854 = vmatprep.subr.mxu0 0.0
  %2855 = vmatpush1.msra.mxu0 0.0
  %2856 = vmatprep.subr.mxu0 0.0
  %2857 = vmatpush1.msra.mxu0 0.0
  %2858 = vmatprep.subr.mxu0 0.0
  %2859 = vmatpush1.msra.mxu0 0.0
  %2860 = vmatprep.mubr.f32.mxu0 0.0
  %2861 = vmatmul.mubr.f32.gmra.mrb[0].mxu0 %v2234
  %v2862 = vpop.f32.mrb[0].mxu0
  %v2863 = vadd.f32 %v2793, %v2862
  %v2864 = vpop.f32.mrb[0].mxu0
  %2865 = vdwg.mxu0
  %v2866 = vmax.f32 %v2230, %v2863
  %2868 = vrot.lane.b32.xlu0 %v2866, 64
  %v2869 = vpop.permute.xlu0 %2868
  %v2871 = vmax.f32 %v2866, %v2869
  %v2872 = vld [vmem:[%s4] sm:$0x1]
  %v2874 = vlaneseq
  %v2875 = vshrl.u32 %v2874, 7
  %v2876 = vsub.s32 0, %v2875
  %v2877 = vrot.slane %v2872, %v2876
  %v2879 = vadd.f32 %v2871, %v2877
  %v2880 = vld [vmem:[%s5] sm:$0xff]
  %v2881 = vld [vmem:[%s5 + $0x8] sm:$0xff]
  %v2882 = vld [vmem:[%s5 + $0x10] sm:$0xff]
  %v2883 = vld [vmem:[%s5 + $0x18] sm:$0xff]
  %v2884 = vld [vmem:[%s5 + $0x20] sm:$0xff]
  %v2885 = vld [vmem:[%s5 + $0x28] sm:$0xff]
  %v2886 = vld [vmem:[%s5 + $0x30] sm:$0xff]
  %v2887 = vld [vmem:[%s5 + $0x38] sm:$0xff]
  %v2888 = vld [vmem:[%s6] sm:$0x1]
  %v2890 = vlaneseq
  %v2891 = vshrl.u32 %v2890, 7
  %v2892 = vsub.s32 0, %v2891
  %v2893 = vrot.slane %v2888, %v2892
  %v2896 = vsel %vm1259, %v2879, 0
  %2898 = vmatprep.subr.mxu0 0.0
  %2899 = vmatpush1.msra.mxu0 %v2880
  %2900 = vmatprep.subr.mxu0 0.0
  %2901 = vmatpush1.msra.mxu0 %v2881
  %2902 = vmatprep.subr.mxu0 0.0
  %2903 = vmatpush1.msra.mxu0 %v2882
  %2904 = vmatprep.subr.mxu0 0.0
  %2905 = vmatpush1.msra.mxu0 %v2883
  %2906 = vmatprep.subr.mxu0 0.0
  %2907 = vmatpush1.msra.mxu0 %v2884
  %2908 = vmatprep.subr.mxu0 0.0
  %2909 = vmatpush1.msra.mxu0 %v2885
  %2910 = vmatprep.subr.mxu0 0.0
  %2911 = vmatpush1.msra.mxu0 %v2886
  %2912 = vmatprep.subr.mxu0 0.0
  %2913 = vmatpush1.msra.mxu0 %v2887
  %2914 = vmatprep.subr.mxu0 0.0
  %2915 = vmatpush1.msra.mxu0 0.0
  %2916 = vmatprep.subr.mxu0 0.0
  %2917 = vmatpush1.msra.mxu0 0.0
  %2918 = vmatprep.subr.mxu0 0.0
  %2919 = vmatpush1.msra.mxu0 0.0
  %2920 = vmatprep.subr.mxu0 0.0
  %2921 = vmatpush1.msra.mxu0 0.0
  %2922 = vmatprep.subr.mxu0 0.0
  %2923 = vmatpush1.msra.mxu0 0.0
  %2924 = vmatprep.subr.mxu0 0.0
  %2925 = vmatpush1.msra.mxu0 0.0
  %2926 = vmatprep.subr.mxu0 0.0
  %2927 = vmatpush1.msra.mxu0 0.0
  %2928 = vmatprep.subr.mxu0 0.0
  %2929 = vmatpush1.msra.mxu0 0.0
  %2930 = vmatprep.subr.mxu0 0.0
  %2931 = vmatpush1.msra.mxu0 0.0
  %2932 = vmatprep.subr.mxu0 0.0
  %2933 = vmatpush1.msra.mxu0 0.0
  %2934 = vmatprep.subr.mxu0 0.0
  %2935 = vmatpush1.msra.mxu0 0.0
  %2936 = vmatprep.subr.mxu0 0.0
  %2937 = vmatpush1.msra.mxu0 0.0
  %2938 = vmatprep.subr.mxu0 0.0
  %2939 = vmatpush1.msra.mxu0 0.0
  %2940 = vmatprep.subr.mxu0 0.0
  %2941 = vmatpush1.msra.mxu0 0.0
  %2942 = vmatprep.subr.mxu0 0.0
  %2943 = vmatpush1.msra.mxu0 0.0
  %2944 = vmatprep.subr.mxu0 0.0
  %2945 = vmatpush1.msra.mxu0 0.0
  %2946 = vmatprep.subr.mxu0 0.0
  %2947 = vmatpush1.msra.mxu0 0.0
  %2948 = vmatprep.subr.mxu0 0.0
  %2949 = vmatpush1.msra.mxu0 0.0
  %2950 = vmatprep.subr.mxu0 0.0
  %2951 = vmatpush1.msra.mxu0 0.0
  %2952 = vmatprep.subr.mxu0 0.0
  %2953 = vmatpush1.msra.mxu0 0.0
  %2954 = vmatprep.subr.mxu0 0.0
  %2955 = vmatpush1.msra.mxu0 0.0
  %2956 = vmatprep.subr.mxu0 0.0
  %2957 = vmatpush1.msra.mxu0 0.0
  %2958 = vmatprep.subr.mxu0 0.0
  %2959 = vmatpush1.msra.mxu0 0.0
  %2960 = vmatprep.subr.mxu0 0.0
  %2961 = vmatpush1.msra.mxu0 0.0
  %2962 = vmatprep.mubr.f32.mxu0 0.0
  %2963 = vmatmul.mubr.f32.gmra.mrb[0].mxu0 %v2896
  %v2964 = vpop.f32.mrb[0].mxu0
  %v2965 = vadd.f32 %v2893, %v2964
  %v2966 = vpop.f32.mrb[0].mxu0
  %2967 = vdwg.mxu0
  %v2968 = vmax.f32 %v2965, 0.0
  %v2969 = vld [vmem:[%s7] sm:$0x1]
  %v2970 = vld [vmem:[#allocation2] sm:$0x1]
  %2972 = vset.pattern.permute.xlu0 0
  %2973 = vperm.xlu0 %2972, %v2970
  %v2974 = vpop.permute.xlu0 %2973
  %v2976 = vlaneseq
  %v2977 = vshrl.u32 %v2976, 7
  %v2978 = vsub.s32 0, %v2977
  %v2979 = vrot.slane %v2974, %v2978
  %v2981 = vsel %vm1239, %v2969, 0
  %v2984 = vsel %vm1239, %v2968, 0
  %2986 = vmatprep.subr.mxu0 0.0
  %2987 = vmatpush1.xpose.msra.mxu0 %v2984
  %2988 = vmatprep.subr.mxu0 0.0
  %2989 = vmatpush1.xpose.msra.mxu0 0.0
  %2990 = vmatprep.subr.mxu0 0.0
  %2991 = vmatpush1.xpose.msra.mxu0 0.0
  %2992 = vmatprep.subr.mxu0 0.0
  %2993 = vmatpush1.xpose.msra.mxu0 0.0
  %2994 = vmatprep.subr.mxu0 0.0
  %2995 = vmatpush1.xpose.msra.mxu0 0.0
  %2996 = vmatprep.subr.mxu0 0.0
  %2997 = vmatpush1.xpose.msra.mxu0 0.0
  %2998 = vmatprep.subr.mxu0 0.0
  %2999 = vmatpush1.xpose.msra.mxu0 0.0
  %3000 = vmatprep.subr.mxu0 0.0
  %3001 = vmatpush1.xpose.msra.mxu0 0.0
  %3002 = vmatprep.subr.mxu0 0.0
  %3003 = vmatpush1.xpose.msra.mxu0 0.0
  %3004 = vmatprep.subr.mxu0 0.0
  %3005 = vmatpush1.xpose.msra.mxu0 0.0
  %3006 = vmatprep.subr.mxu0 0.0
  %3007 = vmatpush1.xpose.msra.mxu0 0.0
  %3008 = vmatprep.subr.mxu0 0.0
  %3009 = vmatpush1.xpose.msra.mxu0 0.0
  %3010 = vmatprep.subr.mxu0 0.0
  %3011 = vmatpush1.xpose.msra.mxu0 0.0
  %3012 = vmatprep.subr.mxu0 0.0
  %3013 = vmatpush1.xpose.msra.mxu0 0.0
  %3014 = vmatprep.subr.mxu0 0.0
  %3015 = vmatpush1.xpose.msra.mxu0 0.0
  %3016 = vmatprep.subr.mxu0 0.0
  %3017 = vmatpush1.xpose.msra.mxu0 0.0
  %3018 = vmatprep.subr.mxu0 0.0
  %3019 = vmatpush1.xpose.msra.mxu0 0.0
  %3020 = vmatprep.subr.mxu0 0.0
  %3021 = vmatpush1.xpose.msra.mxu0 0.0
  %3022 = vmatprep.subr.mxu0 0.0
  %3023 = vmatpush1.xpose.msra.mxu0 0.0
  %3024 = vmatprep.subr.mxu0 0.0
  %3025 = vmatpush1.xpose.msra.mxu0 0.0
  %3026 = vmatprep.subr.mxu0 0.0
  %3027 = vmatpush1.xpose.msra.mxu0 0.0
  %3028 = vmatprep.subr.mxu0 0.0
  %3029 = vmatpush1.xpose.msra.mxu0 0.0
  %3030 = vmatprep.subr.mxu0 0.0
  %3031 = vmatpush1.xpose.msra.mxu0 0.0
  %3032 = vmatprep.subr.mxu0 0.0
  %3033 = vmatpush1.xpose.msra.mxu0 0.0
  %3034 = vmatprep.subr.mxu0 0.0
  %3035 = vmatpush1.xpose.msra.mxu0 0.0
  %3036 = vmatprep.subr.mxu0 0.0
  %3037 = vmatpush1.xpose.msra.mxu0 0.0
  %3038 = vmatprep.subr.mxu0 0.0
  %3039 = vmatpush1.xpose.msra.mxu0 0.0
  %3040 = vmatprep.subr.mxu0 0.0
  %3041 = vmatpush1.xpose.msra.mxu0 0.0
  %3042 = vmatprep.subr.mxu0 0.0
  %3043 = vmatpush1.xpose.msra.mxu0 0.0
  %3044 = vmatprep.subr.mxu0 0.0
  %3045 = vmatpush1.xpose.msra.mxu0 0.0
  %3046 = vmatprep.subr.mxu0 0.0
  %3047 = vmatpush1.xpose.msra.mxu0 0.0
  %3048 = vmatprep.subr.mxu0 0.0
  %3049 = vmatpush1.xpose.msra.mxu0 0.0
  %3050 = vmatprep.mubr.f32.mxu0 0.0
  %3051 = vmatmul.mubr.f32.gmra.mrb[0].mxu0 %v2981
  %v3052 = vpop.f32.mrb[0].mxu0
  %v3053 = vadd.f32 %v2979, %v3052
  %v3054 = vpop.f32.mrb[0].mxu0
  %3055 = vdwg.mxu0
  %v3056 = vand.u32 2147483647, %v3053
  %v3057 = vsub.f32 0.0, %v3056
  %v3058 = vmul.f32 %v3057, 1.442695
  %v3059 = vpow.pop %v3058
  %vm3060 = vcmp.ge.f32.partialorder %v3053, 0.0
  %v3061 = vadd.f32 %v3059, 1.0
  %v3062 = vrcp.pop %v3061
  %v3063 = vmul.f32 1.0, %v3062
  %v3064 = vmul.f32 %v3059, %v3062
  %v3065 = vsel %vm3060, %v3063, %v3064
  %vm3066 = vcmask 57344
  %3067 = vst.msk [vmem:[%s9] sm:$0x1] %vm3066, %v3065
  // Predicated region
  $region38: #{net_forward.1} parent=0 // pred_check
    _
  $region39: #{net_forward.1} parent=0 // pred_check_branch
    %3069 = sbr.rel (0) target = $region41
  $region40: #{net_forward.1} parent=0 // pred_region
    _
  $region41: #{net_forward.1} parent=0 // pred_fallthru
    _
  // Predicated region
  $region42: #{net_forward.1} parent=0 // pred_check
    _
  $region43: #{net_forward.1} parent=0 // pred_check_branch
    %3071 = sbr.rel (0) target = $region45
  $region44: #{net_forward.1} parent=0 // pred_region
    _
  $region45: #{net_forward.1} parent=0 // pred_fallthru
    _

</llo_original>
